<compile_context>
chip_gen: v6e
topology: v6e:2x2x1
jax: 0.10.0
libtpu: 0.0.40
codegen_flags: <defaults>
</compile_context>

<pallas_src>
import functools

import jax
import jax.numpy as jnp
from jax.experimental import pallas as pl
from jax.experimental.pallas import tpu as pltpu


PAD = 128      # lane padding on each side of the flat N*H*W axis (>= W+1, 128-aligned)
EPS = 1e-5


# ----------------------------------------------------------------------------
# Fused encoder kernel: 3 x (3x3 conv -> training-mode BN -> PReLU/Tanh),
# intermediates VMEM-resident, in-kernel im2col via shifted slices + masks.
# ----------------------------------------------------------------------------
def _encoder_kernel(x_ref, w1_ref, g1_ref, bt1_ref,
                    w2_ref, g2_ref, bt2_ref,
                    w34_ref, g34_ref, bt34_ref,
                    o1_ref, o2_ref, oB_ref, oD_ref,
                    pad_ref, *, n, h, w, alpha1, alpha2, eps):
    nhw = n * h * w
    inv_cnt = 1.0 / float(nhw)

    # ---- tap-boundary masks from destination (h, w) coords (H, W pow2) -------
    # flat index i = n*H*W + h*W + w
    lane = jax.lax.broadcasted_iota(jnp.int32, (1, nhw), 1)
    wq = lane & (w - 1)                 # column within a row
    flat_hw = lane & (h * w - 1)        # position within one image
    ok_h = {0: flat_hw >= w, 1: None, 2: flat_hw < (h - 1) * w}
    ok_w = {0: wq >= 1, 1: None, 2: wq <= w - 2}
    masks = []
    for dh in range(3):
        for dw in range(3):
            v = ok_h[dh]
            if ok_w[dw] is not None:
                v = ok_w[dw] if v is None else (v & ok_w[dw])
            masks.append(None if v is None else jnp.where(v, 1.0, 0.0))

    # ---- zero the padded flat tap buffer once (halo columns stay zero) -------
    pad_ref[...] = jnp.zeros(pad_ref.shape, pad_ref.dtype)

    def write_act(a):
        # store activation into the (lane-aligned) centre of the line buffer
        pad_ref[:, PAD:PAD + nhw] = a.astype(pad_ref.dtype)

    def conv_bn_act(w9_ref, g_ref, bt_ref, act, alpha=0.25):
        # 3x3 conv = 9 shifted (Cout,Cin)@(Cin,NHW) bf16 MXU matmuls, f32 acc.
        # Conv bias omitted: training-mode BN subtracts the batch mean, so the
        # per-channel bias cancels exactly.
        z = None
        for t in range(9):
            dh, dw = divmod(t, 3)
            s = (dh - 1) * w + (dw - 1)
            tap = pad_ref[:, PAD + s:PAD + s + nhw]          # (Cin_pad, NHW) f32
            if masks[t] is not None:
                tap = tap * masks[t]
            zt = jnp.dot(w9_ref[t], tap.astype(jnp.bfloat16),
                         preferred_element_type=jnp.float32)
            z = zt if z is None else z + zt

        # one-pass training-mode batch statistics (biased variance)
        mean = jnp.sum(z, axis=-1, keepdims=True) * inv_cnt
        var = jnp.sum(z * z, axis=-1, keepdims=True) * inv_cnt - mean * mean
        scale = g_ref[...] * jax.lax.rsqrt(var + eps)
        shift = bt_ref[...] - mean * scale
        y = z * scale + shift
        if act == "prelu":
            return jnp.where(y > 0, y, alpha * y)
        return jnp.tanh(y)

    # conv1 (PReLU)
    write_act(x_ref[...])
    f1 = conv_bn_act(w1_ref, g1_ref, bt1_ref, "prelu", alpha1)
    o1_ref[...] = f1

    # conv2 (PReLU)
    write_act(f1)
    f2 = conv_bn_act(w2_ref, g2_ref, bt2_ref, "prelu", alpha2)
    o2_ref[...] = f2

    # conv3 + conv4 fused along Cout (Tanh); split on the (aligned) sublane axis
    write_act(f2)
    f34 = conv_bn_act(w34_ref, g34_ref, bt34_ref, "tanh")
    cB = oB_ref.shape[0]
    oB_ref[...] = f34[0:cB, :]
    oD_ref[...] = f34[cB:cB + oD_ref.shape[0], :]


# ----------------------------------------------------------------------------
# One-time parameter packing (outside the jitted forward).
# ----------------------------------------------------------------------------
def pack_encoder_params(params, cin_pad=16):
    """(3,3,Cin,Cout) -> (9,Cout,cin_pad) bf16; BN gamma/beta -> (Cout,1) f32;
    conv3/conv4 concatenated along Cout.  Conv biases are intentionally dropped
    (they cancel under training-mode BatchNorm)."""
    def pack_w(wt):
        kh, kw, cin, cout = wt.shape
        w9 = jnp.transpose(wt, (0, 1, 3, 2)).reshape(kh * kw, cout, cin)
        if cin < cin_pad:
            w9 = jnp.pad(w9, ((0, 0), (0, 0), (0, cin_pad - cin)))
        return w9.astype(jnp.bfloat16)

    col = lambda v: v.reshape(-1, 1).astype(jnp.float32)
    w1, _, g1, bt1, _, _ = params[0]
    w2, _, g2, bt2, _, _ = params[1]
    w3, _, g3, bt3, _, _ = params[2]
    w4, _, g4, bt4, _, _ = params[3]
    return dict(
        w1=pack_w(w1), g1=col(g1), bt1=col(bt1),
        w2=pack_w(w2), g2=col(g2), bt2=col(bt2),
        w34=pack_w(jnp.concatenate([w3, w4], axis=-1)),
        g34=col(jnp.concatenate([g3, g4])),
        bt34=col(jnp.concatenate([bt3, bt4])),
    )


# ----------------------------------------------------------------------------
# Forward wrapper: one pallas_call for the whole encoder.
# ----------------------------------------------------------------------------
def encoder_forward(x_nchw, p, *, alphas, eps=EPS):
    N, C, H, W = x_nchw.shape
    NHW = N * H * W
    # power-of-two H, W lets the in-kernel boundary masks use bit-ops only.
    assert H & (H - 1) == 0 and W & (W - 1) == 0  # TODO(synk): general H,W masks
    assert W + 1 <= PAD

    cin_pad = p["w1"].shape[-1]
    # glue: NCHW -> channel-major flat (C, N*H*W), zero-pad channels to cin_pad
    x2d = jnp.transpose(x_nchw, (1, 0, 2, 3)).reshape(C, NHW).astype(jnp.float32)
    if C < cin_pad:
        x2d = jnp.pad(x2d, ((0, cin_pad - C), (0, 0)))

    c1 = p["g1"].shape[0]
    c2 = p["g2"].shape[0]
    c34 = p["g34"].shape[0]
    cB = c34 // 2

    vmem = pl.BlockSpec(memory_space=pltpu.MemorySpace.VMEM)
    kernel = functools.partial(_encoder_kernel, n=N, h=H, w=W,
                               alpha1=alphas[0], alpha2=alphas[1], eps=eps)

    o1, o2, oB, oD = pl.pallas_call(
        kernel,
        out_shape=(jax.ShapeDtypeStruct((c1, NHW), jnp.float32),
                   jax.ShapeDtypeStruct((c2, NHW), jnp.float32),
                   jax.ShapeDtypeStruct((cB, NHW), jnp.float32),
                   jax.ShapeDtypeStruct((c34 - cB, NHW), jnp.float32)),
        in_specs=[vmem] * 10,
        out_specs=(vmem, vmem, vmem, vmem),
        scratch_shapes=[pltpu.VMEM((cin_pad, NHW + 2 * PAD), jnp.float32)],
    )(x2d, p["w1"], p["g1"], p["bt1"],
      p["w2"], p["g2"], p["bt2"],
      p["w34"], p["g34"], p["bt34"])

    def to_nchw(t):
        return t.reshape(t.shape[0], N, H, W).transpose(1, 0, 2, 3)

    return to_nchw(o1), to_nchw(o2), to_nchw(oB), to_nchw(oD)


# ----------------------------------------------------------------------------
# Parameter init (matches the PyTorch module's layer configs).
# ----------------------------------------------------------------------------
def init_encoder_params(key):
    cfgs = [(3, 16, "prelu"), (16, 16, "prelu"), (16, 16, "tanh"), (16, 16, "tanh")]
    params = []
    for (cin, cout, act) in cfgs:
        k1, k2, k3, k4, key = jax.random.split(key, 5)
        wt = 0.1 * jax.random.normal(k1, (3, 3, cin, cout), jnp.float32)
        b = 0.01 * jax.random.normal(k2, (cout,), jnp.float32)
        gamma = 1.0 + 0.1 * jax.random.normal(k3, (cout,), jnp.float32)
        beta = 0.05 * jax.random.normal(k4, (cout,), jnp.float32)
        alpha = 0.25  # nn.PReLU default (ignored for tanh layers)
        params.append((wt, b, gamma, beta, alpha, act))
    return params


# ----------------------------------------------------------------------------
# Pure-JAX reference (with conv bias, two-pass BN) for the sanity check.
# ----------------------------------------------------------------------------
def _ref_block(x, wt, b, gamma, beta, alpha, act, eps=EPS):
    z = jax.lax.conv_general_dilated(
        x, wt, (1, 1), "SAME",
        dimension_numbers=("NHWC", "HWIO", "NHWC")) + b
    mean = z.mean((0, 1, 2))
    var = z.var((0, 1, 2))
    y = (z - mean) * jax.lax.rsqrt(var + eps) * gamma + beta
    return jnp.where(y > 0, y, alpha * y) if act == "prelu" else jnp.tanh(y)


def _ref_encoder(x_nchw, params):
    x = jnp.transpose(x_nchw, (0, 2, 3, 1)).astype(jnp.float32)
    f1 = _ref_block(x, *params[0])
    f2 = _ref_block(f1, *params[1])
    fB = _ref_block(f2, *params[2])
    fD = _ref_block(f2, *params[3])
    t = lambda a: jnp.transpose(a, (0, 3, 1, 2))
    return t(f1), t(f2), t(fB), t(fD)


if __name__ == "__main__":
    key = jax.random.PRNGKey(0)
    kx, kp = jax.random.split(key)
    x = jax.random.normal(kx, (2, 3, 16, 16), jnp.float32)  # NCHW like PyTorch
    params = init_encoder_params(kp)

    packed = pack_encoder_params(params)                    # one-time pre-pack
    alphas = (params[0][4], params[1][4])                   # compile-time PReLU alphas
    fwd = jax.jit(functools.partial(encoder_forward, alphas=alphas))
    outs = jax.block_until_ready(fwd(x, packed))

    refs = _ref_encoder(x, params)
    for o, r in zip(outs, refs):
        assert o.shape == r.shape and o.dtype == r.dtype
        err = float(jnp.max(jnp.abs(o - r)))
        assert err < 3e-2, err

    print("KERNEL_OK")
</pallas_src>

<mosaic_0001>
module attributes {stable_mosaic.version = 11 : i64} {
  func.func @_encoder_kernel(%arg0: memref<16x512xf32, #tpu.memory_space<vmem>>, %arg1: memref<9x16x16xbf16, #tpu.memory_space<vmem>>, %arg2: memref<16x1xf32, #tpu.memory_space<vmem>>, %arg3: memref<16x1xf32, #tpu.memory_space<vmem>>, %arg4: memref<9x16x16xbf16, #tpu.memory_space<vmem>>, %arg5: memref<16x1xf32, #tpu.memory_space<vmem>>, %arg6: memref<16x1xf32, #tpu.memory_space<vmem>>, %arg7: memref<9x32x16xbf16, #tpu.memory_space<vmem>>, %arg8: memref<32x1xf32, #tpu.memory_space<vmem>>, %arg9: memref<32x1xf32, #tpu.memory_space<vmem>>, %arg10: memref<16x512xf32, #tpu.memory_space<vmem>>, %arg11: memref<16x512xf32, #tpu.memory_space<vmem>>, %arg12: memref<16x512xf32, #tpu.memory_space<vmem>>, %arg13: memref<16x512xf32, #tpu.memory_space<vmem>>, %arg14: memref<16x768xf32, #tpu.memory_space<vmem>>) attributes {dimension_semantics = [], scalar_prefetch = 0 : i64, scratch_operands = 1 : i64, tpu.core_type = #tpu.core_type<tc>} {
    %0 = tpu.iota {dimensions = array<i32: 1>} : vector<1x512xi32>
    %c15_i32 = arith.constant 15 : i32
    %1 = vector.broadcast %c15_i32 : i32 to vector<1x512xi32>
    %2 = arith.andi %0, %1 : vector<1x512xi32>
    %c255_i32 = arith.constant 255 : i32
    %3 = vector.broadcast %c255_i32 : i32 to vector<1x512xi32>
    %4 = arith.andi %0, %3 : vector<1x512xi32>
    %c16_i32 = arith.constant 16 : i32
    %5 = vector.broadcast %c16_i32 : i32 to vector<1x512xi32>
    %6 = arith.cmpi sge, %4, %5 : vector<1x512xi32>
    %c240_i32 = arith.constant 240 : i32
    %7 = vector.broadcast %c240_i32 : i32 to vector<1x512xi32>
    %8 = arith.cmpi slt, %4, %7 : vector<1x512xi32>
    %c1_i32 = arith.constant 1 : i32
    %9 = vector.broadcast %c1_i32 : i32 to vector<1x512xi32>
    %10 = arith.cmpi sge, %2, %9 : vector<1x512xi32>
    %c14_i32 = arith.constant 14 : i32
    %11 = vector.broadcast %c14_i32 : i32 to vector<1x512xi32>
    %12 = arith.cmpi sle, %2, %11 : vector<1x512xi32>
    %13 = arith.andi %6, %10 : vector<1x512xi1>
    %cst = arith.constant 1.000000e+00 : f32
    %cst_0 = arith.constant 0.000000e+00 : f32
    %14 = vector.broadcast %cst : f32 to vector<1x512xf32>
    %15 = vector.broadcast %cst_0 : f32 to vector<1x512xf32>
    %16 = arith.select %13, %14, %15 : vector<1x512xi1>, vector<1x512xf32>
    %cst_1 = arith.constant 1.000000e+00 : f32
    %cst_2 = arith.constant 0.000000e+00 : f32
    %17 = vector.broadcast %cst_1 : f32 to vector<1x512xf32>
    %18 = vector.broadcast %cst_2 : f32 to vector<1x512xf32>
    %19 = arith.select %6, %17, %18 : vector<1x512xi1>, vector<1x512xf32>
    %20 = arith.andi %6, %12 : vector<1x512xi1>
    %cst_3 = arith.constant 1.000000e+00 : f32
    %cst_4 = arith.constant 0.000000e+00 : f32
    %21 = vector.broadcast %cst_3 : f32 to vector<1x512xf32>
    %22 = vector.broadcast %cst_4 : f32 to vector<1x512xf32>
    %23 = arith.select %20, %21, %22 : vector<1x512xi1>, vector<1x512xf32>
    %cst_5 = arith.constant 1.000000e+00 : f32
    %cst_6 = arith.constant 0.000000e+00 : f32
    %24 = vector.broadcast %cst_5 : f32 to vector<1x512xf32>
    %25 = vector.broadcast %cst_6 : f32 to vector<1x512xf32>
    %26 = arith.select %10, %24, %25 : vector<1x512xi1>, vector<1x512xf32>
    %cst_7 = arith.constant 1.000000e+00 : f32
    %cst_8 = arith.constant 0.000000e+00 : f32
    %27 = vector.broadcast %cst_7 : f32 to vector<1x512xf32>
    %28 = vector.broadcast %cst_8 : f32 to vector<1x512xf32>
    %29 = arith.select %12, %27, %28 : vector<1x512xi1>, vector<1x512xf32>
    %30 = arith.andi %8, %10 : vector<1x512xi1>
    %cst_9 = arith.constant 1.000000e+00 : f32
    %cst_10 = arith.constant 0.000000e+00 : f32
    %31 = vector.broadcast %cst_9 : f32 to vector<1x512xf32>
    %32 = vector.broadcast %cst_10 : f32 to vector<1x512xf32>
    %33 = arith.select %30, %31, %32 : vector<1x512xi1>, vector<1x512xf32>
    %cst_11 = arith.constant 1.000000e+00 : f32
    %cst_12 = arith.constant 0.000000e+00 : f32
    %34 = vector.broadcast %cst_11 : f32 to vector<1x512xf32>
    %35 = vector.broadcast %cst_12 : f32 to vector<1x512xf32>
    %36 = arith.select %8, %34, %35 : vector<1x512xi1>, vector<1x512xf32>
    %37 = arith.andi %8, %12 : vector<1x512xi1>
    %cst_13 = arith.constant 1.000000e+00 : f32
    %cst_14 = arith.constant 0.000000e+00 : f32
    %38 = vector.broadcast %cst_13 : f32 to vector<1x512xf32>
    %39 = vector.broadcast %cst_14 : f32 to vector<1x512xf32>
    %40 = arith.select %37, %38, %39 : vector<1x512xi1>, vector<1x512xf32>
    %cst_15 = arith.constant 0.000000e+00 : f32
    %41 = vector.broadcast %cst_15 : f32 to vector<16x768xf32>
    %c0 = arith.constant 0 : index
    %c0_16 = arith.constant 0 : index
    %42 = vector.load %arg14[%c0, %c0_16] : memref<16x768xf32, #tpu.memory_space<vmem>>, vector<16x768xf32>
    tpu.vector_store %arg14[%c0, %c0_16], %41 {strides = array<i32>} : memref<16x768xf32, #tpu.memory_space<vmem>>, vector<16x768xf32>,
    %c0_17 = arith.constant 0 : index
    %c0_18 = arith.constant 0 : index
    %43 = vector.load %arg0[%c0_17, %c0_18] : memref<16x512xf32, #tpu.memory_space<vmem>>, vector<16x512xf32>
    %c0_19 = arith.constant 0 : index
    %c128 = arith.constant 128 : index
    %44 = vector.load %arg14[%c0_19, %c128] : memref<16x768xf32, #tpu.memory_space<vmem>>, vector<16x512xf32>
    tpu.vector_store %arg14[%c0_19, %c128], %43 {strides = array<i32>} : memref<16x768xf32, #tpu.memory_space<vmem>>, vector<16x512xf32>,
    %c0_20 = arith.constant 0 : index
    %c111 = arith.constant 111 : index
    %45 = vector.load %arg14[%c0_20, %c111] : memref<16x768xf32, #tpu.memory_space<vmem>>, vector<16x512xf32>
    %46 = vector.broadcast %16 : vector<1x512xf32> to vector<16x512xf32>
    %47 = arith.mulf %45, %46 : vector<16x512xf32>
    %c0_21 = arith.constant 0 : index
    %c0_22 = arith.constant 0 : index
    %c0_23 = arith.constant 0 : index
    %48 = vector.load %arg1[%c0_21, %c0_22, %c0_23] : memref<9x16x16xbf16, #tpu.memory_space<vmem>>, vector<1x16x16xbf16>
    %49 = vector.shape_cast %48 : vector<1x16x16xbf16> to vector<16x16xbf16>
    %50 = arith.truncf %47 : vector<16x512xf32> to vector<16x512xbf16>
    %cst_24 = arith.constant dense<0.000000e+00> : vector<16x512xf32>
    %51 = tpu.matmul %49, %50, %cst_24 {dimension_numbers = #tpu.dot_dimension_numbers<[1], [0], [0], [1], [0, 0, 1, 1], [], []>} : vector<16x16xbf16>, vector<16x512xbf16>, vector<16x512xf32> -> vector<16x512xf32>
    %c0_25 = arith.constant 0 : index
    %c112 = arith.constant 112 : index
    %52 = vector.load %arg14[%c0_25, %c112] : memref<16x768xf32, #tpu.memory_space<vmem>>, vector<16x512xf32>
    %53 = vector.broadcast %19 : vector<1x512xf32> to vector<16x512xf32>
    %54 = arith.mulf %52, %53 : vector<16x512xf32>
    %c1 = arith.constant 1 : index
    %c0_26 = arith.constant 0 : index
    %c0_27 = arith.constant 0 : index
    %55 = vector.load %arg1[%c1, %c0_26, %c0_27] : memref<9x16x16xbf16, #tpu.memory_space<vmem>>, vector<1x16x16xbf16>
    %56 = vector.shape_cast %55 : vector<1x16x16xbf16> to vector<16x16xbf16>
    %57 = arith.truncf %54 : vector<16x512xf32> to vector<16x512xbf16>
    %cst_28 = arith.constant dense<0.000000e+00> : vector<16x512xf32>
    %58 = tpu.matmul %56, %57, %cst_28 {dimension_numbers = #tpu.dot_dimension_numbers<[1], [0], [0], [1], [0, 0, 1, 1], [], []>} : vector<16x16xbf16>, vector<16x512xbf16>, vector<16x512xf32> -> vector<16x512xf32>
    %59 = arith.addf %51, %58 : vector<16x512xf32>
    %c0_29 = arith.constant 0 : index
    %c113 = arith.constant 113 : index
    %60 = vector.load %arg14[%c0_29, %c113] : memref<16x768xf32, #tpu.memory_space<vmem>>, vector<16x512xf32>
    %61 = vector.broadcast %23 : vector<1x512xf32> to vector<16x512xf32>
    %62 = arith.mulf %60, %61 : vector<16x512xf32>
    %c2 = arith.constant 2 : index
    %c0_30 = arith.constant 0 : index
    %c0_31 = arith.constant 0 : index
    %63 = vector.load %arg1[%c2, %c0_30, %c0_31] : memref<9x16x16xbf16, #tpu.memory_space<vmem>>, vector<1x16x16xbf16>
    %64 = vector.shape_cast %63 : vector<1x16x16xbf16> to vector<16x16xbf16>
    %65 = arith.truncf %62 : vector<16x512xf32> to vector<16x512xbf16>
    %cst_32 = arith.constant dense<0.000000e+00> : vector<16x512xf32>
    %66 = tpu.matmul %64, %65, %cst_32 {dimension_numbers = #tpu.dot_dimension_numbers<[1], [0], [0], [1], [0, 0, 1, 1], [], []>} : vector<16x16xbf16>, vector<16x512xbf16>, vector<16x512xf32> -> vector<16x512xf32>
    %67 = arith.addf %59, %66 : vector<16x512xf32>
    %c0_33 = arith.constant 0 : index
    %c127 = arith.constant 127 : index
    %68 = vector.load %arg14[%c0_33, %c127] : memref<16x768xf32, #tpu.memory_space<vmem>>, vector<16x512xf32>
    %69 = vector.broadcast %26 : vector<1x512xf32> to vector<16x512xf32>
    %70 = arith.mulf %68, %69 : vector<16x512xf32>
    %c3 = arith.constant 3 : index
    %c0_34 = arith.constant 0 : index
    %c0_35 = arith.constant 0 : index
    %71 = vector.load %arg1[%c3, %c0_34, %c0_35] : memref<9x16x16xbf16, #tpu.memory_space<vmem>>, vector<1x16x16xbf16>
    %72 = vector.shape_cast %71 : vector<1x16x16xbf16> to vector<16x16xbf16>
    %73 = arith.truncf %70 : vector<16x512xf32> to vector<16x512xbf16>
    %cst_36 = arith.constant dense<0.000000e+00> : vector<16x512xf32>
    %74 = tpu.matmul %72, %73, %cst_36 {dimension_numbers = #tpu.dot_dimension_numbers<[1], [0], [0], [1], [0, 0, 1, 1], [], []>} : vector<16x16xbf16>, vector<16x512xbf16>, vector<16x512xf32> -> vector<16x512xf32>
    %75 = arith.addf %67, %74 : vector<16x512xf32>
    %c0_37 = arith.constant 0 : index
    %c128_38 = arith.constant 128 : index
    %76 = vector.load %arg14[%c0_37, %c128_38] : memref<16x768xf32, #tpu.memory_space<vmem>>, vector<16x512xf32>
    %c4 = arith.constant 4 : index
    %c0_39 = arith.constant 0 : index
    %c0_40 = arith.constant 0 : index
    %77 = vector.load %arg1[%c4, %c0_39, %c0_40] : memref<9x16x16xbf16, #tpu.memory_space<vmem>>, vector<1x16x16xbf16>
    %78 = vector.shape_cast %77 : vector<1x16x16xbf16> to vector<16x16xbf16>
    %79 = arith.truncf %76 : vector<16x512xf32> to vector<16x512xbf16>
    %cst_41 = arith.constant dense<0.000000e+00> : vector<16x512xf32>
    %80 = tpu.matmul %78, %79, %cst_41 {dimension_numbers = #tpu.dot_dimension_numbers<[1], [0], [0], [1], [0, 0, 1, 1], [], []>} : vector<16x16xbf16>, vector<16x512xbf16>, vector<16x512xf32> -> vector<16x512xf32>
    %81 = arith.addf %75, %80 : vector<16x512xf32>
    %c0_42 = arith.constant 0 : index
    %c129 = arith.constant 129 : index
    %82 = vector.load %arg14[%c0_42, %c129] : memref<16x768xf32, #tpu.memory_space<vmem>>, vector<16x512xf32>
    %83 = vector.broadcast %29 : vector<1x512xf32> to vector<16x512xf32>
    %84 = arith.mulf %82, %83 : vector<16x512xf32>
    %c5 = arith.constant 5 : index
    %c0_43 = arith.constant 0 : index
    %c0_44 = arith.constant 0 : index
    %85 = vector.load %arg1[%c5, %c0_43, %c0_44] : memref<9x16x16xbf16, #tpu.memory_space<vmem>>, vector<1x16x16xbf16>
    %86 = vector.shape_cast %85 : vector<1x16x16xbf16> to vector<16x16xbf16>
    %87 = arith.truncf %84 : vector<16x512xf32> to vector<16x512xbf16>
    %cst_45 = arith.constant dense<0.000000e+00> : vector<16x512xf32>
    %88 = tpu.matmul %86, %87, %cst_45 {dimension_numbers = #tpu.dot_dimension_numbers<[1], [0], [0], [1], [0, 0, 1, 1], [], []>} : vector<16x16xbf16>, vector<16x512xbf16>, vector<16x512xf32> -> vector<16x512xf32>
    %89 = arith.addf %81, %88 : vector<16x512xf32>
    %c0_46 = arith.constant 0 : index
    %c143 = arith.constant 143 : index
    %90 = vector.load %arg14[%c0_46, %c143] : memref<16x768xf32, #tpu.memory_space<vmem>>, vector<16x512xf32>
    %91 = vector.broadcast %33 : vector<1x512xf32> to vector<16x512xf32>
    %92 = arith.mulf %90, %91 : vector<16x512xf32>
    %c6 = arith.constant 6 : index
    %c0_47 = arith.constant 0 : index
    %c0_48 = arith.constant 0 : index
    %93 = vector.load %arg1[%c6, %c0_47, %c0_48] : memref<9x16x16xbf16, #tpu.memory_space<vmem>>, vector<1x16x16xbf16>
    %94 = vector.shape_cast %93 : vector<1x16x16xbf16> to vector<16x16xbf16>
    %95 = arith.truncf %92 : vector<16x512xf32> to vector<16x512xbf16>
    %cst_49 = arith.constant dense<0.000000e+00> : vector<16x512xf32>
    %96 = tpu.matmul %94, %95, %cst_49 {dimension_numbers = #tpu.dot_dimension_numbers<[1], [0], [0], [1], [0, 0, 1, 1], [], []>} : vector<16x16xbf16>, vector<16x512xbf16>, vector<16x512xf32> -> vector<16x512xf32>
    %97 = arith.addf %89, %96 : vector<16x512xf32>
    %c0_50 = arith.constant 0 : index
    %c144 = arith.constant 144 : index
    %98 = vector.load %arg14[%c0_50, %c144] : memref<16x768xf32, #tpu.memory_space<vmem>>, vector<16x512xf32>
    %99 = vector.broadcast %36 : vector<1x512xf32> to vector<16x512xf32>
    %100 = arith.mulf %98, %99 : vector<16x512xf32>
    %c7 = arith.constant 7 : index
    %c0_51 = arith.constant 0 : index
    %c0_52 = arith.constant 0 : index
    %101 = vector.load %arg1[%c7, %c0_51, %c0_52] : memref<9x16x16xbf16, #tpu.memory_space<vmem>>, vector<1x16x16xbf16>
    %102 = vector.shape_cast %101 : vector<1x16x16xbf16> to vector<16x16xbf16>
    %103 = arith.truncf %100 : vector<16x512xf32> to vector<16x512xbf16>
    %cst_53 = arith.constant dense<0.000000e+00> : vector<16x512xf32>
    %104 = tpu.matmul %102, %103, %cst_53 {dimension_numbers = #tpu.dot_dimension_numbers<[1], [0], [0], [1], [0, 0, 1, 1], [], []>} : vector<16x16xbf16>, vector<16x512xbf16>, vector<16x512xf32> -> vector<16x512xf32>
    %105 = arith.addf %97, %104 : vector<16x512xf32>
    %c0_54 = arith.constant 0 : index
    %c145 = arith.constant 145 : index
    %106 = vector.load %arg14[%c0_54, %c145] : memref<16x768xf32, #tpu.memory_space<vmem>>, vector<16x512xf32>
    %107 = vector.broadcast %40 : vector<1x512xf32> to vector<16x512xf32>
    %108 = arith.mulf %106, %107 : vector<16x512xf32>
    %c8 = arith.constant 8 : index
    %c0_55 = arith.constant 0 : index
    %c0_56 = arith.constant 0 : index
    %109 = vector.load %arg1[%c8, %c0_55, %c0_56] : memref<9x16x16xbf16, #tpu.memory_space<vmem>>, vector<1x16x16xbf16>
    %110 = vector.shape_cast %109 : vector<1x16x16xbf16> to vector<16x16xbf16>
    %111 = arith.truncf %108 : vector<16x512xf32> to vector<16x512xbf16>
    %cst_57 = arith.constant dense<0.000000e+00> : vector<16x512xf32>
    %112 = tpu.matmul %110, %111, %cst_57 {dimension_numbers = #tpu.dot_dimension_numbers<[1], [0], [0], [1], [0, 0, 1, 1], [], []>} : vector<16x16xbf16>, vector<16x512xbf16>, vector<16x512xf32> -> vector<16x512xf32>
    %113 = arith.addf %105, %112 : vector<16x512xf32>
    %cst_58 = arith.constant dense<0.000000e+00> : vector<16xf32>
    %114 = vector.multi_reduction <add>, %113, %cst_58 [1] : vector<16x512xf32> to vector<16xf32>
    %115 = vector.shape_cast %114 : vector<16xf32> to vector<16x1xf32>
    %cst_59 = arith.constant 0.001953125 : f32
    %116 = vector.broadcast %cst_59 : f32 to vector<16x1xf32>
    %117 = arith.mulf %115, %116 : vector<16x1xf32>
    %118 = arith.mulf %113, %113 : vector<16x512xf32>
    %cst_60 = arith.constant dense<0.000000e+00> : vector<16xf32>
    %119 = vector.multi_reduction <add>, %118, %cst_60 [1] : vector<16x512xf32> to vector<16xf32>
    %120 = vector.shape_cast %119 : vector<16xf32> to vector<16x1xf32>
    %cst_61 = arith.constant 0.001953125 : f32
    %121 = vector.broadcast %cst_61 : f32 to vector<16x1xf32>
    %122 = arith.mulf %120, %121 : vector<16x1xf32>
    %123 = arith.mulf %117, %117 : vector<16x1xf32>
    %124 = arith.subf %122, %123 : vector<16x1xf32>
    %c0_62 = arith.constant 0 : index
    %c0_63 = arith.constant 0 : index
    %125 = vector.load %arg2[%c0_62, %c0_63] : memref<16x1xf32, #tpu.memory_space<vmem>>, vector<16x1xf32>
    %cst_64 = arith.constant 9.99999974E-6 : f32
    %126 = vector.broadcast %cst_64 : f32 to vector<16x1xf32>
    %127 = arith.addf %124, %126 : vector<16x1xf32>
    %128 = math.rsqrt %127 : vector<16x1xf32>
    %129 = arith.mulf %125, %128 : vector<16x1xf32>
    %c0_65 = arith.constant 0 : index
    %c0_66 = arith.constant 0 : index
    %130 = vector.load %arg3[%c0_65, %c0_66] : memref<16x1xf32, #tpu.memory_space<vmem>>, vector<16x1xf32>
    %131 = arith.mulf %117, %129 : vector<16x1xf32>
    %132 = arith.subf %130, %131 : vector<16x1xf32>
    %133 = vector.broadcast %129 : vector<16x1xf32> to vector<16x512xf32>
    %134 = arith.mulf %113, %133 : vector<16x512xf32>
    %135 = vector.broadcast %132 : vector<16x1xf32> to vector<16x512xf32>
    %136 = arith.addf %134, %135 : vector<16x512xf32>
    %cst_67 = arith.constant 0.000000e+00 : f32
    %137 = vector.broadcast %cst_67 : f32 to vector<16x512xf32>
    %138 = arith.cmpf ogt, %136, %137 : vector<16x512xf32>
    %cst_68 = arith.constant 2.500000e-01 : f32
    %139 = vector.broadcast %cst_68 : f32 to vector<16x512xf32>
    %140 = arith.mulf %139, %136 : vector<16x512xf32>
    %141 = arith.select %138, %136, %140 : vector<16x512xi1>, vector<16x512xf32>
    %c0_69 = arith.constant 0 : index
    %c0_70 = arith.constant 0 : index
    %142 = vector.load %arg10[%c0_69, %c0_70] : memref<16x512xf32, #tpu.memory_space<vmem>>, vector<16x512xf32>
    tpu.vector_store %arg10[%c0_69, %c0_70], %141 {strides = array<i32>} : memref<16x512xf32, #tpu.memory_space<vmem>>, vector<16x512xf32>,
    %c0_71 = arith.constant 0 : index
    %c128_72 = arith.constant 128 : index
    %143 = vector.load %arg14[%c0_71, %c128_72] : memref<16x768xf32, #tpu.memory_space<vmem>>, vector<16x512xf32>
    tpu.vector_store %arg14[%c0_71, %c128_72], %141 {strides = array<i32>} : memref<16x768xf32, #tpu.memory_space<vmem>>, vector<16x512xf32>,
    %c0_73 = arith.constant 0 : index
    %c111_74 = arith.constant 111 : index
    %144 = vector.load %arg14[%c0_73, %c111_74] : memref<16x768xf32, #tpu.memory_space<vmem>>, vector<16x512xf32>
    %145 = vector.broadcast %16 : vector<1x512xf32> to vector<16x512xf32>
    %146 = arith.mulf %144, %145 : vector<16x512xf32>
    %c0_75 = arith.constant 0 : index
    %c0_76 = arith.constant 0 : index
    %c0_77 = arith.constant 0 : index
    %147 = vector.load %arg4[%c0_75, %c0_76, %c0_77] : memref<9x16x16xbf16, #tpu.memory_space<vmem>>, vector<1x16x16xbf16>
    %148 = vector.shape_cast %147 : vector<1x16x16xbf16> to vector<16x16xbf16>
    %149 = arith.truncf %146 : vector<16x512xf32> to vector<16x512xbf16>
    %cst_78 = arith.constant dense<0.000000e+00> : vector<16x512xf32>
    %150 = tpu.matmul %148, %149, %cst_78 {dimension_numbers = #tpu.dot_dimension_numbers<[1], [0], [0], [1], [0, 0, 1, 1], [], []>} : vector<16x16xbf16>, vector<16x512xbf16>, vector<16x512xf32> -> vector<16x512xf32>
    %c0_79 = arith.constant 0 : index
    %c112_80 = arith.constant 112 : index
    %151 = vector.load %arg14[%c0_79, %c112_80] : memref<16x768xf32, #tpu.memory_space<vmem>>, vector<16x512xf32>
    %152 = vector.broadcast %19 : vector<1x512xf32> to vector<16x512xf32>
    %153 = arith.mulf %151, %152 : vector<16x512xf32>
    %c1_81 = arith.constant 1 : index
    %c0_82 = arith.constant 0 : index
    %c0_83 = arith.constant 0 : index
    %154 = vector.load %arg4[%c1_81, %c0_82, %c0_83] : memref<9x16x16xbf16, #tpu.memory_space<vmem>>, vector<1x16x16xbf16>
    %155 = vector.shape_cast %154 : vector<1x16x16xbf16> to vector<16x16xbf16>
    %156 = arith.truncf %153 : vector<16x512xf32> to vector<16x512xbf16>
    %cst_84 = arith.constant dense<0.000000e+00> : vector<16x512xf32>
    %157 = tpu.matmul %155, %156, %cst_84 {dimension_numbers = #tpu.dot_dimension_numbers<[1], [0], [0], [1], [0, 0, 1, 1], [], []>} : vector<16x16xbf16>, vector<16x512xbf16>, vector<16x512xf32> -> vector<16x512xf32>
    %158 = arith.addf %150, %157 : vector<16x512xf32>
    %c0_85 = arith.constant 0 : index
    %c113_86 = arith.constant 113 : index
    %159 = vector.load %arg14[%c0_85, %c113_86] : memref<16x768xf32, #tpu.memory_space<vmem>>, vector<16x512xf32>
    %160 = vector.broadcast %23 : vector<1x512xf32> to vector<16x512xf32>
    %161 = arith.mulf %159, %160 : vector<16x512xf32>
    %c2_87 = arith.constant 2 : index
    %c0_88 = arith.constant 0 : index
    %c0_89 = arith.constant 0 : index
    %162 = vector.load %arg4[%c2_87, %c0_88, %c0_89] : memref<9x16x16xbf16, #tpu.memory_space<vmem>>, vector<1x16x16xbf16>
    %163 = vector.shape_cast %162 : vector<1x16x16xbf16> to vector<16x16xbf16>
    %164 = arith.truncf %161 : vector<16x512xf32> to vector<16x512xbf16>
    %cst_90 = arith.constant dense<0.000000e+00> : vector<16x512xf32>
    %165 = tpu.matmul %163, %164, %cst_90 {dimension_numbers = #tpu.dot_dimension_numbers<[1], [0], [0], [1], [0, 0, 1, 1], [], []>} : vector<16x16xbf16>, vector<16x512xbf16>, vector<16x512xf32> -> vector<16x512xf32>
    %166 = arith.addf %158, %165 : vector<16x512xf32>
    %c0_91 = arith.constant 0 : index
    %c127_92 = arith.constant 127 : index
    %167 = vector.load %arg14[%c0_91, %c127_92] : memref<16x768xf32, #tpu.memory_space<vmem>>, vector<16x512xf32>
    %168 = vector.broadcast %26 : vector<1x512xf32> to vector<16x512xf32>
    %169 = arith.mulf %167, %168 : vector<16x512xf32>
    %c3_93 = arith.constant 3 : index
    %c0_94 = arith.constant 0 : index
    %c0_95 = arith.constant 0 : index
    %170 = vector.load %arg4[%c3_93, %c0_94, %c0_95] : memref<9x16x16xbf16, #tpu.memory_space<vmem>>, vector<1x16x16xbf16>
    %171 = vector.shape_cast %170 : vector<1x16x16xbf16> to vector<16x16xbf16>
    %172 = arith.truncf %169 : vector<16x512xf32> to vector<16x512xbf16>
    %cst_96 = arith.constant dense<0.000000e+00> : vector<16x512xf32>
    %173 = tpu.matmul %171, %172, %cst_96 {dimension_numbers = #tpu.dot_dimension_numbers<[1], [0], [0], [1], [0, 0, 1, 1], [], []>} : vector<16x16xbf16>, vector<16x512xbf16>, vector<16x512xf32> -> vector<16x512xf32>
    %174 = arith.addf %166, %173 : vector<16x512xf32>
    %c0_97 = arith.constant 0 : index
    %c128_98 = arith.constant 128 : index
    %175 = vector.load %arg14[%c0_97, %c128_98] : memref<16x768xf32, #tpu.memory_space<vmem>>, vector<16x512xf32>
    %c4_99 = arith.constant 4 : index
    %c0_100 = arith.constant 0 : index
    %c0_101 = arith.constant 0 : index
    %176 = vector.load %arg4[%c4_99, %c0_100, %c0_101] : memref<9x16x16xbf16, #tpu.memory_space<vmem>>, vector<1x16x16xbf16>
    %177 = vector.shape_cast %176 : vector<1x16x16xbf16> to vector<16x16xbf16>
    %178 = arith.truncf %175 : vector<16x512xf32> to vector<16x512xbf16>
    %cst_102 = arith.constant dense<0.000000e+00> : vector<16x512xf32>
    %179 = tpu.matmul %177, %178, %cst_102 {dimension_numbers = #tpu.dot_dimension_numbers<[1], [0], [0], [1], [0, 0, 1, 1], [], []>} : vector<16x16xbf16>, vector<16x512xbf16>, vector<16x512xf32> -> vector<16x512xf32>
    %180 = arith.addf %174, %179 : vector<16x512xf32>
    %c0_103 = arith.constant 0 : index
    %c129_104 = arith.constant 129 : index
    %181 = vector.load %arg14[%c0_103, %c129_104] : memref<16x768xf32, #tpu.memory_space<vmem>>, vector<16x512xf32>
    %182 = vector.broadcast %29 : vector<1x512xf32> to vector<16x512xf32>
    %183 = arith.mulf %181, %182 : vector<16x512xf32>
    %c5_105 = arith.constant 5 : index
    %c0_106 = arith.constant 0 : index
    %c0_107 = arith.constant 0 : index
    %184 = vector.load %arg4[%c5_105, %c0_106, %c0_107] : memref<9x16x16xbf16, #tpu.memory_space<vmem>>, vector<1x16x16xbf16>
    %185 = vector.shape_cast %184 : vector<1x16x16xbf16> to vector<16x16xbf16>
    %186 = arith.truncf %183 : vector<16x512xf32> to vector<16x512xbf16>
    %cst_108 = arith.constant dense<0.000000e+00> : vector<16x512xf32>
    %187 = tpu.matmul %185, %186, %cst_108 {dimension_numbers = #tpu.dot_dimension_numbers<[1], [0], [0], [1], [0, 0, 1, 1], [], []>} : vector<16x16xbf16>, vector<16x512xbf16>, vector<16x512xf32> -> vector<16x512xf32>
    %188 = arith.addf %180, %187 : vector<16x512xf32>
    %c0_109 = arith.constant 0 : index
    %c143_110 = arith.constant 143 : index
    %189 = vector.load %arg14[%c0_109, %c143_110] : memref<16x768xf32, #tpu.memory_space<vmem>>, vector<16x512xf32>
    %190 = vector.broadcast %33 : vector<1x512xf32> to vector<16x512xf32>
    %191 = arith.mulf %189, %190 : vector<16x512xf32>
    %c6_111 = arith.constant 6 : index
    %c0_112 = arith.constant 0 : index
    %c0_113 = arith.constant 0 : index
    %192 = vector.load %arg4[%c6_111, %c0_112, %c0_113] : memref<9x16x16xbf16, #tpu.memory_space<vmem>>, vector<1x16x16xbf16>
    %193 = vector.shape_cast %192 : vector<1x16x16xbf16> to vector<16x16xbf16>
    %194 = arith.truncf %191 : vector<16x512xf32> to vector<16x512xbf16>
    %cst_114 = arith.constant dense<0.000000e+00> : vector<16x512xf32>
    %195 = tpu.matmul %193, %194, %cst_114 {dimension_numbers = #tpu.dot_dimension_numbers<[1], [0], [0], [1], [0, 0, 1, 1], [], []>} : vector<16x16xbf16>, vector<16x512xbf16>, vector<16x512xf32> -> vector<16x512xf32>
    %196 = arith.addf %188, %195 : vector<16x512xf32>
    %c0_115 = arith.constant 0 : index
    %c144_116 = arith.constant 144 : index
    %197 = vector.load %arg14[%c0_115, %c144_116] : memref<16x768xf32, #tpu.memory_space<vmem>>, vector<16x512xf32>
    %198 = vector.broadcast %36 : vector<1x512xf32> to vector<16x512xf32>
    %199 = arith.mulf %197, %198 : vector<16x512xf32>
    %c7_117 = arith.constant 7 : index
    %c0_118 = arith.constant 0 : index
    %c0_119 = arith.constant 0 : index
    %200 = vector.load %arg4[%c7_117, %c0_118, %c0_119] : memref<9x16x16xbf16, #tpu.memory_space<vmem>>, vector<1x16x16xbf16>
    %201 = vector.shape_cast %200 : vector<1x16x16xbf16> to vector<16x16xbf16>
    %202 = arith.truncf %199 : vector<16x512xf32> to vector<16x512xbf16>
    %cst_120 = arith.constant dense<0.000000e+00> : vector<16x512xf32>
    %203 = tpu.matmul %201, %202, %cst_120 {dimension_numbers = #tpu.dot_dimension_numbers<[1], [0], [0], [1], [0, 0, 1, 1], [], []>} : vector<16x16xbf16>, vector<16x512xbf16>, vector<16x512xf32> -> vector<16x512xf32>
    %204 = arith.addf %196, %203 : vector<16x512xf32>
    %c0_121 = arith.constant 0 : index
    %c145_122 = arith.constant 145 : index
    %205 = vector.load %arg14[%c0_121, %c145_122] : memref<16x768xf32, #tpu.memory_space<vmem>>, vector<16x512xf32>
    %206 = vector.broadcast %40 : vector<1x512xf32> to vector<16x512xf32>
    %207 = arith.mulf %205, %206 : vector<16x512xf32>
    %c8_123 = arith.constant 8 : index
    %c0_124 = arith.constant 0 : index
    %c0_125 = arith.constant 0 : index
    %208 = vector.load %arg4[%c8_123, %c0_124, %c0_125] : memref<9x16x16xbf16, #tpu.memory_space<vmem>>, vector<1x16x16xbf16>
    %209 = vector.shape_cast %208 : vector<1x16x16xbf16> to vector<16x16xbf16>
    %210 = arith.truncf %207 : vector<16x512xf32> to vector<16x512xbf16>
    %cst_126 = arith.constant dense<0.000000e+00> : vector<16x512xf32>
    %211 = tpu.matmul %209, %210, %cst_126 {dimension_numbers = #tpu.dot_dimension_numbers<[1], [0], [0], [1], [0, 0, 1, 1], [], []>} : vector<16x16xbf16>, vector<16x512xbf16>, vector<16x512xf32> -> vector<16x512xf32>
    %212 = arith.addf %204, %211 : vector<16x512xf32>
    %cst_127 = arith.constant dense<0.000000e+00> : vector<16xf32>
    %213 = vector.multi_reduction <add>, %212, %cst_127 [1] : vector<16x512xf32> to vector<16xf32>
    %214 = vector.shape_cast %213 : vector<16xf32> to vector<16x1xf32>
    %cst_128 = arith.constant 0.001953125 : f32
    %215 = vector.broadcast %cst_128 : f32 to vector<16x1xf32>
    %216 = arith.mulf %214, %215 : vector<16x1xf32>
    %217 = arith.mulf %212, %212 : vector<16x512xf32>
    %cst_129 = arith.constant dense<0.000000e+00> : vector<16xf32>
    %218 = vector.multi_reduction <add>, %217, %cst_129 [1] : vector<16x512xf32> to vector<16xf32>
    %219 = vector.shape_cast %218 : vector<16xf32> to vector<16x1xf32>
    %cst_130 = arith.constant 0.001953125 : f32
    %220 = vector.broadcast %cst_130 : f32 to vector<16x1xf32>
    %221 = arith.mulf %219, %220 : vector<16x1xf32>
    %222 = arith.mulf %216, %216 : vector<16x1xf32>
    %223 = arith.subf %221, %222 : vector<16x1xf32>
    %c0_131 = arith.constant 0 : index
    %c0_132 = arith.constant 0 : index
    %224 = vector.load %arg5[%c0_131, %c0_132] : memref<16x1xf32, #tpu.memory_space<vmem>>, vector<16x1xf32>
    %cst_133 = arith.constant 9.99999974E-6 : f32
    %225 = vector.broadcast %cst_133 : f32 to vector<16x1xf32>
    %226 = arith.addf %223, %225 : vector<16x1xf32>
    %227 = math.rsqrt %226 : vector<16x1xf32>
    %228 = arith.mulf %224, %227 : vector<16x1xf32>
    %c0_134 = arith.constant 0 : index
    %c0_135 = arith.constant 0 : index
    %229 = vector.load %arg6[%c0_134, %c0_135] : memref<16x1xf32, #tpu.memory_space<vmem>>, vector<16x1xf32>
    %230 = arith.mulf %216, %228 : vector<16x1xf32>
    %231 = arith.subf %229, %230 : vector<16x1xf32>
    %232 = vector.broadcast %228 : vector<16x1xf32> to vector<16x512xf32>
    %233 = arith.mulf %212, %232 : vector<16x512xf32>
    %234 = vector.broadcast %231 : vector<16x1xf32> to vector<16x512xf32>
    %235 = arith.addf %233, %234 : vector<16x512xf32>
    %cst_136 = arith.constant 0.000000e+00 : f32
    %236 = vector.broadcast %cst_136 : f32 to vector<16x512xf32>
    %237 = arith.cmpf ogt, %235, %236 : vector<16x512xf32>
    %cst_137 = arith.constant 2.500000e-01 : f32
    %238 = vector.broadcast %cst_137 : f32 to vector<16x512xf32>
    %239 = arith.mulf %238, %235 : vector<16x512xf32>
    %240 = arith.select %237, %235, %239 : vector<16x512xi1>, vector<16x512xf32>
    %c0_138 = arith.constant 0 : index
    %c0_139 = arith.constant 0 : index
    %241 = vector.load %arg11[%c0_138, %c0_139] : memref<16x512xf32, #tpu.memory_space<vmem>>, vector<16x512xf32>
    tpu.vector_store %arg11[%c0_138, %c0_139], %240 {strides = array<i32>} : memref<16x512xf32, #tpu.memory_space<vmem>>, vector<16x512xf32>,
    %c0_140 = arith.constant 0 : index
    %c128_141 = arith.constant 128 : index
    %242 = vector.load %arg14[%c0_140, %c128_141] : memref<16x768xf32, #tpu.memory_space<vmem>>, vector<16x512xf32>
    tpu.vector_store %arg14[%c0_140, %c128_141], %240 {strides = array<i32>} : memref<16x768xf32, #tpu.memory_space<vmem>>, vector<16x512xf32>,
    %c0_142 = arith.constant 0 : index
    %c111_143 = arith.constant 111 : index
    %243 = vector.load %arg14[%c0_142, %c111_143] : memref<16x768xf32, #tpu.memory_space<vmem>>, vector<16x512xf32>
    %244 = vector.broadcast %16 : vector<1x512xf32> to vector<16x512xf32>
    %245 = arith.mulf %243, %244 : vector<16x512xf32>
    %c0_144 = arith.constant 0 : index
    %c0_145 = arith.constant 0 : index
    %c0_146 = arith.constant 0 : index
    %246 = vector.load %arg7[%c0_144, %c0_145, %c0_146] : memref<9x32x16xbf16, #tpu.memory_space<vmem>>, vector<1x32x16xbf16>
    %247 = vector.shape_cast %246 : vector<1x32x16xbf16> to vector<32x16xbf16>
    %248 = arith.truncf %245 : vector<16x512xf32> to vector<16x512xbf16>
    %cst_147 = arith.constant dense<0.000000e+00> : vector<32x512xf32>
    %249 = tpu.matmul %247, %248, %cst_147 {dimension_numbers = #tpu.dot_dimension_numbers<[1], [0], [0], [1], [0, 0, 1, 1], [], []>} : vector<32x16xbf16>, vector<16x512xbf16>, vector<32x512xf32> -> vector<32x512xf32>
    %c0_148 = arith.constant 0 : index
    %c112_149 = arith.constant 112 : index
    %250 = vector.load %arg14[%c0_148, %c112_149] : memref<16x768xf32, #tpu.memory_space<vmem>>, vector<16x512xf32>
    %251 = vector.broadcast %19 : vector<1x512xf32> to vector<16x512xf32>
    %252 = arith.mulf %250, %251 : vector<16x512xf32>
    %c1_150 = arith.constant 1 : index
    %c0_151 = arith.constant 0 : index
    %c0_152 = arith.constant 0 : index
    %253 = vector.load %arg7[%c1_150, %c0_151, %c0_152] : memref<9x32x16xbf16, #tpu.memory_space<vmem>>, vector<1x32x16xbf16>
    %254 = vector.shape_cast %253 : vector<1x32x16xbf16> to vector<32x16xbf16>
    %255 = arith.truncf %252 : vector<16x512xf32> to vector<16x512xbf16>
    %cst_153 = arith.constant dense<0.000000e+00> : vector<32x512xf32>
    %256 = tpu.matmul %254, %255, %cst_153 {dimension_numbers = #tpu.dot_dimension_numbers<[1], [0], [0], [1], [0, 0, 1, 1], [], []>} : vector<32x16xbf16>, vector<16x512xbf16>, vector<32x512xf32> -> vector<32x512xf32>
    %257 = arith.addf %249, %256 : vector<32x512xf32>
    %c0_154 = arith.constant 0 : index
    %c113_155 = arith.constant 113 : index
    %258 = vector.load %arg14[%c0_154, %c113_155] : memref<16x768xf32, #tpu.memory_space<vmem>>, vector<16x512xf32>
    %259 = vector.broadcast %23 : vector<1x512xf32> to vector<16x512xf32>
    %260 = arith.mulf %258, %259 : vector<16x512xf32>
    %c2_156 = arith.constant 2 : index
    %c0_157 = arith.constant 0 : index
    %c0_158 = arith.constant 0 : index
    %261 = vector.load %arg7[%c2_156, %c0_157, %c0_158] : memref<9x32x16xbf16, #tpu.memory_space<vmem>>, vector<1x32x16xbf16>
    %262 = vector.shape_cast %261 : vector<1x32x16xbf16> to vector<32x16xbf16>
    %263 = arith.truncf %260 : vector<16x512xf32> to vector<16x512xbf16>
    %cst_159 = arith.constant dense<0.000000e+00> : vector<32x512xf32>
    %264 = tpu.matmul %262, %263, %cst_159 {dimension_numbers = #tpu.dot_dimension_numbers<[1], [0], [0], [1], [0, 0, 1, 1], [], []>} : vector<32x16xbf16>, vector<16x512xbf16>, vector<32x512xf32> -> vector<32x512xf32>
    %265 = arith.addf %257, %264 : vector<32x512xf32>
    %c0_160 = arith.constant 0 : index
    %c127_161 = arith.constant 127 : index
    %266 = vector.load %arg14[%c0_160, %c127_161] : memref<16x768xf32, #tpu.memory_space<vmem>>, vector<16x512xf32>
    %267 = vector.broadcast %26 : vector<1x512xf32> to vector<16x512xf32>
    %268 = arith.mulf %266, %267 : vector<16x512xf32>
    %c3_162 = arith.constant 3 : index
    %c0_163 = arith.constant 0 : index
    %c0_164 = arith.constant 0 : index
    %269 = vector.load %arg7[%c3_162, %c0_163, %c0_164] : memref<9x32x16xbf16, #tpu.memory_space<vmem>>, vector<1x32x16xbf16>
    %270 = vector.shape_cast %269 : vector<1x32x16xbf16> to vector<32x16xbf16>
    %271 = arith.truncf %268 : vector<16x512xf32> to vector<16x512xbf16>
    %cst_165 = arith.constant dense<0.000000e+00> : vector<32x512xf32>
    %272 = tpu.matmul %270, %271, %cst_165 {dimension_numbers = #tpu.dot_dimension_numbers<[1], [0], [0], [1], [0, 0, 1, 1], [], []>} : vector<32x16xbf16>, vector<16x512xbf16>, vector<32x512xf32> -> vector<32x512xf32>
    %273 = arith.addf %265, %272 : vector<32x512xf32>
    %c0_166 = arith.constant 0 : index
    %c128_167 = arith.constant 128 : index
    %274 = vector.load %arg14[%c0_166, %c128_167] : memref<16x768xf32, #tpu.memory_space<vmem>>, vector<16x512xf32>
    %c4_168 = arith.constant 4 : index
    %c0_169 = arith.constant 0 : index
    %c0_170 = arith.constant 0 : index
    %275 = vector.load %arg7[%c4_168, %c0_169, %c0_170] : memref<9x32x16xbf16, #tpu.memory_space<vmem>>, vector<1x32x16xbf16>
    %276 = vector.shape_cast %275 : vector<1x32x16xbf16> to vector<32x16xbf16>
    %277 = arith.truncf %274 : vector<16x512xf32> to vector<16x512xbf16>
    %cst_171 = arith.constant dense<0.000000e+00> : vector<32x512xf32>
    %278 = tpu.matmul %276, %277, %cst_171 {dimension_numbers = #tpu.dot_dimension_numbers<[1], [0], [0], [1], [0, 0, 1, 1], [], []>} : vector<32x16xbf16>, vector<16x512xbf16>, vector<32x512xf32> -> vector<32x512xf32>
    %279 = arith.addf %273, %278 : vector<32x512xf32>
    %c0_172 = arith.constant 0 : index
    %c129_173 = arith.constant 129 : index
    %280 = vector.load %arg14[%c0_172, %c129_173] : memref<16x768xf32, #tpu.memory_space<vmem>>, vector<16x512xf32>
    %281 = vector.broadcast %29 : vector<1x512xf32> to vector<16x512xf32>
    %282 = arith.mulf %280, %281 : vector<16x512xf32>
    %c5_174 = arith.constant 5 : index
    %c0_175 = arith.constant 0 : index
    %c0_176 = arith.constant 0 : index
    %283 = vector.load %arg7[%c5_174, %c0_175, %c0_176] : memref<9x32x16xbf16, #tpu.memory_space<vmem>>, vector<1x32x16xbf16>
    %284 = vector.shape_cast %283 : vector<1x32x16xbf16> to vector<32x16xbf16>
    %285 = arith.truncf %282 : vector<16x512xf32> to vector<16x512xbf16>
    %cst_177 = arith.constant dense<0.000000e+00> : vector<32x512xf32>
    %286 = tpu.matmul %284, %285, %cst_177 {dimension_numbers = #tpu.dot_dimension_numbers<[1], [0], [0], [1], [0, 0, 1, 1], [], []>} : vector<32x16xbf16>, vector<16x512xbf16>, vector<32x512xf32> -> vector<32x512xf32>
    %287 = arith.addf %279, %286 : vector<32x512xf32>
    %c0_178 = arith.constant 0 : index
    %c143_179 = arith.constant 143 : index
    %288 = vector.load %arg14[%c0_178, %c143_179] : memref<16x768xf32, #tpu.memory_space<vmem>>, vector<16x512xf32>
    %289 = vector.broadcast %33 : vector<1x512xf32> to vector<16x512xf32>
    %290 = arith.mulf %288, %289 : vector<16x512xf32>
    %c6_180 = arith.constant 6 : index
    %c0_181 = arith.constant 0 : index
    %c0_182 = arith.constant 0 : index
    %291 = vector.load %arg7[%c6_180, %c0_181, %c0_182] : memref<9x32x16xbf16, #tpu.memory_space<vmem>>, vector<1x32x16xbf16>
    %292 = vector.shape_cast %291 : vector<1x32x16xbf16> to vector<32x16xbf16>
    %293 = arith.truncf %290 : vector<16x512xf32> to vector<16x512xbf16>
    %cst_183 = arith.constant dense<0.000000e+00> : vector<32x512xf32>
    %294 = tpu.matmul %292, %293, %cst_183 {dimension_numbers = #tpu.dot_dimension_numbers<[1], [0], [0], [1], [0, 0, 1, 1], [], []>} : vector<32x16xbf16>, vector<16x512xbf16>, vector<32x512xf32> -> vector<32x512xf32>
    %295 = arith.addf %287, %294 : vector<32x512xf32>
    %c0_184 = arith.constant 0 : index
    %c144_185 = arith.constant 144 : index
    %296 = vector.load %arg14[%c0_184, %c144_185] : memref<16x768xf32, #tpu.memory_space<vmem>>, vector<16x512xf32>
    %297 = vector.broadcast %36 : vector<1x512xf32> to vector<16x512xf32>
    %298 = arith.mulf %296, %297 : vector<16x512xf32>
    %c7_186 = arith.constant 7 : index
    %c0_187 = arith.constant 0 : index
    %c0_188 = arith.constant 0 : index
    %299 = vector.load %arg7[%c7_186, %c0_187, %c0_188] : memref<9x32x16xbf16, #tpu.memory_space<vmem>>, vector<1x32x16xbf16>
    %300 = vector.shape_cast %299 : vector<1x32x16xbf16> to vector<32x16xbf16>
    %301 = arith.truncf %298 : vector<16x512xf32> to vector<16x512xbf16>
    %cst_189 = arith.constant dense<0.000000e+00> : vector<32x512xf32>
    %302 = tpu.matmul %300, %301, %cst_189 {dimension_numbers = #tpu.dot_dimension_numbers<[1], [0], [0], [1], [0, 0, 1, 1], [], []>} : vector<32x16xbf16>, vector<16x512xbf16>, vector<32x512xf32> -> vector<32x512xf32>
    %303 = arith.addf %295, %302 : vector<32x512xf32>
    %c0_190 = arith.constant 0 : index
    %c145_191 = arith.constant 145 : index
    %304 = vector.load %arg14[%c0_190, %c145_191] : memref<16x768xf32, #tpu.memory_space<vmem>>, vector<16x512xf32>
    %305 = vector.broadcast %40 : vector<1x512xf32> to vector<16x512xf32>
    %306 = arith.mulf %304, %305 : vector<16x512xf32>
    %c8_192 = arith.constant 8 : index
    %c0_193 = arith.constant 0 : index
    %c0_194 = arith.constant 0 : index
    %307 = vector.load %arg7[%c8_192, %c0_193, %c0_194] : memref<9x32x16xbf16, #tpu.memory_space<vmem>>, vector<1x32x16xbf16>
    %308 = vector.shape_cast %307 : vector<1x32x16xbf16> to vector<32x16xbf16>
    %309 = arith.truncf %306 : vector<16x512xf32> to vector<16x512xbf16>
    %cst_195 = arith.constant dense<0.000000e+00> : vector<32x512xf32>
    %310 = tpu.matmul %308, %309, %cst_195 {dimension_numbers = #tpu.dot_dimension_numbers<[1], [0], [0], [1], [0, 0, 1, 1], [], []>} : vector<32x16xbf16>, vector<16x512xbf16>, vector<32x512xf32> -> vector<32x512xf32>
    %311 = arith.addf %303, %310 : vector<32x512xf32>
    %cst_196 = arith.constant dense<0.000000e+00> : vector<32xf32>
    %312 = vector.multi_reduction <add>, %311, %cst_196 [1] : vector<32x512xf32> to vector<32xf32>
    %313 = vector.shape_cast %312 : vector<32xf32> to vector<32x1xf32>
    %cst_197 = arith.constant 0.001953125 : f32
    %314 = vector.broadcast %cst_197 : f32 to vector<32x1xf32>
    %315 = arith.mulf %313, %314 : vector<32x1xf32>
    %316 = arith.mulf %311, %311 : vector<32x512xf32>
    %cst_198 = arith.constant dense<0.000000e+00> : vector<32xf32>
    %317 = vector.multi_reduction <add>, %316, %cst_198 [1] : vector<32x512xf32> to vector<32xf32>
    %318 = vector.shape_cast %317 : vector<32xf32> to vector<32x1xf32>
    %cst_199 = arith.constant 0.001953125 : f32
    %319 = vector.broadcast %cst_199 : f32 to vector<32x1xf32>
    %320 = arith.mulf %318, %319 : vector<32x1xf32>
    %321 = arith.mulf %315, %315 : vector<32x1xf32>
    %322 = arith.subf %320, %321 : vector<32x1xf32>
    %c0_200 = arith.constant 0 : index
    %c0_201 = arith.constant 0 : index
    %323 = vector.load %arg8[%c0_200, %c0_201] : memref<32x1xf32, #tpu.memory_space<vmem>>, vector<32x1xf32>
    %cst_202 = arith.constant 9.99999974E-6 : f32
    %324 = vector.broadcast %cst_202 : f32 to vector<32x1xf32>
    %325 = arith.addf %322, %324 : vector<32x1xf32>
    %326 = math.rsqrt %325 : vector<32x1xf32>
    %327 = arith.mulf %323, %326 : vector<32x1xf32>
    %c0_203 = arith.constant 0 : index
    %c0_204 = arith.constant 0 : index
    %328 = vector.load %arg9[%c0_203, %c0_204] : memref<32x1xf32, #tpu.memory_space<vmem>>, vector<32x1xf32>
    %329 = arith.mulf %315, %327 : vector<32x1xf32>
    %330 = arith.subf %328, %329 : vector<32x1xf32>
    %331 = vector.broadcast %327 : vector<32x1xf32> to vector<32x512xf32>
    %332 = arith.mulf %311, %331 : vector<32x512xf32>
    %333 = vector.broadcast %330 : vector<32x1xf32> to vector<32x512xf32>
    %334 = arith.addf %332, %333 : vector<32x512xf32>
    %335 = math.tanh %334 : vector<32x512xf32>
    %336 = vector.extract_strided_slice %335 {offsets = [0, 0], sizes = [16, 512], strides = [1, 1]} : vector<32x512xf32> to vector<16x512xf32>
    %c0_205 = arith.constant 0 : index
    %c0_206 = arith.constant 0 : index
    %337 = vector.load %arg12[%c0_205, %c0_206] : memref<16x512xf32, #tpu.memory_space<vmem>>, vector<16x512xf32>
    tpu.vector_store %arg12[%c0_205, %c0_206], %336 {strides = array<i32>} : memref<16x512xf32, #tpu.memory_space<vmem>>, vector<16x512xf32>,
    %338 = vector.extract_strided_slice %335 {offsets = [16, 0], sizes = [16, 512], strides = [1, 1]} : vector<32x512xf32> to vector<16x512xf32>
    %c0_207 = arith.constant 0 : index
    %c0_208 = arith.constant 0 : index
    %339 = vector.load %arg13[%c0_207, %c0_208] : memref<16x512xf32, #tpu.memory_space<vmem>>, vector<16x512xf32>
    tpu.vector_store %arg13[%c0_207, %c0_208], %338 {strides = array<i32>} : memref<16x512xf32, #tpu.memory_space<vmem>>, vector<16x512xf32>,
    return
  }
}

</mosaic_0001>

<llo_original>
// kernel: encoder_forward.1
$region0: #{encoder_forward.1}
  #allocation0 [shape = 'u32[]', space=smem, size = 0x4, offset = 0x4, fixed_abs, tag = 'smem constant byte address 0x4 - core index']
  #allocation1 [shape = 'u32[144,128]{1,0:T(1,128)}', space=vmem, size = 0x12000, scoped, tag = 'internal scratch']
  #allocation2 [shape = 'f32[16,768]{1,0:T(8,128)}', space=vmem, size = 0xc000, scoped, tag = 'scratch operand']
  %s0 = inlined_call_operand.vmem [shape: f32[16,512], index: 0, kind: input, shape index: {}]
  %s1 = inlined_call_operand.vmem [shape: bf16[9,16,16], index: 1, kind: input, shape index: {}]
  %s2 = inlined_call_operand.vmem [shape: f32[16,1], index: 2, kind: input, shape index: {}]
  %s3 = inlined_call_operand.vmem [shape: f32[16,1], index: 3, kind: input, shape index: {}]
  %s4 = inlined_call_operand.vmem [shape: bf16[9,16,16], index: 4, kind: input, shape index: {}]
  %s5 = inlined_call_operand.vmem [shape: f32[16,1], index: 5, kind: input, shape index: {}]
  %s6 = inlined_call_operand.vmem [shape: f32[16,1], index: 6, kind: input, shape index: {}]
  %s7 = inlined_call_operand.vmem [shape: bf16[9,32,16], index: 7, kind: input, shape index: {}]
  %s8 = inlined_call_operand.vmem [shape: f32[32,1], index: 8, kind: input, shape index: {}]
  %s9 = inlined_call_operand.vmem [shape: f32[32,1], index: 9, kind: input, shape index: {}]
  %s10 = inlined_call_operand.vmem [shape: f32[16,512], index: 10, kind: output, shape index: {0}]
  %s11 = inlined_call_operand.vmem [shape: f32[16,512], index: 11, kind: output, shape index: {1}]
  %s12 = inlined_call_operand.vmem [shape: f32[16,512], index: 12, kind: output, shape index: {2}]
  %s13 = inlined_call_operand.vmem [shape: f32[16,512], index: 13, kind: output, shape index: {3}]
  %14 = xla_tuple %s10, %s11, %s12, %s13
  %s15 = sld [smem:[#allocation0]]
  $region74: #{encoder_forward.1} parent=0
    _
  %s17 = ssub.s32 1, %s15
  %s18 = scalar_select 0, %s17, %s15
  // Predicated region
  $region2: #{encoder_forward.1} parent=0 // pred_check
    _
  $region3: #{encoder_forward.1} parent=0 // pred_check_branch
    %20 = sbr.rel (0) target = $region5
  $region4: #{encoder_forward.1} parent=0 // pred_region
    _
  $region5: #{encoder_forward.1} parent=0 // pred_fallthru
    _
  // Predicated region
  $region6: #{encoder_forward.1} parent=0 // pred_check
    _
  $region7: #{encoder_forward.1} parent=0 // pred_check_branch
    %22 = sbr.rel (0) target = $region9
  $region8: #{encoder_forward.1} parent=0 // pred_region
    _
  $region9: #{encoder_forward.1} parent=0 // pred_fallthru
    _
  // Predicated region
  $region10: #{encoder_forward.1} parent=0 // pred_check
    _
  $region11: #{encoder_forward.1} parent=0 // pred_check_branch
    %24 = sbr.rel (0) target = $region13
  $region12: #{encoder_forward.1} parent=0 // pred_region
    _
  $region13: #{encoder_forward.1} parent=0 // pred_fallthru
    _
  // Predicated region
  $region14: #{encoder_forward.1} parent=0 // pred_check
    _
  $region15: #{encoder_forward.1} parent=0 // pred_check_branch
    %26 = sbr.rel (0) target = $region17
  $region16: #{encoder_forward.1} parent=0 // pred_region
    _
  $region17: #{encoder_forward.1} parent=0 // pred_fallthru
    _
  // Predicated region
  $region18: #{encoder_forward.1} parent=0 // pred_check
    _
  $region19: #{encoder_forward.1} parent=0 // pred_check_branch
    %28 = sbr.rel (0) target = $region21
  $region20: #{encoder_forward.1} parent=0 // pred_region
    _
  $region21: #{encoder_forward.1} parent=0 // pred_fallthru
    _
  // Predicated region
  $region22: #{encoder_forward.1} parent=0 // pred_check
    _
  $region23: #{encoder_forward.1} parent=0 // pred_check_branch
    %30 = sbr.rel (0) target = $region25
  $region24: #{encoder_forward.1} parent=0 // pred_region
    _
  $region25: #{encoder_forward.1} parent=0 // pred_fallthru
    _
  // Predicated region
  $region26: #{encoder_forward.1} parent=0 // pred_check
    _
  $region27: #{encoder_forward.1} parent=0 // pred_check_branch
    %32 = sbr.rel (0) target = $region29
  $region28: #{encoder_forward.1} parent=0 // pred_region
    _
  $region29: #{encoder_forward.1} parent=0 // pred_fallthru
    _
  // Predicated region
  $region30: #{encoder_forward.1} parent=0 // pred_check
    _
  $region31: #{encoder_forward.1} parent=0 // pred_check_branch
    %34 = sbr.rel (0) target = $region33
  $region32: #{encoder_forward.1} parent=0 // pred_region
    _
  $region33: #{encoder_forward.1} parent=0 // pred_fallthru
    _
  // Predicated region
  $region34: #{encoder_forward.1} parent=0 // pred_check
    _
  $region35: #{encoder_forward.1} parent=0 // pred_check_branch
    %36 = sbr.rel (0) target = $region37
  $region36: #{encoder_forward.1} parent=0 // pred_region
    _
  $region37: #{encoder_forward.1} parent=0 // pred_fallthru
    _
  // Predicated region
  $region38: #{encoder_forward.1} parent=0 // pred_check
    _
  $region39: #{encoder_forward.1} parent=0 // pred_check_branch
    %38 = sbr.rel (0) target = $region41
  $region40: #{encoder_forward.1} parent=0 // pred_region
    _
  $region41: #{encoder_forward.1} parent=0 // pred_fallthru
    _
  %v40 = vlaneseq
  %v41 = vand.u32 %v40, 127
  %v42 = vadd.s32 %v41, 128
  %v43 = vadd.s32 %v41, 256
  %v44 = vadd.s32 %v41, 384
  %v45 = vand.u32 %v41, 15
  %v46 = vand.u32 %v42, 15
  %v47 = vand.u32 %v43, 15
  %v48 = vand.u32 %v44, 15
  %v49 = vand.u32 %v41, 255
  %v50 = vand.u32 %v42, 255
  %v51 = vand.u32 %v43, 255
  %v52 = vand.u32 %v44, 255
  %vm53 = vcmp.ge.s32.totalorder %v49, 16
  %vm54 = vcmp.ge.s32.totalorder %v50, 16
  %vm55 = vcmp.ge.s32.totalorder %v51, 16
  %vm56 = vcmp.ge.s32.totalorder %v52, 16
  %vm57 = vcmp.lt.s32.totalorder %v49, 240
  %vm58 = vcmp.lt.s32.totalorder %v50, 240
  %vm59 = vcmp.lt.s32.totalorder %v51, 240
  %vm60 = vcmp.lt.s32.totalorder %v52, 240
  %vm61 = vcmp.ge.s32.totalorder %v45, 1
  %vm62 = vcmp.ge.s32.totalorder %v46, 1
  %vm63 = vcmp.ge.s32.totalorder %v47, 1
  %vm64 = vcmp.ge.s32.totalorder %v48, 1
  %vm65 = vcmp.le.s32.totalorder %v45, 14
  %vm66 = vcmp.le.s32.totalorder %v46, 14
  %vm67 = vcmp.le.s32.totalorder %v47, 14
  %vm68 = vcmp.le.s32.totalorder %v48, 14
  %vm69 = vmand %vm53, %vm61
  %vm70 = vmand %vm54, %vm62
  %vm71 = vmand %vm55, %vm63
  %vm72 = vmand %vm56, %vm64
  %v73 = vsel %vm69, 1.0, 0.0
  %v74 = vsel %vm70, 1.0, 0.0
  %v75 = vsel %vm71, 1.0, 0.0
  %v76 = vsel %vm72, 1.0, 0.0
  %v77 = vsel %vm53, 1.0, 0.0
  %v78 = vsel %vm54, 1.0, 0.0
  %v79 = vsel %vm55, 1.0, 0.0
  %v80 = vsel %vm56, 1.0, 0.0
  %vm81 = vmand %vm53, %vm65
  %vm82 = vmand %vm54, %vm66
  %vm83 = vmand %vm55, %vm67
  %vm84 = vmand %vm56, %vm68
  %v85 = vsel %vm81, 1.0, 0.0
  %v86 = vsel %vm82, 1.0, 0.0
  %v87 = vsel %vm83, 1.0, 0.0
  %v88 = vsel %vm84, 1.0, 0.0
  %v89 = vsel %vm61, 1.0, 0.0
  %v90 = vsel %vm62, 1.0, 0.0
  %v91 = vsel %vm63, 1.0, 0.0
  %v92 = vsel %vm64, 1.0, 0.0
  %v93 = vsel %vm65, 1.0, 0.0
  %v94 = vsel %vm66, 1.0, 0.0
  %v95 = vsel %vm67, 1.0, 0.0
  %v96 = vsel %vm68, 1.0, 0.0
  %vm97 = vmand %vm57, %vm61
  %vm98 = vmand %vm58, %vm62
  %vm99 = vmand %vm59, %vm63
  %vm100 = vmand %vm60, %vm64
  %v101 = vsel %vm97, 1.0, 0.0
  %v102 = vsel %vm98, 1.0, 0.0
  %v103 = vsel %vm99, 1.0, 0.0
  %v104 = vsel %vm100, 1.0, 0.0
  %v105 = vsel %vm57, 1.0, 0.0
  %v106 = vsel %vm58, 1.0, 0.0
  %v107 = vsel %vm59, 1.0, 0.0
  %v108 = vsel %vm60, 1.0, 0.0
  %vm109 = vmand %vm57, %vm65
  %vm110 = vmand %vm58, %vm66
  %vm111 = vmand %vm59, %vm67
  %vm112 = vmand %vm60, %vm68
  %v113 = vsel %vm109, 1.0, 0.0
  %v114 = vsel %vm110, 1.0, 0.0
  %v115 = vsel %vm111, 1.0, 0.0
  %v116 = vsel %vm112, 1.0, 0.0
  %117 = vst [vmem:[#allocation2] sm:$0xff] 0.0
  %118 = vst [vmem:[#allocation2 + $0x8] sm:$0xff] 0.0
  %119 = vst [vmem:[#allocation2 + $0x10] sm:$0xff] 0.0
  %120 = vst [vmem:[#allocation2 + $0x18] sm:$0xff] 0.0
  %121 = vst [vmem:[#allocation2 + $0x20] sm:$0xff] 0.0
  %122 = vst [vmem:[#allocation2 + $0x28] sm:$0xff] 0.0
  %123 = vst [vmem:[#allocation2 + $0x30] sm:$0xff] 0.0
  %124 = vst [vmem:[#allocation2 + $0x38] sm:$0xff] 0.0
  %125 = vst [vmem:[#allocation2 + $0x40] sm:$0xff] 0.0
  %126 = vst [vmem:[#allocation2 + $0x48] sm:$0xff] 0.0
  %127 = vst [vmem:[#allocation2 + $0x50] sm:$0xff] 0.0
  %128 = vst [vmem:[#allocation2 + $0x58] sm:$0xff] 0.0
  %v129 = vld [vmem:[%s0] sm:$0xff]
  %v130 = vld [vmem:[%s0 + $0x8] sm:$0xff]
  %v131 = vld [vmem:[%s0 + $0x10] sm:$0xff]
  %v132 = vld [vmem:[%s0 + $0x18] sm:$0xff]
  %v133 = vld [vmem:[%s0 + $0x20] sm:$0xff]
  %v134 = vld [vmem:[%s0 + $0x28] sm:$0xff]
  %v135 = vld [vmem:[%s0 + $0x30] sm:$0xff]
  %v136 = vld [vmem:[%s0 + $0x38] sm:$0xff]
  %137 = vst [vmem:[#allocation2 + $0x8] sm:$0xff] %v129
  %138 = vst [vmem:[#allocation2 + $0x10] sm:$0xff] %v130
  %139 = vst [vmem:[#allocation2 + $0x18] sm:$0xff] %v131
  %140 = vst [vmem:[#allocation2 + $0x20] sm:$0xff] %v132
  %141 = vst [vmem:[#allocation2 + $0x38] sm:$0xff] %v133
  %142 = vst [vmem:[#allocation2 + $0x40] sm:$0xff] %v134
  %143 = vst [vmem:[#allocation2 + $0x48] sm:$0xff] %v135
  %144 = vst [vmem:[#allocation2 + $0x50] sm:$0xff] %v136
  %v145 = vld [vmem:[#allocation2] sm:$0xff]
  %v146 = vld [vmem:[#allocation2 + $0x8] sm:$0xff]
  %v147 = vld [vmem:[#allocation2 + $0x10] sm:$0xff]
  %v148 = vld [vmem:[#allocation2 + $0x18] sm:$0xff]
  %v149 = vld [vmem:[#allocation2 + $0x20] sm:$0xff]
  %v150 = vld [vmem:[#allocation2 + $0x30] sm:$0xff]
  %v151 = vld [vmem:[#allocation2 + $0x38] sm:$0xff]
  %v152 = vld [vmem:[#allocation2 + $0x40] sm:$0xff]
  %v153 = vld [vmem:[#allocation2 + $0x48] sm:$0xff]
  %v154 = vld [vmem:[#allocation2 + $0x50] sm:$0xff]
  %159 = vrot.lane.b32.xlu0 %v73, 111
  %v160 = vpop.permute.xlu0 %159
  %161 = vrot.lane.b32.xlu0 %v74, 111
  %v162 = vpop.permute.xlu0 %161
  %163 = vrot.lane.b32.xlu0 %v75, 111
  %v164 = vpop.permute.xlu0 %163
  %165 = vrot.lane.b32.xlu0 %v76, 111
  %v166 = vpop.permute.xlu0 %165
  %vm167 = vcmask 908288
  %v168 = vsel %vm167, %v160, %v162
  %v169 = vsel %vm167, %v162, %v164
  %v170 = vsel %vm167, %v164, %v166
  %v176 = vmul.f32 %v145, %v160
  %v177 = vmul.f32 %v146, %v168
  %v178 = vmul.f32 %v147, %v169
  %v179 = vmul.f32 %v148, %v170
  %v180 = vmul.f32 %v149, %v166
  %v181 = vmul.f32 %v150, %v160
  %v182 = vmul.f32 %v151, %v168
  %v183 = vmul.f32 %v152, %v169
  %v184 = vmul.f32 %v153, %v170
  %v185 = vmul.f32 %v154, %v166
  %v186 = vld [vmem:[%s1] sm:$0xf]
  %v187 = vld [vmem:[%s1 + $0x4] sm:$0xf]
  %v188 = vpack.c.bf16 %v181, %v176
  %v189 = vpack.c.bf16 %v182, %v177
  %v190 = vpack.c.bf16 %v183, %v178
  %v191 = vpack.c.bf16 %v184, %v179
  %v192 = vpack.c.bf16 %v185, %v180
  %197 = vrot.lane.b32.xlu0 %v77, 112
  %v198 = vpop.permute.xlu0 %197
  %199 = vrot.lane.b32.xlu0 %v78, 112
  %v200 = vpop.permute.xlu0 %199
  %201 = vrot.lane.b32.xlu0 %v79, 112
  %v202 = vpop.permute.xlu0 %201
  %203 = vrot.lane.b32.xlu0 %v80, 112
  %v204 = vpop.permute.xlu0 %203
  %vm205 = vcmask 916480
  %v206 = vsel %vm205, %v198, %v200
  %v207 = vsel %vm205, %v200, %v202
  %v208 = vsel %vm205, %v202, %v204
  %v214 = vmul.f32 %v145, %v198
  %v215 = vmul.f32 %v146, %v206
  %v216 = vmul.f32 %v147, %v207
  %v217 = vmul.f32 %v148, %v208
  %v218 = vmul.f32 %v149, %v204
  %v219 = vmul.f32 %v150, %v198
  %v220 = vmul.f32 %v151, %v206
  %v221 = vmul.f32 %v152, %v207
  %v222 = vmul.f32 %v153, %v208
  %v223 = vmul.f32 %v154, %v204
  %s224 = scalar_lea.vmem %s1, 8
  %v225 = vld [vmem:[%s224] sm:$0xf]
  %v226 = vld [vmem:[%s224 + $0x4] sm:$0xf]
  %v227 = vpack.c.bf16 %v219, %v214
  %v228 = vpack.c.bf16 %v220, %v215
  %v229 = vpack.c.bf16 %v221, %v216
  %v230 = vpack.c.bf16 %v222, %v217
  %v231 = vpack.c.bf16 %v223, %v218
  %v234 = vunpack.c.l.b16 %v225
  %v235 = vunpack.c.l.b16 %v226
  %v236 = vpack.c.b16 %v235, %v234
  %242 = vrot.lane.b32.xlu0 %v227, 16
  %v243 = vpop.permute.xlu0 %242
  %244 = vrot.lane.b32.xlu0 %v228, 16
  %v245 = vpop.permute.xlu0 %244
  %246 = vrot.lane.b32.xlu0 %v229, 16
  %v247 = vpop.permute.xlu0 %246
  %248 = vrot.lane.b32.xlu0 %v230, 16
  %v249 = vpop.permute.xlu0 %248
  %250 = vrot.lane.b32.xlu0 %v231, 16
  %v251 = vpop.permute.xlu0 %250
  %vm252 = vcmask 130048
  %v253 = vsel %vm252, %v243, %v245
  %v254 = vsel %vm252, %v245, %v247
  %v255 = vsel %vm252, %v247, %v249
  %v256 = vsel %vm252, %v249, %v251
  %vm261 = vcmask 130048
  %v263 = vsel %vm261, %v236, 0
  %265 = vmatprep.subr.bf16.mxu0 0
  %266 = vmatpush1.bf16.msra.mxu0 0
  %267 = vmatprep.subr.bf16.mxu0 0
  %268 = vmatpush1.bf16.msra.mxu0 0
  %269 = vmatprep.subr.bf16.mxu0 0
  %270 = vmatpush1.bf16.msra.mxu0 0
  %271 = vmatprep.subr.bf16.mxu0 0
  %272 = vmatpush1.bf16.msra.mxu0 0
  %273 = vmatprep.subr.bf16.mxu0 0
  %274 = vmatpush1.bf16.msra.mxu0 0
  %275 = vmatprep.subr.bf16.mxu0 0
  %276 = vmatpush1.bf16.msra.mxu0 0
  %277 = vmatprep.subr.bf16.mxu0 0
  %278 = vmatpush1.bf16.msra.mxu0 0
  %279 = vmatprep.subr.bf16.mxu0 %v254
  %280 = vmatpush1.bf16.msra.mxu0 %v253
  %281 = vmatprep.subr.bf16.mxu0 0
  %282 = vmatpush2.bf16.msra.mxu0 0
  %283 = vmatprep.subr.bf16.mxu0 0
  %284 = vmatpush2.bf16.msra.mxu0 0
  %285 = vmatprep.subr.bf16.mxu0 0
  %286 = vmatpush2.bf16.msra.mxu0 0
  %287 = vmatprep.subr.bf16.mxu0 0
  %288 = vmatpush2.bf16.msra.mxu0 0
  %289 = vmatprep.subr.bf16.mxu0 0
  %290 = vmatpush2.bf16.msra.mxu0 0
  %291 = vmatprep.subr.bf16.mxu0 0
  %292 = vmatpush2.bf16.msra.mxu0 0
  %293 = vmatprep.subr.bf16.mxu0 0
  %294 = vmatpush2.bf16.msra.mxu0 0
  %295 = vmatprep.subr.bf16.mxu0 0
  %296 = vmatpush2.bf16.msra.mxu0 0
  %297 = vmatprep.mubr.bf16.mxu0 0
  %298 = vmatmul.mubr.bf16.gmra.mxu0 %v263
  %v299 = vpop.f32.mrf.mxu0
  %v300 = vadd.f32 0.0, %v299
  %v301 = vpop.f32.mrf.mxu0
  %v302 = vadd.f32 0.0, %v301
  %v303 = vpop.f32.mrf.mxu0
  %v304 = vadd.f32 0.0, %v303
  %v305 = vpop.f32.mrf.mxu0
  %v306 = vadd.f32 0.0, %v305
  %307 = vdwg.mxu0
  %308 = vmatprep.subr.bf16.mxu0 0
  %309 = vmatpush1.bf16.msra.mxu0 0
  %310 = vmatprep.subr.bf16.mxu0 0
  %311 = vmatpush1.bf16.msra.mxu0 0
  %312 = vmatprep.subr.bf16.mxu0 0
  %313 = vmatpush1.bf16.msra.mxu0 0
  %314 = vmatprep.subr.bf16.mxu0 0
  %315 = vmatpush1.bf16.msra.mxu0 0
  %316 = vmatprep.subr.bf16.mxu0 0
  %317 = vmatpush1.bf16.msra.mxu0 0
  %318 = vmatprep.subr.bf16.mxu0 0
  %319 = vmatpush1.bf16.msra.mxu0 0
  %320 = vmatprep.subr.bf16.mxu0 0
  %321 = vmatpush1.bf16.msra.mxu0 0
  %322 = vmatprep.subr.bf16.mxu0 %v256
  %323 = vmatpush1.bf16.msra.mxu0 %v255
  %324 = vmatprep.subr.bf16.mxu0 0
  %325 = vmatpush2.bf16.msra.mxu0 0
  %326 = vmatprep.subr.bf16.mxu0 0
  %327 = vmatpush2.bf16.msra.mxu0 0
  %328 = vmatprep.subr.bf16.mxu0 0
  %329 = vmatpush2.bf16.msra.mxu0 0
  %330 = vmatprep.subr.bf16.mxu0 0
  %331 = vmatpush2.bf16.msra.mxu0 0
  %332 = vmatprep.subr.bf16.mxu0 0
  %333 = vmatpush2.bf16.msra.mxu0 0
  %334 = vmatprep.subr.bf16.mxu0 0
  %335 = vmatpush2.bf16.msra.mxu0 0
  %336 = vmatprep.subr.bf16.mxu0 0
  %337 = vmatpush2.bf16.msra.mxu0 0
  %338 = vmatprep.subr.bf16.mxu0 0
  %339 = vmatpush2.bf16.msra.mxu0 0
  %340 = vmatprep.mubr.bf16.mxu0 0
  %341 = vmatmul.mubr.bf16.gmra.mxu0 %v263
  %v342 = vpop.f32.mrf.mxu0
  %v343 = vadd.f32 0.0, %v342
  %v344 = vpop.f32.mrf.mxu0
  %v345 = vadd.f32 0.0, %v344
  %v346 = vpop.f32.mrf.mxu0
  %v347 = vadd.f32 0.0, %v346
  %v348 = vpop.f32.mrf.mxu0
  %v349 = vadd.f32 0.0, %v348
  %350 = vdwg.mxu0
  %v353 = vunpack.c.l.b16 %v186
  %v354 = vunpack.c.l.b16 %v187
  %v355 = vpack.c.b16 %v354, %v353
  %361 = vrot.lane.b32.xlu0 %v188, 17
  %v362 = vpop.permute.xlu0 %361
  %363 = vrot.lane.b32.xlu0 %v189, 17
  %v364 = vpop.permute.xlu0 %363
  %365 = vrot.lane.b32.xlu0 %v190, 17
  %v366 = vpop.permute.xlu0 %365
  %367 = vrot.lane.b32.xlu0 %v191, 17
  %v368 = vpop.permute.xlu0 %367
  %369 = vrot.lane.b32.xlu0 %v192, 17
  %v370 = vpop.permute.xlu0 %369
  %vm371 = vcmask 138240
  %v372 = vsel %vm371, %v362, %v364
  %v373 = vsel %vm371, %v364, %v366
  %v374 = vsel %vm371, %v366, %v368
  %v375 = vsel %vm371, %v368, %v370
  %v381 = vsel %vm261, %v355, 0
  %383 = vmatprep.subr.bf16.mxu0 0
  %384 = vmatpush1.bf16.msra.mxu0 0
  %385 = vmatprep.subr.bf16.mxu0 0
  %386 = vmatpush1.bf16.msra.mxu0 0
  %387 = vmatprep.subr.bf16.mxu0 0
  %388 = vmatpush1.bf16.msra.mxu0 0
  %389 = vmatprep.subr.bf16.mxu0 0
  %390 = vmatpush1.bf16.msra.mxu0 0
  %391 = vmatprep.subr.bf16.mxu0 0
  %392 = vmatpush1.bf16.msra.mxu0 0
  %393 = vmatprep.subr.bf16.mxu0 0
  %394 = vmatpush1.bf16.msra.mxu0 0
  %395 = vmatprep.subr.bf16.mxu0 0
  %396 = vmatpush1.bf16.msra.mxu0 0
  %397 = vmatprep.subr.bf16.mxu0 %v373
  %398 = vmatpush1.bf16.msra.mxu0 %v372
  %399 = vmatprep.subr.bf16.mxu0 0
  %400 = vmatpush2.bf16.msra.mxu0 0
  %401 = vmatprep.subr.bf16.mxu0 0
  %402 = vmatpush2.bf16.msra.mxu0 0
  %403 = vmatprep.subr.bf16.mxu0 0
  %404 = vmatpush2.bf16.msra.mxu0 0
  %405 = vmatprep.subr.bf16.mxu0 0
  %406 = vmatpush2.bf16.msra.mxu0 0
  %407 = vmatprep.subr.bf16.mxu0 0
  %408 = vmatpush2.bf16.msra.mxu0 0
  %409 = vmatprep.subr.bf16.mxu0 0
  %410 = vmatpush2.bf16.msra.mxu0 0
  %411 = vmatprep.subr.bf16.mxu0 0
  %412 = vmatpush2.bf16.msra.mxu0 0
  %413 = vmatprep.subr.bf16.mxu0 0
  %414 = vmatpush2.bf16.msra.mxu0 0
  %415 = vmatprep.mubr.bf16.mxu0 0
  %416 = vmatmul.mubr.bf16.gmra.mxu0 %v381
  %v417 = vpop.f32.mrf.mxu0
  %v418 = vadd.f32 %v300, %v417
  %v419 = vpop.f32.mrf.mxu0
  %v420 = vadd.f32 %v302, %v419
  %v421 = vpop.f32.mrf.mxu0
  %v422 = vadd.f32 %v304, %v421
  %v423 = vpop.f32.mrf.mxu0
  %v424 = vadd.f32 %v306, %v423
  %425 = vdwg.mxu0
  %426 = vmatprep.subr.bf16.mxu0 0
  %427 = vmatpush1.bf16.msra.mxu0 0
  %428 = vmatprep.subr.bf16.mxu0 0
  %429 = vmatpush1.bf16.msra.mxu0 0
  %430 = vmatprep.subr.bf16.mxu0 0
  %431 = vmatpush1.bf16.msra.mxu0 0
  %432 = vmatprep.subr.bf16.mxu0 0
  %433 = vmatpush1.bf16.msra.mxu0 0
  %434 = vmatprep.subr.bf16.mxu0 0
  %435 = vmatpush1.bf16.msra.mxu0 0
  %436 = vmatprep.subr.bf16.mxu0 0
  %437 = vmatpush1.bf16.msra.mxu0 0
  %438 = vmatprep.subr.bf16.mxu0 0
  %439 = vmatpush1.bf16.msra.mxu0 0
  %440 = vmatprep.subr.bf16.mxu0 %v375
  %441 = vmatpush1.bf16.msra.mxu0 %v374
  %442 = vmatprep.subr.bf16.mxu0 0
  %443 = vmatpush2.bf16.msra.mxu0 0
  %444 = vmatprep.subr.bf16.mxu0 0
  %445 = vmatpush2.bf16.msra.mxu0 0
  %446 = vmatprep.subr.bf16.mxu0 0
  %447 = vmatpush2.bf16.msra.mxu0 0
  %448 = vmatprep.subr.bf16.mxu0 0
  %449 = vmatpush2.bf16.msra.mxu0 0
  %450 = vmatprep.subr.bf16.mxu0 0
  %451 = vmatpush2.bf16.msra.mxu0 0
  %452 = vmatprep.subr.bf16.mxu0 0
  %453 = vmatpush2.bf16.msra.mxu0 0
  %454 = vmatprep.subr.bf16.mxu0 0
  %455 = vmatpush2.bf16.msra.mxu0 0
  %456 = vmatprep.subr.bf16.mxu0 0
  %457 = vmatpush2.bf16.msra.mxu0 0
  %458 = vmatprep.mubr.bf16.mxu0 0
  %459 = vmatmul.mubr.bf16.gmra.mxu0 %v381
  %v460 = vpop.f32.mrf.mxu0
  %v461 = vadd.f32 %v343, %v460
  %v462 = vpop.f32.mrf.mxu0
  %v463 = vadd.f32 %v345, %v462
  %v464 = vpop.f32.mrf.mxu0
  %v465 = vadd.f32 %v347, %v464
  %v466 = vpop.f32.mrf.mxu0
  %v467 = vadd.f32 %v349, %v466
  %468 = vdwg.mxu0
  %473 = vrot.lane.b32.xlu0 %v85, 113
  %v474 = vpop.permute.xlu0 %473
  %475 = vrot.lane.b32.xlu0 %v86, 113
  %v476 = vpop.permute.xlu0 %475
  %477 = vrot.lane.b32.xlu0 %v87, 113
  %v478 = vpop.permute.xlu0 %477
  %479 = vrot.lane.b32.xlu0 %v88, 113
  %v480 = vpop.permute.xlu0 %479
  %vm481 = vcmask 924672
  %v482 = vsel %vm481, %v474, %v476
  %v483 = vsel %vm481, %v476, %v478
  %v484 = vsel %vm481, %v478, %v480
  %v490 = vmul.f32 %v145, %v474
  %v491 = vmul.f32 %v146, %v482
  %v492 = vmul.f32 %v147, %v483
  %v493 = vmul.f32 %v148, %v484
  %v494 = vmul.f32 %v149, %v480
  %v495 = vmul.f32 %v150, %v474
  %v496 = vmul.f32 %v151, %v482
  %v497 = vmul.f32 %v152, %v483
  %v498 = vmul.f32 %v153, %v484
  %v499 = vmul.f32 %v154, %v480
  %s500 = scalar_lea.vmem %s1, 16
  %v501 = vld [vmem:[%s500] sm:$0xf]
  %v502 = vld [vmem:[%s500 + $0x4] sm:$0xf]
  %v503 = vpack.c.bf16 %v495, %v490
  %v504 = vpack.c.bf16 %v496, %v491
  %v505 = vpack.c.bf16 %v497, %v492
  %v506 = vpack.c.bf16 %v498, %v493
  %v507 = vpack.c.bf16 %v499, %v494
  %v510 = vunpack.c.l.b16 %v501
  %v511 = vunpack.c.l.b16 %v502
  %v512 = vpack.c.b16 %v511, %v510
  %518 = vrot.lane.b32.xlu0 %v503, 15
  %v519 = vpop.permute.xlu0 %518
  %520 = vrot.lane.b32.xlu0 %v504, 15
  %v521 = vpop.permute.xlu0 %520
  %522 = vrot.lane.b32.xlu0 %v505, 15
  %v523 = vpop.permute.xlu0 %522
  %524 = vrot.lane.b32.xlu0 %v506, 15
  %v525 = vpop.permute.xlu0 %524
  %526 = vrot.lane.b32.xlu0 %v507, 15
  %v527 = vpop.permute.xlu0 %526
  %vm528 = vcmask 121856
  %v529 = vsel %vm528, %v519, %v521
  %v530 = vsel %vm528, %v521, %v523
  %v531 = vsel %vm528, %v523, %v525
  %v532 = vsel %vm528, %v525, %v527
  %v538 = vsel %vm261, %v512, 0
  %540 = vmatprep.subr.bf16.mxu0 0
  %541 = vmatpush1.bf16.msra.mxu0 0
  %542 = vmatprep.subr.bf16.mxu0 0
  %543 = vmatpush1.bf16.msra.mxu0 0
  %544 = vmatprep.subr.bf16.mxu0 0
  %545 = vmatpush1.bf16.msra.mxu0 0
  %546 = vmatprep.subr.bf16.mxu0 0
  %547 = vmatpush1.bf16.msra.mxu0 0
  %548 = vmatprep.subr.bf16.mxu0 0
  %549 = vmatpush1.bf16.msra.mxu0 0
  %550 = vmatprep.subr.bf16.mxu0 0
  %551 = vmatpush1.bf16.msra.mxu0 0
  %552 = vmatprep.subr.bf16.mxu0 0
  %553 = vmatpush1.bf16.msra.mxu0 0
  %554 = vmatprep.subr.bf16.mxu0 %v530
  %555 = vmatpush1.bf16.msra.mxu0 %v529
  %556 = vmatprep.subr.bf16.mxu0 0
  %557 = vmatpush2.bf16.msra.mxu0 0
  %558 = vmatprep.subr.bf16.mxu0 0
  %559 = vmatpush2.bf16.msra.mxu0 0
  %560 = vmatprep.subr.bf16.mxu0 0
  %561 = vmatpush2.bf16.msra.mxu0 0
  %562 = vmatprep.subr.bf16.mxu0 0
  %563 = vmatpush2.bf16.msra.mxu0 0
  %564 = vmatprep.subr.bf16.mxu0 0
  %565 = vmatpush2.bf16.msra.mxu0 0
  %566 = vmatprep.subr.bf16.mxu0 0
  %567 = vmatpush2.bf16.msra.mxu0 0
  %568 = vmatprep.subr.bf16.mxu0 0
  %569 = vmatpush2.bf16.msra.mxu0 0
  %570 = vmatprep.subr.bf16.mxu0 0
  %571 = vmatpush2.bf16.msra.mxu0 0
  %572 = vmatprep.mubr.bf16.mxu0 0
  %573 = vmatmul.mubr.bf16.gmra.mxu0 %v538
  %v574 = vpop.f32.mrf.mxu0
  %v575 = vadd.f32 0.0, %v574
  %v576 = vpop.f32.mrf.mxu0
  %v577 = vadd.f32 0.0, %v576
  %v578 = vpop.f32.mrf.mxu0
  %v579 = vadd.f32 0.0, %v578
  %v580 = vpop.f32.mrf.mxu0
  %v581 = vadd.f32 0.0, %v580
  %582 = vdwg.mxu0
  %583 = vmatprep.subr.bf16.mxu0 0
  %584 = vmatpush1.bf16.msra.mxu0 0
  %585 = vmatprep.subr.bf16.mxu0 0
  %586 = vmatpush1.bf16.msra.mxu0 0
  %587 = vmatprep.subr.bf16.mxu0 0
  %588 = vmatpush1.bf16.msra.mxu0 0
  %589 = vmatprep.subr.bf16.mxu0 0
  %590 = vmatpush1.bf16.msra.mxu0 0
  %591 = vmatprep.subr.bf16.mxu0 0
  %592 = vmatpush1.bf16.msra.mxu0 0
  %593 = vmatprep.subr.bf16.mxu0 0
  %594 = vmatpush1.bf16.msra.mxu0 0
  %595 = vmatprep.subr.bf16.mxu0 0
  %596 = vmatpush1.bf16.msra.mxu0 0
  %597 = vmatprep.subr.bf16.mxu0 %v532
  %598 = vmatpush1.bf16.msra.mxu0 %v531
  %599 = vmatprep.subr.bf16.mxu0 0
  %600 = vmatpush2.bf16.msra.mxu0 0
  %601 = vmatprep.subr.bf16.mxu0 0
  %602 = vmatpush2.bf16.msra.mxu0 0
  %603 = vmatprep.subr.bf16.mxu0 0
  %604 = vmatpush2.bf16.msra.mxu0 0
  %605 = vmatprep.subr.bf16.mxu0 0
  %606 = vmatpush2.bf16.msra.mxu0 0
  %607 = vmatprep.subr.bf16.mxu0 0
  %608 = vmatpush2.bf16.msra.mxu0 0
  %609 = vmatprep.subr.bf16.mxu0 0
  %610 = vmatpush2.bf16.msra.mxu0 0
  %611 = vmatprep.subr.bf16.mxu0 0
  %612 = vmatpush2.bf16.msra.mxu0 0
  %613 = vmatprep.subr.bf16.mxu0 0
  %614 = vmatpush2.bf16.msra.mxu0 0
  %615 = vmatprep.mubr.bf16.mxu0 0
  %616 = vmatmul.mubr.bf16.gmra.mxu0 %v538
  %v617 = vpop.f32.mrf.mxu0
  %v618 = vadd.f32 0.0, %v617
  %v619 = vpop.f32.mrf.mxu0
  %v620 = vadd.f32 0.0, %v619
  %v621 = vpop.f32.mrf.mxu0
  %v622 = vadd.f32 0.0, %v621
  %v623 = vpop.f32.mrf.mxu0
  %v624 = vadd.f32 0.0, %v623
  %625 = vdwg.mxu0
  %v626 = vadd.f32 %v418, %v575
  %v627 = vadd.f32 %v420, %v577
  %v628 = vadd.f32 %v461, %v618
  %v629 = vadd.f32 %v463, %v620
  %v630 = vadd.f32 %v422, %v579
  %v631 = vadd.f32 %v424, %v581
  %v632 = vadd.f32 %v465, %v622
  %v633 = vadd.f32 %v467, %v624
  %638 = vrot.lane.b32.xlu0 %v89, 127
  %v639 = vpop.permute.xlu0 %638
  %640 = vrot.lane.b32.xlu0 %v90, 127
  %v641 = vpop.permute.xlu0 %640
  %642 = vrot.lane.b32.xlu0 %v91, 127
  %v643 = vpop.permute.xlu0 %642
  %644 = vrot.lane.b32.xlu0 %v92, 127
  %v645 = vpop.permute.xlu0 %644
  %vm646 = vcmask 1039360
  %v647 = vsel %vm646, %v639, %v641
  %v648 = vsel %vm646, %v641, %v643
  %v649 = vsel %vm646, %v643, %v645
  %v655 = vmul.f32 %v145, %v639
  %v656 = vmul.f32 %v146, %v647
  %v657 = vmul.f32 %v147, %v648
  %v658 = vmul.f32 %v148, %v649
  %v659 = vmul.f32 %v149, %v645
  %v660 = vmul.f32 %v150, %v639
  %v661 = vmul.f32 %v151, %v647
  %v662 = vmul.f32 %v152, %v648
  %v663 = vmul.f32 %v153, %v649
  %v664 = vmul.f32 %v154, %v645
  %s665 = scalar_lea.vmem %s1, 24
  %v666 = vld [vmem:[%s665] sm:$0xf]
  %v667 = vld [vmem:[%s665 + $0x4] sm:$0xf]
  %v668 = vpack.c.bf16 %v660, %v655
  %v669 = vpack.c.bf16 %v661, %v656
  %v670 = vpack.c.bf16 %v662, %v657
  %v671 = vpack.c.bf16 %v663, %v658
  %v672 = vpack.c.bf16 %v664, %v659
  %v675 = vunpack.c.l.b16 %v666
  %v676 = vunpack.c.l.b16 %v667
  %v677 = vpack.c.b16 %v676, %v675
  %683 = vrot.lane.b32.xlu0 %v668, 1
  %v684 = vpop.permute.xlu0 %683
  %685 = vrot.lane.b32.xlu0 %v669, 1
  %v686 = vpop.permute.xlu0 %685
  %687 = vrot.lane.b32.xlu0 %v670, 1
  %v688 = vpop.permute.xlu0 %687
  %689 = vrot.lane.b32.xlu0 %v671, 1
  %v690 = vpop.permute.xlu0 %689
  %691 = vrot.lane.b32.xlu0 %v672, 1
  %v692 = vpop.permute.xlu0 %691
  %vm693 = vcmask 7168
  %v694 = vsel %vm693, %v684, %v686
  %v695 = vsel %vm693, %v686, %v688
  %v696 = vsel %vm693, %v688, %v690
  %v697 = vsel %vm693, %v690, %v692
  %v703 = vsel %vm261, %v677, 0
  %705 = vmatprep.subr.bf16.mxu0 0
  %706 = vmatpush1.bf16.msra.mxu0 0
  %707 = vmatprep.subr.bf16.mxu0 0
  %708 = vmatpush1.bf16.msra.mxu0 0
  %709 = vmatprep.subr.bf16.mxu0 0
  %710 = vmatpush1.bf16.msra.mxu0 0
  %711 = vmatprep.subr.bf16.mxu0 0
  %712 = vmatpush1.bf16.msra.mxu0 0
  %713 = vmatprep.subr.bf16.mxu0 0
  %714 = vmatpush1.bf16.msra.mxu0 0
  %715 = vmatprep.subr.bf16.mxu0 0
  %716 = vmatpush1.bf16.msra.mxu0 0
  %717 = vmatprep.subr.bf16.mxu0 0
  %718 = vmatpush1.bf16.msra.mxu0 0
  %719 = vmatprep.subr.bf16.mxu0 %v695
  %720 = vmatpush1.bf16.msra.mxu0 %v694
  %721 = vmatprep.subr.bf16.mxu0 0
  %722 = vmatpush2.bf16.msra.mxu0 0
  %723 = vmatprep.subr.bf16.mxu0 0
  %724 = vmatpush2.bf16.msra.mxu0 0
  %725 = vmatprep.subr.bf16.mxu0 0
  %726 = vmatpush2.bf16.msra.mxu0 0
  %727 = vmatprep.subr.bf16.mxu0 0
  %728 = vmatpush2.bf16.msra.mxu0 0
  %729 = vmatprep.subr.bf16.mxu0 0
  %730 = vmatpush2.bf16.msra.mxu0 0
  %731 = vmatprep.subr.bf16.mxu0 0
  %732 = vmatpush2.bf16.msra.mxu0 0
  %733 = vmatprep.subr.bf16.mxu0 0
  %734 = vmatpush2.bf16.msra.mxu0 0
  %735 = vmatprep.subr.bf16.mxu0 0
  %736 = vmatpush2.bf16.msra.mxu0 0
  %737 = vmatprep.mubr.bf16.mxu0 0
  %738 = vmatmul.mubr.bf16.gmra.mxu0 %v703
  %v739 = vpop.f32.mrf.mxu0
  %v740 = vadd.f32 0.0, %v739
  %v741 = vpop.f32.mrf.mxu0
  %v742 = vadd.f32 0.0, %v741
  %v743 = vpop.f32.mrf.mxu0
  %v744 = vadd.f32 0.0, %v743
  %v745 = vpop.f32.mrf.mxu0
  %v746 = vadd.f32 0.0, %v745
  %747 = vdwg.mxu0
  %748 = vmatprep.subr.bf16.mxu0 0
  %749 = vmatpush1.bf16.msra.mxu0 0
  %750 = vmatprep.subr.bf16.mxu0 0
  %751 = vmatpush1.bf16.msra.mxu0 0
  %752 = vmatprep.subr.bf16.mxu0 0
  %753 = vmatpush1.bf16.msra.mxu0 0
  %754 = vmatprep.subr.bf16.mxu0 0
  %755 = vmatpush1.bf16.msra.mxu0 0
  %756 = vmatprep.subr.bf16.mxu0 0
  %757 = vmatpush1.bf16.msra.mxu0 0
  %758 = vmatprep.subr.bf16.mxu0 0
  %759 = vmatpush1.bf16.msra.mxu0 0
  %760 = vmatprep.subr.bf16.mxu0 0
  %761 = vmatpush1.bf16.msra.mxu0 0
  %762 = vmatprep.subr.bf16.mxu0 %v697
  %763 = vmatpush1.bf16.msra.mxu0 %v696
  %764 = vmatprep.subr.bf16.mxu0 0
  %765 = vmatpush2.bf16.msra.mxu0 0
  %766 = vmatprep.subr.bf16.mxu0 0
  %767 = vmatpush2.bf16.msra.mxu0 0
  %768 = vmatprep.subr.bf16.mxu0 0
  %769 = vmatpush2.bf16.msra.mxu0 0
  %770 = vmatprep.subr.bf16.mxu0 0
  %771 = vmatpush2.bf16.msra.mxu0 0
  %772 = vmatprep.subr.bf16.mxu0 0
  %773 = vmatpush2.bf16.msra.mxu0 0
  %774 = vmatprep.subr.bf16.mxu0 0
  %775 = vmatpush2.bf16.msra.mxu0 0
  %776 = vmatprep.subr.bf16.mxu0 0
  %777 = vmatpush2.bf16.msra.mxu0 0
  %778 = vmatprep.subr.bf16.mxu0 0
  %779 = vmatpush2.bf16.msra.mxu0 0
  %780 = vmatprep.mubr.bf16.mxu0 0
  %781 = vmatmul.mubr.bf16.gmra.mxu0 %v703
  %v782 = vpop.f32.mrf.mxu0
  %v783 = vadd.f32 0.0, %v782
  %v784 = vpop.f32.mrf.mxu0
  %v785 = vadd.f32 0.0, %v784
  %v786 = vpop.f32.mrf.mxu0
  %v787 = vadd.f32 0.0, %v786
  %v788 = vpop.f32.mrf.mxu0
  %v789 = vadd.f32 0.0, %v788
  %790 = vdwg.mxu0
  %v791 = vadd.f32 %v626, %v740
  %v792 = vadd.f32 %v627, %v742
  %v793 = vadd.f32 %v628, %v783
  %v794 = vadd.f32 %v629, %v785
  %v795 = vadd.f32 %v630, %v744
  %v796 = vadd.f32 %v631, %v746
  %v797 = vadd.f32 %v632, %v787
  %v798 = vadd.f32 %v633, %v789
  %s799 = scalar_lea.vmem %s1, 32
  %v800 = vld [vmem:[%s799] sm:$0xf]
  %v801 = vld [vmem:[%s799 + $0x4] sm:$0xf]
  %v802 = vpack.c.bf16 %v151, %v146
  %v803 = vpack.c.bf16 %v152, %v147
  %v804 = vpack.c.bf16 %v153, %v148
  %v805 = vpack.c.bf16 %v154, %v149
  %v808 = vunpack.c.l.b16 %v800
  %v809 = vunpack.c.l.b16 %v801
  %v810 = vpack.c.b16 %v809, %v808
  %v812 = vsel %vm261, %v810, 0
  %814 = vmatprep.subr.bf16.mxu0 0
  %815 = vmatpush1.bf16.msra.mxu0 0
  %816 = vmatprep.subr.bf16.mxu0 0
  %817 = vmatpush1.bf16.msra.mxu0 0
  %818 = vmatprep.subr.bf16.mxu0 0
  %819 = vmatpush1.bf16.msra.mxu0 0
  %820 = vmatprep.subr.bf16.mxu0 0
  %821 = vmatpush1.bf16.msra.mxu0 0
  %822 = vmatprep.subr.bf16.mxu0 0
  %823 = vmatpush1.bf16.msra.mxu0 0
  %824 = vmatprep.subr.bf16.mxu0 0
  %825 = vmatpush1.bf16.msra.mxu0 0
  %826 = vmatprep.subr.bf16.mxu0 0
  %827 = vmatpush1.bf16.msra.mxu0 0
  %828 = vmatprep.subr.bf16.mxu0 %v803
  %829 = vmatpush1.bf16.msra.mxu0 %v802
  %830 = vmatprep.subr.bf16.mxu0 0
  %831 = vmatpush2.bf16.msra.mxu0 0
  %832 = vmatprep.subr.bf16.mxu0 0
  %833 = vmatpush2.bf16.msra.mxu0 0
  %834 = vmatprep.subr.bf16.mxu0 0
  %835 = vmatpush2.bf16.msra.mxu0 0
  %836 = vmatprep.subr.bf16.mxu0 0
  %837 = vmatpush2.bf16.msra.mxu0 0
  %838 = vmatprep.subr.bf16.mxu0 0
  %839 = vmatpush2.bf16.msra.mxu0 0
  %840 = vmatprep.subr.bf16.mxu0 0
  %841 = vmatpush2.bf16.msra.mxu0 0
  %842 = vmatprep.subr.bf16.mxu0 0
  %843 = vmatpush2.bf16.msra.mxu0 0
  %844 = vmatprep.subr.bf16.mxu0 0
  %845 = vmatpush2.bf16.msra.mxu0 0
  %846 = vmatprep.mubr.bf16.mxu0 0
  %847 = vmatmul.mubr.bf16.gmra.mxu0 %v812
  %v848 = vpop.f32.mrf.mxu0
  %v849 = vadd.f32 0.0, %v848
  %v850 = vpop.f32.mrf.mxu0
  %v851 = vadd.f32 0.0, %v850
  %v852 = vpop.f32.mrf.mxu0
  %v853 = vadd.f32 0.0, %v852
  %v854 = vpop.f32.mrf.mxu0
  %v855 = vadd.f32 0.0, %v854
  %856 = vdwg.mxu0
  %857 = vmatprep.subr.bf16.mxu0 0
  %858 = vmatpush1.bf16.msra.mxu0 0
  %859 = vmatprep.subr.bf16.mxu0 0
  %860 = vmatpush1.bf16.msra.mxu0 0
  %861 = vmatprep.subr.bf16.mxu0 0
  %862 = vmatpush1.bf16.msra.mxu0 0
  %863 = vmatprep.subr.bf16.mxu0 0
  %864 = vmatpush1.bf16.msra.mxu0 0
  %865 = vmatprep.subr.bf16.mxu0 0
  %866 = vmatpush1.bf16.msra.mxu0 0
  %867 = vmatprep.subr.bf16.mxu0 0
  %868 = vmatpush1.bf16.msra.mxu0 0
  %869 = vmatprep.subr.bf16.mxu0 0
  %870 = vmatpush1.bf16.msra.mxu0 0
  %871 = vmatprep.subr.bf16.mxu0 %v805
  %872 = vmatpush1.bf16.msra.mxu0 %v804
  %873 = vmatprep.subr.bf16.mxu0 0
  %874 = vmatpush2.bf16.msra.mxu0 0
  %875 = vmatprep.subr.bf16.mxu0 0
  %876 = vmatpush2.bf16.msra.mxu0 0
  %877 = vmatprep.subr.bf16.mxu0 0
  %878 = vmatpush2.bf16.msra.mxu0 0
  %879 = vmatprep.subr.bf16.mxu0 0
  %880 = vmatpush2.bf16.msra.mxu0 0
  %881 = vmatprep.subr.bf16.mxu0 0
  %882 = vmatpush2.bf16.msra.mxu0 0
  %883 = vmatprep.subr.bf16.mxu0 0
  %884 = vmatpush2.bf16.msra.mxu0 0
  %885 = vmatprep.subr.bf16.mxu0 0
  %886 = vmatpush2.bf16.msra.mxu0 0
  %887 = vmatprep.subr.bf16.mxu0 0
  %888 = vmatpush2.bf16.msra.mxu0 0
  %889 = vmatprep.mubr.bf16.mxu0 0
  %890 = vmatmul.mubr.bf16.gmra.mxu0 %v812
  %v891 = vpop.f32.mrf.mxu0
  %v892 = vadd.f32 0.0, %v891
  %v893 = vpop.f32.mrf.mxu0
  %v894 = vadd.f32 0.0, %v893
  %v895 = vpop.f32.mrf.mxu0
  %v896 = vadd.f32 0.0, %v895
  %v897 = vpop.f32.mrf.mxu0
  %v898 = vadd.f32 0.0, %v897
  %899 = vdwg.mxu0
  %v900 = vadd.f32 %v791, %v849
  %v901 = vadd.f32 %v792, %v851
  %v902 = vadd.f32 %v793, %v892
  %v903 = vadd.f32 %v794, %v894
  %v904 = vadd.f32 %v795, %v853
  %v905 = vadd.f32 %v796, %v855
  %v906 = vadd.f32 %v797, %v896
  %v907 = vadd.f32 %v798, %v898
  %v908 = vld [vmem:[#allocation2 + $0x8] sm:$0xff]
  %v909 = vld [vmem:[#allocation2 + $0x10] sm:$0xff]
  %v910 = vld [vmem:[#allocation2 + $0x18] sm:$0xff]
  %v911 = vld [vmem:[#allocation2 + $0x20] sm:$0xff]
  %v912 = vld [vmem:[#allocation2 + $0x28] sm:$0xff]
  %v913 = vld [vmem:[#allocation2 + $0x38] sm:$0xff]
  %v914 = vld [vmem:[#allocation2 + $0x40] sm:$0xff]
  %v915 = vld [vmem:[#allocation2 + $0x48] sm:$0xff]
  %v916 = vld [vmem:[#allocation2 + $0x50] sm:$0xff]
  %v917 = vld [vmem:[#allocation2 + $0x58] sm:$0xff]
  %922 = vrot.lane.b32.xlu0 %v93, 1
  %v923 = vpop.permute.xlu0 %922
  %924 = vrot.lane.b32.xlu0 %v94, 1
  %v925 = vpop.permute.xlu0 %924
  %926 = vrot.lane.b32.xlu0 %v95, 1
  %v927 = vpop.permute.xlu0 %926
  %928 = vrot.lane.b32.xlu0 %v96, 1
  %v929 = vpop.permute.xlu0 %928
  %vm930 = vcmask 7168
  %v931 = vsel %vm930, %v923, %v925
  %v932 = vsel %vm930, %v925, %v927
  %v933 = vsel %vm930, %v927, %v929
  %v939 = vmul.f32 %v908, %v923
  %v940 = vmul.f32 %v909, %v931
  %v941 = vmul.f32 %v910, %v932
  %v942 = vmul.f32 %v911, %v933
  %v943 = vmul.f32 %v912, %v929
  %v944 = vmul.f32 %v913, %v923
  %v945 = vmul.f32 %v914, %v931
  %v946 = vmul.f32 %v915, %v932
  %v947 = vmul.f32 %v916, %v933
  %v948 = vmul.f32 %v917, %v929
  %s949 = scalar_lea.vmem %s1, 40
  %v950 = vld [vmem:[%s949] sm:$0xf]
  %v951 = vld [vmem:[%s949 + $0x4] sm:$0xf]
  %v952 = vpack.c.bf16 %v944, %v939
  %v953 = vpack.c.bf16 %v945, %v940
  %v954 = vpack.c.bf16 %v946, %v941
  %v955 = vpack.c.bf16 %v947, %v942
  %v956 = vpack.c.bf16 %v948, %v943
  %v959 = vunpack.c.l.b16 %v950
  %v960 = vunpack.c.l.b16 %v951
  %v961 = vpack.c.b16 %v960, %v959
  %967 = vrot.lane.b32.xlu0 %v952, 127
  %v968 = vpop.permute.xlu0 %967
  %969 = vrot.lane.b32.xlu0 %v953, 127
  %v970 = vpop.permute.xlu0 %969
  %971 = vrot.lane.b32.xlu0 %v954, 127
  %v972 = vpop.permute.xlu0 %971
  %973 = vrot.lane.b32.xlu0 %v955, 127
  %v974 = vpop.permute.xlu0 %973
  %975 = vrot.lane.b32.xlu0 %v956, 127
  %v976 = vpop.permute.xlu0 %975
  %vm977 = vcmask 1039360
  %v978 = vsel %vm977, %v968, %v970
  %v979 = vsel %vm977, %v970, %v972
  %v980 = vsel %vm977, %v972, %v974
  %v981 = vsel %vm977, %v974, %v976
  %v987 = vsel %vm261, %v961, 0
  %989 = vmatprep.subr.bf16.mxu0 0
  %990 = vmatpush1.bf16.msra.mxu0 0
  %991 = vmatprep.subr.bf16.mxu0 0
  %992 = vmatpush1.bf16.msra.mxu0 0
  %993 = vmatprep.subr.bf16.mxu0 0
  %994 = vmatpush1.bf16.msra.mxu0 0
  %995 = vmatprep.subr.bf16.mxu0 0
  %996 = vmatpush1.bf16.msra.mxu0 0
  %997 = vmatprep.subr.bf16.mxu0 0
  %998 = vmatpush1.bf16.msra.mxu0 0
  %999 = vmatprep.subr.bf16.mxu0 0
  %1000 = vmatpush1.bf16.msra.mxu0 0
  %1001 = vmatprep.subr.bf16.mxu0 0
  %1002 = vmatpush1.bf16.msra.mxu0 0
  %1003 = vmatprep.subr.bf16.mxu0 %v979
  %1004 = vmatpush1.bf16.msra.mxu0 %v978
  %1005 = vmatprep.subr.bf16.mxu0 0
  %1006 = vmatpush2.bf16.msra.mxu0 0
  %1007 = vmatprep.subr.bf16.mxu0 0
  %1008 = vmatpush2.bf16.msra.mxu0 0
  %1009 = vmatprep.subr.bf16.mxu0 0
  %1010 = vmatpush2.bf16.msra.mxu0 0
  %1011 = vmatprep.subr.bf16.mxu0 0
  %1012 = vmatpush2.bf16.msra.mxu0 0
  %1013 = vmatprep.subr.bf16.mxu0 0
  %1014 = vmatpush2.bf16.msra.mxu0 0
  %1015 = vmatprep.subr.bf16.mxu0 0
  %1016 = vmatpush2.bf16.msra.mxu0 0
  %1017 = vmatprep.subr.bf16.mxu0 0
  %1018 = vmatpush2.bf16.msra.mxu0 0
  %1019 = vmatprep.subr.bf16.mxu0 0
  %1020 = vmatpush2.bf16.msra.mxu0 0
  %1021 = vmatprep.mubr.bf16.mxu0 0
  %1022 = vmatmul.mubr.bf16.gmra.mxu0 %v987
  %v1023 = vpop.f32.mrf.mxu0
  %v1024 = vadd.f32 0.0, %v1023
  %v1025 = vpop.f32.mrf.mxu0
  %v1026 = vadd.f32 0.0, %v1025
  %v1027 = vpop.f32.mrf.mxu0
  %v1028 = vadd.f32 0.0, %v1027
  %v1029 = vpop.f32.mrf.mxu0
  %v1030 = vadd.f32 0.0, %v1029
  %1031 = vdwg.mxu0
  %1032 = vmatprep.subr.bf16.mxu0 0
  %1033 = vmatpush1.bf16.msra.mxu0 0
  %1034 = vmatprep.subr.bf16.mxu0 0
  %1035 = vmatpush1.bf16.msra.mxu0 0
  %1036 = vmatprep.subr.bf16.mxu0 0
  %1037 = vmatpush1.bf16.msra.mxu0 0
  %1038 = vmatprep.subr.bf16.mxu0 0
  %1039 = vmatpush1.bf16.msra.mxu0 0
  %1040 = vmatprep.subr.bf16.mxu0 0
  %1041 = vmatpush1.bf16.msra.mxu0 0
  %1042 = vmatprep.subr.bf16.mxu0 0
  %1043 = vmatpush1.bf16.msra.mxu0 0
  %1044 = vmatprep.subr.bf16.mxu0 0
  %1045 = vmatpush1.bf16.msra.mxu0 0
  %1046 = vmatprep.subr.bf16.mxu0 %v981
  %1047 = vmatpush1.bf16.msra.mxu0 %v980
  %1048 = vmatprep.subr.bf16.mxu0 0
  %1049 = vmatpush2.bf16.msra.mxu0 0
  %1050 = vmatprep.subr.bf16.mxu0 0
  %1051 = vmatpush2.bf16.msra.mxu0 0
  %1052 = vmatprep.subr.bf16.mxu0 0
  %1053 = vmatpush2.bf16.msra.mxu0 0
  %1054 = vmatprep.subr.bf16.mxu0 0
  %1055 = vmatpush2.bf16.msra.mxu0 0
  %1056 = vmatprep.subr.bf16.mxu0 0
  %1057 = vmatpush2.bf16.msra.mxu0 0
  %1058 = vmatprep.subr.bf16.mxu0 0
  %1059 = vmatpush2.bf16.msra.mxu0 0
  %1060 = vmatprep.subr.bf16.mxu0 0
  %1061 = vmatpush2.bf16.msra.mxu0 0
  %1062 = vmatprep.subr.bf16.mxu0 0
  %1063 = vmatpush2.bf16.msra.mxu0 0
  %1064 = vmatprep.mubr.bf16.mxu0 0
  %1065 = vmatmul.mubr.bf16.gmra.mxu0 %v987
  %v1066 = vpop.f32.mrf.mxu0
  %v1067 = vadd.f32 0.0, %v1066
  %v1068 = vpop.f32.mrf.mxu0
  %v1069 = vadd.f32 0.0, %v1068
  %v1070 = vpop.f32.mrf.mxu0
  %v1071 = vadd.f32 0.0, %v1070
  %v1072 = vpop.f32.mrf.mxu0
  %v1073 = vadd.f32 0.0, %v1072
  %1074 = vdwg.mxu0
  %v1075 = vadd.f32 %v900, %v1024
  %v1076 = vadd.f32 %v901, %v1026
  %v1077 = vadd.f32 %v902, %v1067
  %v1078 = vadd.f32 %v903, %v1069
  %v1079 = vadd.f32 %v904, %v1028
  %v1080 = vadd.f32 %v905, %v1030
  %v1081 = vadd.f32 %v906, %v1071
  %v1082 = vadd.f32 %v907, %v1073
  %1087 = vrot.lane.b32.xlu0 %v101, 15
  %v1088 = vpop.permute.xlu0 %1087
  %1089 = vrot.lane.b32.xlu0 %v102, 15
  %v1090 = vpop.permute.xlu0 %1089
  %1091 = vrot.lane.b32.xlu0 %v103, 15
  %v1092 = vpop.permute.xlu0 %1091
  %1093 = vrot.lane.b32.xlu0 %v104, 15
  %v1094 = vpop.permute.xlu0 %1093
  %vm1095 = vcmask 121856
  %v1096 = vsel %vm1095, %v1088, %v1090
  %v1097 = vsel %vm1095, %v1090, %v1092
  %v1098 = vsel %vm1095, %v1092, %v1094
  %v1104 = vmul.f32 %v908, %v1088
  %v1105 = vmul.f32 %v909, %v1096
  %v1106 = vmul.f32 %v910, %v1097
  %v1107 = vmul.f32 %v911, %v1098
  %v1108 = vmul.f32 %v912, %v1094
  %v1109 = vmul.f32 %v913, %v1088
  %v1110 = vmul.f32 %v914, %v1096
  %v1111 = vmul.f32 %v915, %v1097
  %v1112 = vmul.f32 %v916, %v1098
  %v1113 = vmul.f32 %v917, %v1094
  %s1114 = scalar_lea.vmem %s1, 48
  %v1115 = vld [vmem:[%s1114] sm:$0xf]
  %v1116 = vld [vmem:[%s1114 + $0x4] sm:$0xf]
  %v1117 = vpack.c.bf16 %v1109, %v1104
  %v1118 = vpack.c.bf16 %v1110, %v1105
  %v1119 = vpack.c.bf16 %v1111, %v1106
  %v1120 = vpack.c.bf16 %v1112, %v1107
  %v1121 = vpack.c.bf16 %v1113, %v1108
  %v1124 = vunpack.c.l.b16 %v1115
  %v1125 = vunpack.c.l.b16 %v1116
  %v1126 = vpack.c.b16 %v1125, %v1124
  %1132 = vrot.lane.b32.xlu0 %v1117, 113
  %v1133 = vpop.permute.xlu0 %1132
  %1134 = vrot.lane.b32.xlu0 %v1118, 113
  %v1135 = vpop.permute.xlu0 %1134
  %1136 = vrot.lane.b32.xlu0 %v1119, 113
  %v1137 = vpop.permute.xlu0 %1136
  %1138 = vrot.lane.b32.xlu0 %v1120, 113
  %v1139 = vpop.permute.xlu0 %1138
  %1140 = vrot.lane.b32.xlu0 %v1121, 113
  %v1141 = vpop.permute.xlu0 %1140
  %vm1142 = vcmask 924672
  %v1143 = vsel %vm1142, %v1133, %v1135
  %v1144 = vsel %vm1142, %v1135, %v1137
  %v1145 = vsel %vm1142, %v1137, %v1139
  %v1146 = vsel %vm1142, %v1139, %v1141
  %v1152 = vsel %vm261, %v1126, 0
  %1154 = vmatprep.subr.bf16.mxu0 0
  %1155 = vmatpush1.bf16.msra.mxu0 0
  %1156 = vmatprep.subr.bf16.mxu0 0
  %1157 = vmatpush1.bf16.msra.mxu0 0
  %1158 = vmatprep.subr.bf16.mxu0 0
  %1159 = vmatpush1.bf16.msra.mxu0 0
  %1160 = vmatprep.subr.bf16.mxu0 0
  %1161 = vmatpush1.bf16.msra.mxu0 0
  %1162 = vmatprep.subr.bf16.mxu0 0
  %1163 = vmatpush1.bf16.msra.mxu0 0
  %1164 = vmatprep.subr.bf16.mxu0 0
  %1165 = vmatpush1.bf16.msra.mxu0 0
  %1166 = vmatprep.subr.bf16.mxu0 0
  %1167 = vmatpush1.bf16.msra.mxu0 0
  %1168 = vmatprep.subr.bf16.mxu0 %v1144
  %1169 = vmatpush1.bf16.msra.mxu0 %v1143
  %1170 = vmatprep.subr.bf16.mxu0 0
  %1171 = vmatpush2.bf16.msra.mxu0 0
  %1172 = vmatprep.subr.bf16.mxu0 0
  %1173 = vmatpush2.bf16.msra.mxu0 0
  %1174 = vmatprep.subr.bf16.mxu0 0
  %1175 = vmatpush2.bf16.msra.mxu0 0
  %1176 = vmatprep.subr.bf16.mxu0 0
  %1177 = vmatpush2.bf16.msra.mxu0 0
  %1178 = vmatprep.subr.bf16.mxu0 0
  %1179 = vmatpush2.bf16.msra.mxu0 0
  %1180 = vmatprep.subr.bf16.mxu0 0
  %1181 = vmatpush2.bf16.msra.mxu0 0
  %1182 = vmatprep.subr.bf16.mxu0 0
  %1183 = vmatpush2.bf16.msra.mxu0 0
  %1184 = vmatprep.subr.bf16.mxu0 0
  %1185 = vmatpush2.bf16.msra.mxu0 0
  %1186 = vmatprep.mubr.bf16.mxu0 0
  %1187 = vmatmul.mubr.bf16.gmra.mxu0 %v1152
  %v1188 = vpop.f32.mrf.mxu0
  %v1189 = vadd.f32 0.0, %v1188
  %v1190 = vpop.f32.mrf.mxu0
  %v1191 = vadd.f32 0.0, %v1190
  %v1192 = vpop.f32.mrf.mxu0
  %v1193 = vadd.f32 0.0, %v1192
  %v1194 = vpop.f32.mrf.mxu0
  %v1195 = vadd.f32 0.0, %v1194
  %1196 = vdwg.mxu0
  %1197 = vmatprep.subr.bf16.mxu0 0
  %1198 = vmatpush1.bf16.msra.mxu0 0
  %1199 = vmatprep.subr.bf16.mxu0 0
  %1200 = vmatpush1.bf16.msra.mxu0 0
  %1201 = vmatprep.subr.bf16.mxu0 0
  %1202 = vmatpush1.bf16.msra.mxu0 0
  %1203 = vmatprep.subr.bf16.mxu0 0
  %1204 = vmatpush1.bf16.msra.mxu0 0
  %1205 = vmatprep.subr.bf16.mxu0 0
  %1206 = vmatpush1.bf16.msra.mxu0 0
  %1207 = vmatprep.subr.bf16.mxu0 0
  %1208 = vmatpush1.bf16.msra.mxu0 0
  %1209 = vmatprep.subr.bf16.mxu0 0
  %1210 = vmatpush1.bf16.msra.mxu0 0
  %1211 = vmatprep.subr.bf16.mxu0 %v1146
  %1212 = vmatpush1.bf16.msra.mxu0 %v1145
  %1213 = vmatprep.subr.bf16.mxu0 0
  %1214 = vmatpush2.bf16.msra.mxu0 0
  %1215 = vmatprep.subr.bf16.mxu0 0
  %1216 = vmatpush2.bf16.msra.mxu0 0
  %1217 = vmatprep.subr.bf16.mxu0 0
  %1218 = vmatpush2.bf16.msra.mxu0 0
  %1219 = vmatprep.subr.bf16.mxu0 0
  %1220 = vmatpush2.bf16.msra.mxu0 0
  %1221 = vmatprep.subr.bf16.mxu0 0
  %1222 = vmatpush2.bf16.msra.mxu0 0
  %1223 = vmatprep.subr.bf16.mxu0 0
  %1224 = vmatpush2.bf16.msra.mxu0 0
  %1225 = vmatprep.subr.bf16.mxu0 0
  %1226 = vmatpush2.bf16.msra.mxu0 0
  %1227 = vmatprep.subr.bf16.mxu0 0
  %1228 = vmatpush2.bf16.msra.mxu0 0
  %1229 = vmatprep.mubr.bf16.mxu0 0
  %1230 = vmatmul.mubr.bf16.gmra.mxu0 %v1152
  %v1231 = vpop.f32.mrf.mxu0
  %v1232 = vadd.f32 0.0, %v1231
  %v1233 = vpop.f32.mrf.mxu0
  %v1234 = vadd.f32 0.0, %v1233
  %v1235 = vpop.f32.mrf.mxu0
  %v1236 = vadd.f32 0.0, %v1235
  %v1237 = vpop.f32.mrf.mxu0
  %v1238 = vadd.f32 0.0, %v1237
  %1239 = vdwg.mxu0
  %v1240 = vadd.f32 %v1075, %v1189
  %v1241 = vadd.f32 %v1076, %v1191
  %v1242 = vadd.f32 %v1077, %v1232
  %v1243 = vadd.f32 %v1078, %v1234
  %v1244 = vadd.f32 %v1079, %v1193
  %v1245 = vadd.f32 %v1080, %v1195
  %v1246 = vadd.f32 %v1081, %v1236
  %v1247 = vadd.f32 %v1082, %v1238
  %1252 = vrot.lane.b32.xlu0 %v105, 16
  %v1253 = vpop.permute.xlu0 %1252
  %1254 = vrot.lane.b32.xlu0 %v106, 16
  %v1255 = vpop.permute.xlu0 %1254
  %1256 = vrot.lane.b32.xlu0 %v107, 16
  %v1257 = vpop.permute.xlu0 %1256
  %1258 = vrot.lane.b32.xlu0 %v108, 16
  %v1259 = vpop.permute.xlu0 %1258
  %v1260 = vsel %vm261, %v1253, %v1255
  %v1261 = vsel %vm261, %v1255, %v1257
  %v1262 = vsel %vm261, %v1257, %v1259
  %v1268 = vmul.f32 %v908, %v1253
  %v1269 = vmul.f32 %v909, %v1260
  %v1270 = vmul.f32 %v910, %v1261
  %v1271 = vmul.f32 %v911, %v1262
  %v1272 = vmul.f32 %v912, %v1259
  %v1273 = vmul.f32 %v913, %v1253
  %v1274 = vmul.f32 %v914, %v1260
  %v1275 = vmul.f32 %v915, %v1261
  %v1276 = vmul.f32 %v916, %v1262
  %v1277 = vmul.f32 %v917, %v1259
  %s1278 = scalar_lea.vmem %s1, 56
  %v1279 = vld [vmem:[%s1278] sm:$0xf]
  %v1280 = vld [vmem:[%s1278 + $0x4] sm:$0xf]
  %v1281 = vpack.c.bf16 %v1273, %v1268
  %v1282 = vpack.c.bf16 %v1274, %v1269
  %v1283 = vpack.c.bf16 %v1275, %v1270
  %v1284 = vpack.c.bf16 %v1276, %v1271
  %v1285 = vpack.c.bf16 %v1277, %v1272
  %v1288 = vunpack.c.l.b16 %v1279
  %v1289 = vunpack.c.l.b16 %v1280
  %v1290 = vpack.c.b16 %v1289, %v1288
  %1296 = vrot.lane.b32.xlu0 %v1281, 112
  %v1297 = vpop.permute.xlu0 %1296
  %1298 = vrot.lane.b32.xlu0 %v1282, 112
  %v1299 = vpop.permute.xlu0 %1298
  %1300 = vrot.lane.b32.xlu0 %v1283, 112
  %v1301 = vpop.permute.xlu0 %1300
  %1302 = vrot.lane.b32.xlu0 %v1284, 112
  %v1303 = vpop.permute.xlu0 %1302
  %1304 = vrot.lane.b32.xlu0 %v1285, 112
  %v1305 = vpop.permute.xlu0 %1304
  %vm1306 = vcmask 916480
  %v1307 = vsel %vm1306, %v1297, %v1299
  %v1308 = vsel %vm1306, %v1299, %v1301
  %v1309 = vsel %vm1306, %v1301, %v1303
  %v1310 = vsel %vm1306, %v1303, %v1305
  %v1316 = vsel %vm261, %v1290, 0
  %1318 = vmatprep.subr.bf16.mxu0 0
  %1319 = vmatpush1.bf16.msra.mxu0 0
  %1320 = vmatprep.subr.bf16.mxu0 0
  %1321 = vmatpush1.bf16.msra.mxu0 0
  %1322 = vmatprep.subr.bf16.mxu0 0
  %1323 = vmatpush1.bf16.msra.mxu0 0
  %1324 = vmatprep.subr.bf16.mxu0 0
  %1325 = vmatpush1.bf16.msra.mxu0 0
  %1326 = vmatprep.subr.bf16.mxu0 0
  %1327 = vmatpush1.bf16.msra.mxu0 0
  %1328 = vmatprep.subr.bf16.mxu0 0
  %1329 = vmatpush1.bf16.msra.mxu0 0
  %1330 = vmatprep.subr.bf16.mxu0 0
  %1331 = vmatpush1.bf16.msra.mxu0 0
  %1332 = vmatprep.subr.bf16.mxu0 %v1308
  %1333 = vmatpush1.bf16.msra.mxu0 %v1307
  %1334 = vmatprep.subr.bf16.mxu0 0
  %1335 = vmatpush2.bf16.msra.mxu0 0
  %1336 = vmatprep.subr.bf16.mxu0 0
  %1337 = vmatpush2.bf16.msra.mxu0 0
  %1338 = vmatprep.subr.bf16.mxu0 0
  %1339 = vmatpush2.bf16.msra.mxu0 0
  %1340 = vmatprep.subr.bf16.mxu0 0
  %1341 = vmatpush2.bf16.msra.mxu0 0
  %1342 = vmatprep.subr.bf16.mxu0 0
  %1343 = vmatpush2.bf16.msra.mxu0 0
  %1344 = vmatprep.subr.bf16.mxu0 0
  %1345 = vmatpush2.bf16.msra.mxu0 0
  %1346 = vmatprep.subr.bf16.mxu0 0
  %1347 = vmatpush2.bf16.msra.mxu0 0
  %1348 = vmatprep.subr.bf16.mxu0 0
  %1349 = vmatpush2.bf16.msra.mxu0 0
  %1350 = vmatprep.mubr.bf16.mxu0 0
  %1351 = vmatmul.mubr.bf16.gmra.mxu0 %v1316
  %v1352 = vpop.f32.mrf.mxu0
  %v1353 = vadd.f32 0.0, %v1352
  %v1354 = vpop.f32.mrf.mxu0
  %v1355 = vadd.f32 0.0, %v1354
  %v1356 = vpop.f32.mrf.mxu0
  %v1357 = vadd.f32 0.0, %v1356
  %v1358 = vpop.f32.mrf.mxu0
  %v1359 = vadd.f32 0.0, %v1358
  %1360 = vdwg.mxu0
  %1361 = vmatprep.subr.bf16.mxu0 0
  %1362 = vmatpush1.bf16.msra.mxu0 0
  %1363 = vmatprep.subr.bf16.mxu0 0
  %1364 = vmatpush1.bf16.msra.mxu0 0
  %1365 = vmatprep.subr.bf16.mxu0 0
  %1366 = vmatpush1.bf16.msra.mxu0 0
  %1367 = vmatprep.subr.bf16.mxu0 0
  %1368 = vmatpush1.bf16.msra.mxu0 0
  %1369 = vmatprep.subr.bf16.mxu0 0
  %1370 = vmatpush1.bf16.msra.mxu0 0
  %1371 = vmatprep.subr.bf16.mxu0 0
  %1372 = vmatpush1.bf16.msra.mxu0 0
  %1373 = vmatprep.subr.bf16.mxu0 0
  %1374 = vmatpush1.bf16.msra.mxu0 0
  %1375 = vmatprep.subr.bf16.mxu0 %v1310
  %1376 = vmatpush1.bf16.msra.mxu0 %v1309
  %1377 = vmatprep.subr.bf16.mxu0 0
  %1378 = vmatpush2.bf16.msra.mxu0 0
  %1379 = vmatprep.subr.bf16.mxu0 0
  %1380 = vmatpush2.bf16.msra.mxu0 0
  %1381 = vmatprep.subr.bf16.mxu0 0
  %1382 = vmatpush2.bf16.msra.mxu0 0
  %1383 = vmatprep.subr.bf16.mxu0 0
  %1384 = vmatpush2.bf16.msra.mxu0 0
  %1385 = vmatprep.subr.bf16.mxu0 0
  %1386 = vmatpush2.bf16.msra.mxu0 0
  %1387 = vmatprep.subr.bf16.mxu0 0
  %1388 = vmatpush2.bf16.msra.mxu0 0
  %1389 = vmatprep.subr.bf16.mxu0 0
  %1390 = vmatpush2.bf16.msra.mxu0 0
  %1391 = vmatprep.subr.bf16.mxu0 0
  %1392 = vmatpush2.bf16.msra.mxu0 0
  %1393 = vmatprep.mubr.bf16.mxu0 0
  %1394 = vmatmul.mubr.bf16.gmra.mxu0 %v1316
  %v1395 = vpop.f32.mrf.mxu0
  %v1396 = vadd.f32 0.0, %v1395
  %v1397 = vpop.f32.mrf.mxu0
  %v1398 = vadd.f32 0.0, %v1397
  %v1399 = vpop.f32.mrf.mxu0
  %v1400 = vadd.f32 0.0, %v1399
  %v1401 = vpop.f32.mrf.mxu0
  %v1402 = vadd.f32 0.0, %v1401
  %1403 = vdwg.mxu0
  %v1404 = vadd.f32 %v1240, %v1353
  %v1405 = vadd.f32 %v1241, %v1355
  %v1406 = vadd.f32 %v1242, %v1396
  %v1407 = vadd.f32 %v1243, %v1398
  %v1408 = vadd.f32 %v1244, %v1357
  %v1409 = vadd.f32 %v1245, %v1359
  %v1410 = vadd.f32 %v1246, %v1400
  %v1411 = vadd.f32 %v1247, %v1402
  %1416 = vrot.lane.b32.xlu0 %v113, 17
  %v1417 = vpop.permute.xlu0 %1416
  %1418 = vrot.lane.b32.xlu0 %v114, 17
  %v1419 = vpop.permute.xlu0 %1418
  %1420 = vrot.lane.b32.xlu0 %v115, 17
  %v1421 = vpop.permute.xlu0 %1420
  %1422 = vrot.lane.b32.xlu0 %v116, 17
  %v1423 = vpop.permute.xlu0 %1422
  %vm1424 = vcmask 138240
  %v1425 = vsel %vm1424, %v1417, %v1419
  %v1426 = vsel %vm1424, %v1419, %v1421
  %v1427 = vsel %vm1424, %v1421, %v1423
  %v1433 = vmul.f32 %v908, %v1417
  %v1434 = vmul.f32 %v909, %v1425
  %v1435 = vmul.f32 %v910, %v1426
  %v1436 = vmul.f32 %v911, %v1427
  %v1437 = vmul.f32 %v912, %v1423
  %v1438 = vmul.f32 %v913, %v1417
  %v1439 = vmul.f32 %v914, %v1425
  %v1440 = vmul.f32 %v915, %v1426
  %v1441 = vmul.f32 %v916, %v1427
  %v1442 = vmul.f32 %v917, %v1423
  %s1443 = scalar_lea.vmem %s1, 64
  %v1444 = vld [vmem:[%s1443] sm:$0xf]
  %v1445 = vld [vmem:[%s1443 + $0x4] sm:$0xf]
  %v1446 = vpack.c.bf16 %v1438, %v1433
  %v1447 = vpack.c.bf16 %v1439, %v1434
  %v1448 = vpack.c.bf16 %v1440, %v1435
  %v1449 = vpack.c.bf16 %v1441, %v1436
  %v1450 = vpack.c.bf16 %v1442, %v1437
  %v1453 = vunpack.c.l.b16 %v1444
  %v1454 = vunpack.c.l.b16 %v1445
  %v1455 = vpack.c.b16 %v1454, %v1453
  %1461 = vrot.lane.b32.xlu0 %v1446, 111
  %v1462 = vpop.permute.xlu0 %1461
  %1463 = vrot.lane.b32.xlu0 %v1447, 111
  %v1464 = vpop.permute.xlu0 %1463
  %1465 = vrot.lane.b32.xlu0 %v1448, 111
  %v1466 = vpop.permute.xlu0 %1465
  %1467 = vrot.lane.b32.xlu0 %v1449, 111
  %v1468 = vpop.permute.xlu0 %1467
  %1469 = vrot.lane.b32.xlu0 %v1450, 111
  %v1470 = vpop.permute.xlu0 %1469
  %vm1471 = vcmask 908288
  %v1472 = vsel %vm1471, %v1462, %v1464
  %v1473 = vsel %vm1471, %v1464, %v1466
  %v1474 = vsel %vm1471, %v1466, %v1468
  %v1475 = vsel %vm1471, %v1468, %v1470
  %v1481 = vsel %vm261, %v1455, 0
  %1483 = vmatprep.subr.bf16.mxu0 0
  %1484 = vmatpush1.bf16.msra.mxu0 0
  %1485 = vmatprep.subr.bf16.mxu0 0
  %1486 = vmatpush1.bf16.msra.mxu0 0
  %1487 = vmatprep.subr.bf16.mxu0 0
  %1488 = vmatpush1.bf16.msra.mxu0 0
  %1489 = vmatprep.subr.bf16.mxu0 0
  %1490 = vmatpush1.bf16.msra.mxu0 0
  %1491 = vmatprep.subr.bf16.mxu0 0
  %1492 = vmatpush1.bf16.msra.mxu0 0
  %1493 = vmatprep.subr.bf16.mxu0 0
  %1494 = vmatpush1.bf16.msra.mxu0 0
  %1495 = vmatprep.subr.bf16.mxu0 0
  %1496 = vmatpush1.bf16.msra.mxu0 0
  %1497 = vmatprep.subr.bf16.mxu0 %v1473
  %1498 = vmatpush1.bf16.msra.mxu0 %v1472
  %1499 = vmatprep.subr.bf16.mxu0 0
  %1500 = vmatpush2.bf16.msra.mxu0 0
  %1501 = vmatprep.subr.bf16.mxu0 0
  %1502 = vmatpush2.bf16.msra.mxu0 0
  %1503 = vmatprep.subr.bf16.mxu0 0
  %1504 = vmatpush2.bf16.msra.mxu0 0
  %1505 = vmatprep.subr.bf16.mxu0 0
  %1506 = vmatpush2.bf16.msra.mxu0 0
  %1507 = vmatprep.subr.bf16.mxu0 0
  %1508 = vmatpush2.bf16.msra.mxu0 0
  %1509 = vmatprep.subr.bf16.mxu0 0
  %1510 = vmatpush2.bf16.msra.mxu0 0
  %1511 = vmatprep.subr.bf16.mxu0 0
  %1512 = vmatpush2.bf16.msra.mxu0 0
  %1513 = vmatprep.subr.bf16.mxu0 0
  %1514 = vmatpush2.bf16.msra.mxu0 0
  %1515 = vmatprep.mubr.bf16.mxu0 0
  %1516 = vmatmul.mubr.bf16.gmra.mxu0 %v1481
  %v1517 = vpop.f32.mrf.mxu0
  %v1518 = vadd.f32 0.0, %v1517
  %v1519 = vpop.f32.mrf.mxu0
  %v1520 = vadd.f32 0.0, %v1519
  %v1521 = vpop.f32.mrf.mxu0
  %v1522 = vadd.f32 0.0, %v1521
  %v1523 = vpop.f32.mrf.mxu0
  %v1524 = vadd.f32 0.0, %v1523
  %1525 = vdwg.mxu0
  %1526 = vmatprep.subr.bf16.mxu0 0
  %1527 = vmatpush1.bf16.msra.mxu0 0
  %1528 = vmatprep.subr.bf16.mxu0 0
  %1529 = vmatpush1.bf16.msra.mxu0 0
  %1530 = vmatprep.subr.bf16.mxu0 0
  %1531 = vmatpush1.bf16.msra.mxu0 0
  %1532 = vmatprep.subr.bf16.mxu0 0
  %1533 = vmatpush1.bf16.msra.mxu0 0
  %1534 = vmatprep.subr.bf16.mxu0 0
  %1535 = vmatpush1.bf16.msra.mxu0 0
  %1536 = vmatprep.subr.bf16.mxu0 0
  %1537 = vmatpush1.bf16.msra.mxu0 0
  %1538 = vmatprep.subr.bf16.mxu0 0
  %1539 = vmatpush1.bf16.msra.mxu0 0
  %1540 = vmatprep.subr.bf16.mxu0 %v1475
  %1541 = vmatpush1.bf16.msra.mxu0 %v1474
  %1542 = vmatprep.subr.bf16.mxu0 0
  %1543 = vmatpush2.bf16.msra.mxu0 0
  %1544 = vmatprep.subr.bf16.mxu0 0
  %1545 = vmatpush2.bf16.msra.mxu0 0
  %1546 = vmatprep.subr.bf16.mxu0 0
  %1547 = vmatpush2.bf16.msra.mxu0 0
  %1548 = vmatprep.subr.bf16.mxu0 0
  %1549 = vmatpush2.bf16.msra.mxu0 0
  %1550 = vmatprep.subr.bf16.mxu0 0
  %1551 = vmatpush2.bf16.msra.mxu0 0
  %1552 = vmatprep.subr.bf16.mxu0 0
  %1553 = vmatpush2.bf16.msra.mxu0 0
  %1554 = vmatprep.subr.bf16.mxu0 0
  %1555 = vmatpush2.bf16.msra.mxu0 0
  %1556 = vmatprep.subr.bf16.mxu0 0
  %1557 = vmatpush2.bf16.msra.mxu0 0
  %1558 = vmatprep.mubr.bf16.mxu0 0
  %1559 = vmatmul.mubr.bf16.gmra.mxu0 %v1481
  %v1560 = vpop.f32.mrf.mxu0
  %v1561 = vadd.f32 0.0, %v1560
  %v1562 = vpop.f32.mrf.mxu0
  %v1563 = vadd.f32 0.0, %v1562
  %v1564 = vpop.f32.mrf.mxu0
  %v1565 = vadd.f32 0.0, %v1564
  %v1566 = vpop.f32.mrf.mxu0
  %v1567 = vadd.f32 0.0, %v1566
  %1568 = vdwg.mxu0
  %v1569 = vadd.f32 %v1404, %v1518
  %v1570 = vadd.f32 %v1405, %v1520
  %v1571 = vadd.f32 %v1406, %v1561
  %v1572 = vadd.f32 %v1407, %v1563
  %v1573 = vadd.f32 %v1408, %v1522
  %v1574 = vadd.f32 %v1409, %v1524
  %v1575 = vadd.f32 %v1410, %v1565
  %v1576 = vadd.f32 %v1411, %v1567
  %v1577 = vadd.f32 %v1569, %v1570
  %v1578 = vadd.f32 %v1577, %v1571
  %v1579 = vadd.f32 %v1578, %v1572
  %1580 = vadd.xlane.f32.xlu0 %v1579
  %v1581 = vpop.xlane.xlu0 %1580
  %v1582 = vadd.f32 %v1573, %v1574
  %v1583 = vadd.f32 %v1582, %v1575
  %v1584 = vadd.f32 %v1583, %v1576
  %1585 = vadd.xlane.f32.xlu0 %v1584
  %v1586 = vpop.xlane.xlu0 %1585
  %v1587 = vmul.f32 %v1581, 0.001953125
  %v1588 = vmul.f32 %v1586, 0.001953125
  %v1589 = vmul.f32 %v1569, %v1569
  %v1590 = vmul.f32 %v1570, %v1570
  %v1591 = vmul.f32 %v1571, %v1571
  %v1592 = vmul.f32 %v1572, %v1572
  %v1593 = vmul.f32 %v1573, %v1573
  %v1594 = vmul.f32 %v1574, %v1574
  %v1595 = vmul.f32 %v1575, %v1575
  %v1596 = vmul.f32 %v1576, %v1576
  %v1597 = vadd.f32 %v1589, %v1590
  %v1598 = vadd.f32 %v1597, %v1591
  %v1599 = vadd.f32 %v1598, %v1592
  %1600 = vadd.xlane.f32.xlu0 %v1599
  %v1601 = vpop.xlane.xlu0 %1600
  %v1602 = vadd.f32 %v1593, %v1594
  %v1603 = vadd.f32 %v1602, %v1595
  %v1604 = vadd.f32 %v1603, %v1596
  %1605 = vadd.xlane.f32.xlu0 %v1604
  %v1606 = vpop.xlane.xlu0 %1605
  %v1607 = vmul.f32 %v1601, 0.001953125
  %v1608 = vmul.f32 %v1606, 0.001953125
  %v1609 = vmul.f32 %v1587, %v1587
  %v1610 = vmul.f32 %v1588, %v1588
  %v1611 = vsub.f32 %v1607, %v1609
  %v1612 = vsub.f32 %v1608, %v1610
  %v1613 = vld [vmem:[%s2] sm:$0xff]
  %v1614 = vld [vmem:[%s2 + $0x8] sm:$0xff]
  %v1615 = vadd.f32 %v1611, 1e-05
  %v1616 = vadd.f32 %v1612, 1e-05
  %v1617 = vrsqrt.pop %v1615
  %v1618 = vrsqrt.pop %v1616
  %v1619 = vmul.f32 %v1613, %v1617
  %v1620 = vmul.f32 %v1614, %v1618
  %v1621 = vld [vmem:[%s3] sm:$0xff]
  %v1622 = vld [vmem:[%s3 + $0x8] sm:$0xff]
  %v1623 = vmul.f32 %v1587, %v1619
  %v1624 = vmul.f32 %v1588, %v1620
  %v1625 = vsub.f32 %v1621, %v1623
  %v1626 = vsub.f32 %v1622, %v1624
  %1628 = vset.pattern.permute.xlu0 0
  %1629 = vperm.xlu0 %1628, %v1619
  %v1630 = vpop.permute.xlu0 %1629
  %1633 = vset.pattern.permute.xlu0 0
  %1634 = vperm.xlu0 %1633, %v1620
  %v1635 = vpop.permute.xlu0 %1634
  %v1637 = vmul.f32 %v1569, %v1630
  %v1638 = vmul.f32 %v1570, %v1630
  %v1639 = vmul.f32 %v1571, %v1630
  %v1640 = vmul.f32 %v1572, %v1630
  %v1641 = vmul.f32 %v1573, %v1635
  %v1642 = vmul.f32 %v1574, %v1635
  %v1643 = vmul.f32 %v1575, %v1635
  %v1644 = vmul.f32 %v1576, %v1635
  %1646 = vset.pattern.permute.xlu0 0
  %1647 = vperm.xlu0 %1646, %v1625
  %v1648 = vpop.permute.xlu0 %1647
  %1651 = vset.pattern.permute.xlu0 0
  %1652 = vperm.xlu0 %1651, %v1626
  %v1653 = vpop.permute.xlu0 %1652
  %v1655 = vadd.f32 %v1637, %v1648
  %v1656 = vadd.f32 %v1638, %v1648
  %v1657 = vadd.f32 %v1639, %v1648
  %v1658 = vadd.f32 %v1640, %v1648
  %v1659 = vadd.f32 %v1641, %v1653
  %v1660 = vadd.f32 %v1642, %v1653
  %v1661 = vadd.f32 %v1643, %v1653
  %v1662 = vadd.f32 %v1644, %v1653
  %vm1663 = vcmp.gt.f32.partialorder %v1655, 0.0
  %vm1664 = vcmp.gt.f32.partialorder %v1656, 0.0
  %vm1665 = vcmp.gt.f32.partialorder %v1657, 0.0
  %vm1666 = vcmp.gt.f32.partialorder %v1658, 0.0
  %vm1667 = vcmp.gt.f32.partialorder %v1659, 0.0
  %vm1668 = vcmp.gt.f32.partialorder %v1660, 0.0
  %vm1669 = vcmp.gt.f32.partialorder %v1661, 0.0
  %vm1670 = vcmp.gt.f32.partialorder %v1662, 0.0
  %v1671 = vmul.f32 %v1655, 0.25
  %v1672 = vmul.f32 %v1656, 0.25
  %v1673 = vmul.f32 %v1657, 0.25
  %v1674 = vmul.f32 %v1658, 0.25
  %v1675 = vmul.f32 %v1659, 0.25
  %v1676 = vmul.f32 %v1660, 0.25
  %v1677 = vmul.f32 %v1661, 0.25
  %v1678 = vmul.f32 %v1662, 0.25
  %v1679 = vsel %vm1663, %v1655, %v1671
  %v1680 = vsel %vm1664, %v1656, %v1672
  %v1681 = vsel %vm1665, %v1657, %v1673
  %v1682 = vsel %vm1666, %v1658, %v1674
  %v1683 = vsel %vm1667, %v1659, %v1675
  %v1684 = vsel %vm1668, %v1660, %v1676
  %v1685 = vsel %vm1669, %v1661, %v1677
  %v1686 = vsel %vm1670, %v1662, %v1678
  %1687 = vst [vmem:[%s10] sm:$0xff] %v1679
  %1688 = vst [vmem:[%s10 + $0x8] sm:$0xff] %v1680
  %1689 = vst [vmem:[%s10 + $0x10] sm:$0xff] %v1681
  %1690 = vst [vmem:[%s10 + $0x18] sm:$0xff] %v1682
  %1691 = vst [vmem:[%s10 + $0x20] sm:$0xff] %v1683
  %1692 = vst [vmem:[%s10 + $0x28] sm:$0xff] %v1684
  %1693 = vst [vmem:[%s10 + $0x30] sm:$0xff] %v1685
  %1694 = vst [vmem:[%s10 + $0x38] sm:$0xff] %v1686
  %1695 = vst [vmem:[#allocation2 + $0x8] sm:$0xff] %v1679
  %1696 = vst [vmem:[#allocation2 + $0x10] sm:$0xff] %v1680
  %1697 = vst [vmem:[#allocation2 + $0x18] sm:$0xff] %v1681
  %1698 = vst [vmem:[#allocation2 + $0x20] sm:$0xff] %v1682
  %1699 = vst [vmem:[#allocation2 + $0x38] sm:$0xff] %v1683
  %1700 = vst [vmem:[#allocation2 + $0x40] sm:$0xff] %v1684
  %1701 = vst [vmem:[#allocation2 + $0x48] sm:$0xff] %v1685
  %1702 = vst [vmem:[#allocation2 + $0x50] sm:$0xff] %v1686
  %v1703 = vld [vmem:[#allocation2] sm:$0xff]
  %v1704 = vld [vmem:[#allocation2 + $0x8] sm:$0xff]
  %v1705 = vld [vmem:[#allocation2 + $0x10] sm:$0xff]
  %v1706 = vld [vmem:[#allocation2 + $0x18] sm:$0xff]
  %v1707 = vld [vmem:[#allocation2 + $0x20] sm:$0xff]
  %v1708 = vld [vmem:[#allocation2 + $0x30] sm:$0xff]
  %v1709 = vld [vmem:[#allocation2 + $0x38] sm:$0xff]
  %v1710 = vld [vmem:[#allocation2 + $0x40] sm:$0xff]
  %v1711 = vld [vmem:[#allocation2 + $0x48] sm:$0xff]
  %v1712 = vld [vmem:[#allocation2 + $0x50] sm:$0xff]
  %v1713 = vmul.f32 %v1703, %v160
  %v1714 = vmul.f32 %v1704, %v168
  %v1715 = vmul.f32 %v1705, %v169
  %v1716 = vmul.f32 %v1706, %v170
  %v1717 = vmul.f32 %v1707, %v166
  %v1718 = vmul.f32 %v1708, %v160
  %v1719 = vmul.f32 %v1709, %v168
  %v1720 = vmul.f32 %v1710, %v169
  %v1721 = vmul.f32 %v1711, %v170
  %v1722 = vmul.f32 %v1712, %v166
  %v1723 = vld [vmem:[%s4] sm:$0xf]
  %v1724 = vld [vmem:[%s4 + $0x4] sm:$0xf]
  %v1725 = vpack.c.bf16 %v1718, %v1713
  %v1726 = vpack.c.bf16 %v1719, %v1714
  %v1727 = vpack.c.bf16 %v1720, %v1715
  %v1728 = vpack.c.bf16 %v1721, %v1716
  %v1729 = vpack.c.bf16 %v1722, %v1717
  %v1730 = vmul.f32 %v1703, %v198
  %v1731 = vmul.f32 %v1704, %v206
  %v1732 = vmul.f32 %v1705, %v207
  %v1733 = vmul.f32 %v1706, %v208
  %v1734 = vmul.f32 %v1707, %v204
  %v1735 = vmul.f32 %v1708, %v198
  %v1736 = vmul.f32 %v1709, %v206
  %v1737 = vmul.f32 %v1710, %v207
  %v1738 = vmul.f32 %v1711, %v208
  %v1739 = vmul.f32 %v1712, %v204
  %s1740 = scalar_lea.vmem %s4, 8
  %v1741 = vld [vmem:[%s1740] sm:$0xf]
  %v1742 = vld [vmem:[%s1740 + $0x4] sm:$0xf]
  %v1743 = vpack.c.bf16 %v1735, %v1730
  %v1744 = vpack.c.bf16 %v1736, %v1731
  %v1745 = vpack.c.bf16 %v1737, %v1732
  %v1746 = vpack.c.bf16 %v1738, %v1733
  %v1747 = vpack.c.bf16 %v1739, %v1734
  %v1750 = vunpack.c.l.b16 %v1741
  %v1751 = vunpack.c.l.b16 %v1742
  %v1752 = vpack.c.b16 %v1751, %v1750
  %1758 = vrot.lane.b32.xlu0 %v1743, 16
  %v1759 = vpop.permute.xlu0 %1758
  %1760 = vrot.lane.b32.xlu0 %v1744, 16
  %v1761 = vpop.permute.xlu0 %1760
  %1762 = vrot.lane.b32.xlu0 %v1745, 16
  %v1763 = vpop.permute.xlu0 %1762
  %1764 = vrot.lane.b32.xlu0 %v1746, 16
  %v1765 = vpop.permute.xlu0 %1764
  %1766 = vrot.lane.b32.xlu0 %v1747, 16
  %v1767 = vpop.permute.xlu0 %1766
  %v1768 = vsel %vm252, %v1759, %v1761
  %v1769 = vsel %vm252, %v1761, %v1763
  %v1770 = vsel %vm252, %v1763, %v1765
  %v1771 = vsel %vm252, %v1765, %v1767
  %v1777 = vsel %vm261, %v1752, 0
  %1779 = vmatprep.subr.bf16.mxu0 0
  %1780 = vmatpush1.bf16.msra.mxu0 0
  %1781 = vmatprep.subr.bf16.mxu0 0
  %1782 = vmatpush1.bf16.msra.mxu0 0
  %1783 = vmatprep.subr.bf16.mxu0 0
  %1784 = vmatpush1.bf16.msra.mxu0 0
  %1785 = vmatprep.subr.bf16.mxu0 0
  %1786 = vmatpush1.bf16.msra.mxu0 0
  %1787 = vmatprep.subr.bf16.mxu0 0
  %1788 = vmatpush1.bf16.msra.mxu0 0
  %1789 = vmatprep.subr.bf16.mxu0 0
  %1790 = vmatpush1.bf16.msra.mxu0 0
  %1791 = vmatprep.subr.bf16.mxu0 0
  %1792 = vmatpush1.bf16.msra.mxu0 0
  %1793 = vmatprep.subr.bf16.mxu0 %v1769
  %1794 = vmatpush1.bf16.msra.mxu0 %v1768
  %1795 = vmatprep.subr.bf16.mxu0 0
  %1796 = vmatpush2.bf16.msra.mxu0 0
  %1797 = vmatprep.subr.bf16.mxu0 0
  %1798 = vmatpush2.bf16.msra.mxu0 0
  %1799 = vmatprep.subr.bf16.mxu0 0
  %1800 = vmatpush2.bf16.msra.mxu0 0
  %1801 = vmatprep.subr.bf16.mxu0 0
  %1802 = vmatpush2.bf16.msra.mxu0 0
  %1803 = vmatprep.subr.bf16.mxu0 0
  %1804 = vmatpush2.bf16.msra.mxu0 0
  %1805 = vmatprep.subr.bf16.mxu0 0
  %1806 = vmatpush2.bf16.msra.mxu0 0
  %1807 = vmatprep.subr.bf16.mxu0 0
  %1808 = vmatpush2.bf16.msra.mxu0 0
  %1809 = vmatprep.subr.bf16.mxu0 0
  %1810 = vmatpush2.bf16.msra.mxu0 0
  %1811 = vmatprep.mubr.bf16.mxu0 0
  %1812 = vmatmul.mubr.bf16.gmra.mxu0 %v1777
  %v1813 = vpop.f32.mrf.mxu0
  %v1814 = vadd.f32 0.0, %v1813
  %v1815 = vpop.f32.mrf.mxu0
  %v1816 = vadd.f32 0.0, %v1815
  %v1817 = vpop.f32.mrf.mxu0
  %v1818 = vadd.f32 0.0, %v1817
  %v1819 = vpop.f32.mrf.mxu0
  %v1820 = vadd.f32 0.0, %v1819
  %1821 = vdwg.mxu0
  %1822 = vmatprep.subr.bf16.mxu0 0
  %1823 = vmatpush1.bf16.msra.mxu0 0
  %1824 = vmatprep.subr.bf16.mxu0 0
  %1825 = vmatpush1.bf16.msra.mxu0 0
  %1826 = vmatprep.subr.bf16.mxu0 0
  %1827 = vmatpush1.bf16.msra.mxu0 0
  %1828 = vmatprep.subr.bf16.mxu0 0
  %1829 = vmatpush1.bf16.msra.mxu0 0
  %1830 = vmatprep.subr.bf16.mxu0 0
  %1831 = vmatpush1.bf16.msra.mxu0 0
  %1832 = vmatprep.subr.bf16.mxu0 0
  %1833 = vmatpush1.bf16.msra.mxu0 0
  %1834 = vmatprep.subr.bf16.mxu0 0
  %1835 = vmatpush1.bf16.msra.mxu0 0
  %1836 = vmatprep.subr.bf16.mxu0 %v1771
  %1837 = vmatpush1.bf16.msra.mxu0 %v1770
  %1838 = vmatprep.subr.bf16.mxu0 0
  %1839 = vmatpush2.bf16.msra.mxu0 0
  %1840 = vmatprep.subr.bf16.mxu0 0
  %1841 = vmatpush2.bf16.msra.mxu0 0
  %1842 = vmatprep.subr.bf16.mxu0 0
  %1843 = vmatpush2.bf16.msra.mxu0 0
  %1844 = vmatprep.subr.bf16.mxu0 0
  %1845 = vmatpush2.bf16.msra.mxu0 0
  %1846 = vmatprep.subr.bf16.mxu0 0
  %1847 = vmatpush2.bf16.msra.mxu0 0
  %1848 = vmatprep.subr.bf16.mxu0 0
  %1849 = vmatpush2.bf16.msra.mxu0 0
  %1850 = vmatprep.subr.bf16.mxu0 0
  %1851 = vmatpush2.bf16.msra.mxu0 0
  %1852 = vmatprep.subr.bf16.mxu0 0
  %1853 = vmatpush2.bf16.msra.mxu0 0
  %1854 = vmatprep.mubr.bf16.mxu0 0
  %1855 = vmatmul.mubr.bf16.gmra.mxu0 %v1777
  %v1856 = vpop.f32.mrf.mxu0
  %v1857 = vadd.f32 0.0, %v1856
  %v1858 = vpop.f32.mrf.mxu0
  %v1859 = vadd.f32 0.0, %v1858
  %v1860 = vpop.f32.mrf.mxu0
  %v1861 = vadd.f32 0.0, %v1860
  %v1862 = vpop.f32.mrf.mxu0
  %v1863 = vadd.f32 0.0, %v1862
  %1864 = vdwg.mxu0
  %v1867 = vunpack.c.l.b16 %v1723
  %v1868 = vunpack.c.l.b16 %v1724
  %v1869 = vpack.c.b16 %v1868, %v1867
  %1875 = vrot.lane.b32.xlu0 %v1725, 17
  %v1876 = vpop.permute.xlu0 %1875
  %1877 = vrot.lane.b32.xlu0 %v1726, 17
  %v1878 = vpop.permute.xlu0 %1877
  %1879 = vrot.lane.b32.xlu0 %v1727, 17
  %v1880 = vpop.permute.xlu0 %1879
  %1881 = vrot.lane.b32.xlu0 %v1728, 17
  %v1882 = vpop.permute.xlu0 %1881
  %1883 = vrot.lane.b32.xlu0 %v1729, 17
  %v1884 = vpop.permute.xlu0 %1883
  %v1885 = vsel %vm371, %v1876, %v1878
  %v1886 = vsel %vm371, %v1878, %v1880
  %v1887 = vsel %vm371, %v1880, %v1882
  %v1888 = vsel %vm371, %v1882, %v1884
  %v1894 = vsel %vm261, %v1869, 0
  %1896 = vmatprep.subr.bf16.mxu0 0
  %1897 = vmatpush1.bf16.msra.mxu0 0
  %1898 = vmatprep.subr.bf16.mxu0 0
  %1899 = vmatpush1.bf16.msra.mxu0 0
  %1900 = vmatprep.subr.bf16.mxu0 0
  %1901 = vmatpush1.bf16.msra.mxu0 0
  %1902 = vmatprep.subr.bf16.mxu0 0
  %1903 = vmatpush1.bf16.msra.mxu0 0
  %1904 = vmatprep.subr.bf16.mxu0 0
  %1905 = vmatpush1.bf16.msra.mxu0 0
  %1906 = vmatprep.subr.bf16.mxu0 0
  %1907 = vmatpush1.bf16.msra.mxu0 0
  %1908 = vmatprep.subr.bf16.mxu0 0
  %1909 = vmatpush1.bf16.msra.mxu0 0
  %1910 = vmatprep.subr.bf16.mxu0 %v1886
  %1911 = vmatpush1.bf16.msra.mxu0 %v1885
  %1912 = vmatprep.subr.bf16.mxu0 0
  %1913 = vmatpush2.bf16.msra.mxu0 0
  %1914 = vmatprep.subr.bf16.mxu0 0
  %1915 = vmatpush2.bf16.msra.mxu0 0
  %1916 = vmatprep.subr.bf16.mxu0 0
  %1917 = vmatpush2.bf16.msra.mxu0 0
  %1918 = vmatprep.subr.bf16.mxu0 0
  %1919 = vmatpush2.bf16.msra.mxu0 0
  %1920 = vmatprep.subr.bf16.mxu0 0
  %1921 = vmatpush2.bf16.msra.mxu0 0
  %1922 = vmatprep.subr.bf16.mxu0 0
  %1923 = vmatpush2.bf16.msra.mxu0 0
  %1924 = vmatprep.subr.bf16.mxu0 0
  %1925 = vmatpush2.bf16.msra.mxu0 0
  %1926 = vmatprep.subr.bf16.mxu0 0
  %1927 = vmatpush2.bf16.msra.mxu0 0
  %1928 = vmatprep.mubr.bf16.mxu0 0
  %1929 = vmatmul.mubr.bf16.gmra.mxu0 %v1894
  %v1930 = vpop.f32.mrf.mxu0
  %v1931 = vadd.f32 %v1814, %v1930
  %v1932 = vpop.f32.mrf.mxu0
  %v1933 = vadd.f32 %v1816, %v1932
  %v1934 = vpop.f32.mrf.mxu0
  %v1935 = vadd.f32 %v1818, %v1934
  %v1936 = vpop.f32.mrf.mxu0
  %v1937 = vadd.f32 %v1820, %v1936
  %1938 = vdwg.mxu0
  %1939 = vmatprep.subr.bf16.mxu0 0
  %1940 = vmatpush1.bf16.msra.mxu0 0
  %1941 = vmatprep.subr.bf16.mxu0 0
  %1942 = vmatpush1.bf16.msra.mxu0 0
  %1943 = vmatprep.subr.bf16.mxu0 0
  %1944 = vmatpush1.bf16.msra.mxu0 0
  %1945 = vmatprep.subr.bf16.mxu0 0
  %1946 = vmatpush1.bf16.msra.mxu0 0
  %1947 = vmatprep.subr.bf16.mxu0 0
  %1948 = vmatpush1.bf16.msra.mxu0 0
  %1949 = vmatprep.subr.bf16.mxu0 0
  %1950 = vmatpush1.bf16.msra.mxu0 0
  %1951 = vmatprep.subr.bf16.mxu0 0
  %1952 = vmatpush1.bf16.msra.mxu0 0
  %1953 = vmatprep.subr.bf16.mxu0 %v1888
  %1954 = vmatpush1.bf16.msra.mxu0 %v1887
  %1955 = vmatprep.subr.bf16.mxu0 0
  %1956 = vmatpush2.bf16.msra.mxu0 0
  %1957 = vmatprep.subr.bf16.mxu0 0
  %1958 = vmatpush2.bf16.msra.mxu0 0
  %1959 = vmatprep.subr.bf16.mxu0 0
  %1960 = vmatpush2.bf16.msra.mxu0 0
  %1961 = vmatprep.subr.bf16.mxu0 0
  %1962 = vmatpush2.bf16.msra.mxu0 0
  %1963 = vmatprep.subr.bf16.mxu0 0
  %1964 = vmatpush2.bf16.msra.mxu0 0
  %1965 = vmatprep.subr.bf16.mxu0 0
  %1966 = vmatpush2.bf16.msra.mxu0 0
  %1967 = vmatprep.subr.bf16.mxu0 0
  %1968 = vmatpush2.bf16.msra.mxu0 0
  %1969 = vmatprep.subr.bf16.mxu0 0
  %1970 = vmatpush2.bf16.msra.mxu0 0
  %1971 = vmatprep.mubr.bf16.mxu0 0
  %1972 = vmatmul.mubr.bf16.gmra.mxu0 %v1894
  %v1973 = vpop.f32.mrf.mxu0
  %v1974 = vadd.f32 %v1857, %v1973
  %v1975 = vpop.f32.mrf.mxu0
  %v1976 = vadd.f32 %v1859, %v1975
  %v1977 = vpop.f32.mrf.mxu0
  %v1978 = vadd.f32 %v1861, %v1977
  %v1979 = vpop.f32.mrf.mxu0
  %v1980 = vadd.f32 %v1863, %v1979
  %1981 = vdwg.mxu0
  %v1982 = vmul.f32 %v1703, %v474
  %v1983 = vmul.f32 %v1704, %v482
  %v1984 = vmul.f32 %v1705, %v483
  %v1985 = vmul.f32 %v1706, %v484
  %v1986 = vmul.f32 %v1707, %v480
  %v1987 = vmul.f32 %v1708, %v474
  %v1988 = vmul.f32 %v1709, %v482
  %v1989 = vmul.f32 %v1710, %v483
  %v1990 = vmul.f32 %v1711, %v484
  %v1991 = vmul.f32 %v1712, %v480
  %s1992 = scalar_lea.vmem %s4, 16
  %v1993 = vld [vmem:[%s1992] sm:$0xf]
  %v1994 = vld [vmem:[%s1992 + $0x4] sm:$0xf]
  %v1995 = vpack.c.bf16 %v1987, %v1982
  %v1996 = vpack.c.bf16 %v1988, %v1983
  %v1997 = vpack.c.bf16 %v1989, %v1984
  %v1998 = vpack.c.bf16 %v1990, %v1985
  %v1999 = vpack.c.bf16 %v1991, %v1986
  %v2002 = vunpack.c.l.b16 %v1993
  %v2003 = vunpack.c.l.b16 %v1994
  %v2004 = vpack.c.b16 %v2003, %v2002
  %2010 = vrot.lane.b32.xlu0 %v1995, 15
  %v2011 = vpop.permute.xlu0 %2010
  %2012 = vrot.lane.b32.xlu0 %v1996, 15
  %v2013 = vpop.permute.xlu0 %2012
  %2014 = vrot.lane.b32.xlu0 %v1997, 15
  %v2015 = vpop.permute.xlu0 %2014
  %2016 = vrot.lane.b32.xlu0 %v1998, 15
  %v2017 = vpop.permute.xlu0 %2016
  %2018 = vrot.lane.b32.xlu0 %v1999, 15
  %v2019 = vpop.permute.xlu0 %2018
  %v2020 = vsel %vm528, %v2011, %v2013
  %v2021 = vsel %vm528, %v2013, %v2015
  %v2022 = vsel %vm528, %v2015, %v2017
  %v2023 = vsel %vm528, %v2017, %v2019
  %v2029 = vsel %vm261, %v2004, 0
  %2031 = vmatprep.subr.bf16.mxu0 0
  %2032 = vmatpush1.bf16.msra.mxu0 0
  %2033 = vmatprep.subr.bf16.mxu0 0
  %2034 = vmatpush1.bf16.msra.mxu0 0
  %2035 = vmatprep.subr.bf16.mxu0 0
  %2036 = vmatpush1.bf16.msra.mxu0 0
  %2037 = vmatprep.subr.bf16.mxu0 0
  %2038 = vmatpush1.bf16.msra.mxu0 0
  %2039 = vmatprep.subr.bf16.mxu0 0
  %2040 = vmatpush1.bf16.msra.mxu0 0
  %2041 = vmatprep.subr.bf16.mxu0 0
  %2042 = vmatpush1.bf16.msra.mxu0 0
  %2043 = vmatprep.subr.bf16.mxu0 0
  %2044 = vmatpush1.bf16.msra.mxu0 0
  %2045 = vmatprep.subr.bf16.mxu0 %v2021
  %2046 = vmatpush1.bf16.msra.mxu0 %v2020
  %2047 = vmatprep.subr.bf16.mxu0 0
  %2048 = vmatpush2.bf16.msra.mxu0 0
  %2049 = vmatprep.subr.bf16.mxu0 0
  %2050 = vmatpush2.bf16.msra.mxu0 0
  %2051 = vmatprep.subr.bf16.mxu0 0
  %2052 = vmatpush2.bf16.msra.mxu0 0
  %2053 = vmatprep.subr.bf16.mxu0 0
  %2054 = vmatpush2.bf16.msra.mxu0 0
  %2055 = vmatprep.subr.bf16.mxu0 0
  %2056 = vmatpush2.bf16.msra.mxu0 0
  %2057 = vmatprep.subr.bf16.mxu0 0
  %2058 = vmatpush2.bf16.msra.mxu0 0
  %2059 = vmatprep.subr.bf16.mxu0 0
  %2060 = vmatpush2.bf16.msra.mxu0 0
  %2061 = vmatprep.subr.bf16.mxu0 0
  %2062 = vmatpush2.bf16.msra.mxu0 0
  %2063 = vmatprep.mubr.bf16.mxu0 0
  %2064 = vmatmul.mubr.bf16.gmra.mxu0 %v2029
  %v2065 = vpop.f32.mrf.mxu0
  %v2066 = vadd.f32 0.0, %v2065
  %v2067 = vpop.f32.mrf.mxu0
  %v2068 = vadd.f32 0.0, %v2067
  %v2069 = vpop.f32.mrf.mxu0
  %v2070 = vadd.f32 0.0, %v2069
  %v2071 = vpop.f32.mrf.mxu0
  %v2072 = vadd.f32 0.0, %v2071
  %2073 = vdwg.mxu0
  %2074 = vmatprep.subr.bf16.mxu0 0
  %2075 = vmatpush1.bf16.msra.mxu0 0
  %2076 = vmatprep.subr.bf16.mxu0 0
  %2077 = vmatpush1.bf16.msra.mxu0 0
  %2078 = vmatprep.subr.bf16.mxu0 0
  %2079 = vmatpush1.bf16.msra.mxu0 0
  %2080 = vmatprep.subr.bf16.mxu0 0
  %2081 = vmatpush1.bf16.msra.mxu0 0
  %2082 = vmatprep.subr.bf16.mxu0 0
  %2083 = vmatpush1.bf16.msra.mxu0 0
  %2084 = vmatprep.subr.bf16.mxu0 0
  %2085 = vmatpush1.bf16.msra.mxu0 0
  %2086 = vmatprep.subr.bf16.mxu0 0
  %2087 = vmatpush1.bf16.msra.mxu0 0
  %2088 = vmatprep.subr.bf16.mxu0 %v2023
  %2089 = vmatpush1.bf16.msra.mxu0 %v2022
  %2090 = vmatprep.subr.bf16.mxu0 0
  %2091 = vmatpush2.bf16.msra.mxu0 0
  %2092 = vmatprep.subr.bf16.mxu0 0
  %2093 = vmatpush2.bf16.msra.mxu0 0
  %2094 = vmatprep.subr.bf16.mxu0 0
  %2095 = vmatpush2.bf16.msra.mxu0 0
  %2096 = vmatprep.subr.bf16.mxu0 0
  %2097 = vmatpush2.bf16.msra.mxu0 0
  %2098 = vmatprep.subr.bf16.mxu0 0
  %2099 = vmatpush2.bf16.msra.mxu0 0
  %2100 = vmatprep.subr.bf16.mxu0 0
  %2101 = vmatpush2.bf16.msra.mxu0 0
  %2102 = vmatprep.subr.bf16.mxu0 0
  %2103 = vmatpush2.bf16.msra.mxu0 0
  %2104 = vmatprep.subr.bf16.mxu0 0
  %2105 = vmatpush2.bf16.msra.mxu0 0
  %2106 = vmatprep.mubr.bf16.mxu0 0
  %2107 = vmatmul.mubr.bf16.gmra.mxu0 %v2029
  %v2108 = vpop.f32.mrf.mxu0
  %v2109 = vadd.f32 0.0, %v2108
  %v2110 = vpop.f32.mrf.mxu0
  %v2111 = vadd.f32 0.0, %v2110
  %v2112 = vpop.f32.mrf.mxu0
  %v2113 = vadd.f32 0.0, %v2112
  %v2114 = vpop.f32.mrf.mxu0
  %v2115 = vadd.f32 0.0, %v2114
  %2116 = vdwg.mxu0
  %v2117 = vadd.f32 %v1931, %v2066
  %v2118 = vadd.f32 %v1933, %v2068
  %v2119 = vadd.f32 %v1974, %v2109
  %v2120 = vadd.f32 %v1976, %v2111
  %v2121 = vadd.f32 %v1935, %v2070
  %v2122 = vadd.f32 %v1937, %v2072
  %v2123 = vadd.f32 %v1978, %v2113
  %v2124 = vadd.f32 %v1980, %v2115
  %v2125 = vmul.f32 %v1703, %v639
  %v2126 = vmul.f32 %v1704, %v647
  %v2127 = vmul.f32 %v1705, %v648
  %v2128 = vmul.f32 %v1706, %v649
  %v2129 = vmul.f32 %v1707, %v645
  %v2130 = vmul.f32 %v1708, %v639
  %v2131 = vmul.f32 %v1709, %v647
  %v2132 = vmul.f32 %v1710, %v648
  %v2133 = vmul.f32 %v1711, %v649
  %v2134 = vmul.f32 %v1712, %v645
  %s2135 = scalar_lea.vmem %s4, 24
  %v2136 = vld [vmem:[%s2135] sm:$0xf]
  %v2137 = vld [vmem:[%s2135 + $0x4] sm:$0xf]
  %v2138 = vpack.c.bf16 %v2130, %v2125
  %v2139 = vpack.c.bf16 %v2131, %v2126
  %v2140 = vpack.c.bf16 %v2132, %v2127
  %v2141 = vpack.c.bf16 %v2133, %v2128
  %v2142 = vpack.c.bf16 %v2134, %v2129
  %v2145 = vunpack.c.l.b16 %v2136
  %v2146 = vunpack.c.l.b16 %v2137
  %v2147 = vpack.c.b16 %v2146, %v2145
  %2153 = vrot.lane.b32.xlu0 %v2138, 1
  %v2154 = vpop.permute.xlu0 %2153
  %2155 = vrot.lane.b32.xlu0 %v2139, 1
  %v2156 = vpop.permute.xlu0 %2155
  %2157 = vrot.lane.b32.xlu0 %v2140, 1
  %v2158 = vpop.permute.xlu0 %2157
  %2159 = vrot.lane.b32.xlu0 %v2141, 1
  %v2160 = vpop.permute.xlu0 %2159
  %2161 = vrot.lane.b32.xlu0 %v2142, 1
  %v2162 = vpop.permute.xlu0 %2161
  %v2163 = vsel %vm693, %v2154, %v2156
  %v2164 = vsel %vm693, %v2156, %v2158
  %v2165 = vsel %vm693, %v2158, %v2160
  %v2166 = vsel %vm693, %v2160, %v2162
  %v2172 = vsel %vm261, %v2147, 0
  %2174 = vmatprep.subr.bf16.mxu0 0
  %2175 = vmatpush1.bf16.msra.mxu0 0
  %2176 = vmatprep.subr.bf16.mxu0 0
  %2177 = vmatpush1.bf16.msra.mxu0 0
  %2178 = vmatprep.subr.bf16.mxu0 0
  %2179 = vmatpush1.bf16.msra.mxu0 0
  %2180 = vmatprep.subr.bf16.mxu0 0
  %2181 = vmatpush1.bf16.msra.mxu0 0
  %2182 = vmatprep.subr.bf16.mxu0 0
  %2183 = vmatpush1.bf16.msra.mxu0 0
  %2184 = vmatprep.subr.bf16.mxu0 0
  %2185 = vmatpush1.bf16.msra.mxu0 0
  %2186 = vmatprep.subr.bf16.mxu0 0
  %2187 = vmatpush1.bf16.msra.mxu0 0
  %2188 = vmatprep.subr.bf16.mxu0 %v2164
  %2189 = vmatpush1.bf16.msra.mxu0 %v2163
  %2190 = vmatprep.subr.bf16.mxu0 0
  %2191 = vmatpush2.bf16.msra.mxu0 0
  %2192 = vmatprep.subr.bf16.mxu0 0
  %2193 = vmatpush2.bf16.msra.mxu0 0
  %2194 = vmatprep.subr.bf16.mxu0 0
  %2195 = vmatpush2.bf16.msra.mxu0 0
  %2196 = vmatprep.subr.bf16.mxu0 0
  %2197 = vmatpush2.bf16.msra.mxu0 0
  %2198 = vmatprep.subr.bf16.mxu0 0
  %2199 = vmatpush2.bf16.msra.mxu0 0
  %2200 = vmatprep.subr.bf16.mxu0 0
  %2201 = vmatpush2.bf16.msra.mxu0 0
  %2202 = vmatprep.subr.bf16.mxu0 0
  %2203 = vmatpush2.bf16.msra.mxu0 0
  %2204 = vmatprep.subr.bf16.mxu0 0
  %2205 = vmatpush2.bf16.msra.mxu0 0
  %2206 = vmatprep.mubr.bf16.mxu0 0
  %2207 = vmatmul.mubr.bf16.gmra.mxu0 %v2172
  %v2208 = vpop.f32.mrf.mxu0
  %v2209 = vadd.f32 0.0, %v2208
  %v2210 = vpop.f32.mrf.mxu0
  %v2211 = vadd.f32 0.0, %v2210
  %v2212 = vpop.f32.mrf.mxu0
  %v2213 = vadd.f32 0.0, %v2212
  %v2214 = vpop.f32.mrf.mxu0
  %v2215 = vadd.f32 0.0, %v2214
  %2216 = vdwg.mxu0
  %2217 = vmatprep.subr.bf16.mxu0 0
  %2218 = vmatpush1.bf16.msra.mxu0 0
  %2219 = vmatprep.subr.bf16.mxu0 0
  %2220 = vmatpush1.bf16.msra.mxu0 0
  %2221 = vmatprep.subr.bf16.mxu0 0
  %2222 = vmatpush1.bf16.msra.mxu0 0
  %2223 = vmatprep.subr.bf16.mxu0 0
  %2224 = vmatpush1.bf16.msra.mxu0 0
  %2225 = vmatprep.subr.bf16.mxu0 0
  %2226 = vmatpush1.bf16.msra.mxu0 0
  %2227 = vmatprep.subr.bf16.mxu0 0
  %2228 = vmatpush1.bf16.msra.mxu0 0
  %2229 = vmatprep.subr.bf16.mxu0 0
  %2230 = vmatpush1.bf16.msra.mxu0 0
  %2231 = vmatprep.subr.bf16.mxu0 %v2166
  %2232 = vmatpush1.bf16.msra.mxu0 %v2165
  %2233 = vmatprep.subr.bf16.mxu0 0
  %2234 = vmatpush2.bf16.msra.mxu0 0
  %2235 = vmatprep.subr.bf16.mxu0 0
  %2236 = vmatpush2.bf16.msra.mxu0 0
  %2237 = vmatprep.subr.bf16.mxu0 0
  %2238 = vmatpush2.bf16.msra.mxu0 0
  %2239 = vmatprep.subr.bf16.mxu0 0
  %2240 = vmatpush2.bf16.msra.mxu0 0
  %2241 = vmatprep.subr.bf16.mxu0 0
  %2242 = vmatpush2.bf16.msra.mxu0 0
  %2243 = vmatprep.subr.bf16.mxu0 0
  %2244 = vmatpush2.bf16.msra.mxu0 0
  %2245 = vmatprep.subr.bf16.mxu0 0
  %2246 = vmatpush2.bf16.msra.mxu0 0
  %2247 = vmatprep.subr.bf16.mxu0 0
  %2248 = vmatpush2.bf16.msra.mxu0 0
  %2249 = vmatprep.mubr.bf16.mxu0 0
  %2250 = vmatmul.mubr.bf16.gmra.mxu0 %v2172
  %v2251 = vpop.f32.mrf.mxu0
  %v2252 = vadd.f32 0.0, %v2251
  %v2253 = vpop.f32.mrf.mxu0
  %v2254 = vadd.f32 0.0, %v2253
  %v2255 = vpop.f32.mrf.mxu0
  %v2256 = vadd.f32 0.0, %v2255
  %v2257 = vpop.f32.mrf.mxu0
  %v2258 = vadd.f32 0.0, %v2257
  %2259 = vdwg.mxu0
  %v2260 = vadd.f32 %v2117, %v2209
  %v2261 = vadd.f32 %v2118, %v2211
  %v2262 = vadd.f32 %v2119, %v2252
  %v2263 = vadd.f32 %v2120, %v2254
  %v2264 = vadd.f32 %v2121, %v2213
  %v2265 = vadd.f32 %v2122, %v2215
  %v2266 = vadd.f32 %v2123, %v2256
  %v2267 = vadd.f32 %v2124, %v2258
  %s2268 = scalar_lea.vmem %s4, 32
  %v2269 = vld [vmem:[%s2268] sm:$0xf]
  %v2270 = vld [vmem:[%s2268 + $0x4] sm:$0xf]
  %v2271 = vpack.c.bf16 %v1709, %v1704
  %v2272 = vpack.c.bf16 %v1710, %v1705
  %v2273 = vpack.c.bf16 %v1711, %v1706
  %v2274 = vpack.c.bf16 %v1712, %v1707
  %v2277 = vunpack.c.l.b16 %v2269
  %v2278 = vunpack.c.l.b16 %v2270
  %v2279 = vpack.c.b16 %v2278, %v2277
  %v2281 = vsel %vm261, %v2279, 0
  %2283 = vmatprep.subr.bf16.mxu0 0
  %2284 = vmatpush1.bf16.msra.mxu0 0
  %2285 = vmatprep.subr.bf16.mxu0 0
  %2286 = vmatpush1.bf16.msra.mxu0 0
  %2287 = vmatprep.subr.bf16.mxu0 0
  %2288 = vmatpush1.bf16.msra.mxu0 0
  %2289 = vmatprep.subr.bf16.mxu0 0
  %2290 = vmatpush1.bf16.msra.mxu0 0
  %2291 = vmatprep.subr.bf16.mxu0 0
  %2292 = vmatpush1.bf16.msra.mxu0 0
  %2293 = vmatprep.subr.bf16.mxu0 0
  %2294 = vmatpush1.bf16.msra.mxu0 0
  %2295 = vmatprep.subr.bf16.mxu0 0
  %2296 = vmatpush1.bf16.msra.mxu0 0
  %2297 = vmatprep.subr.bf16.mxu0 %v2272
  %2298 = vmatpush1.bf16.msra.mxu0 %v2271
  %2299 = vmatprep.subr.bf16.mxu0 0
  %2300 = vmatpush2.bf16.msra.mxu0 0
  %2301 = vmatprep.subr.bf16.mxu0 0
  %2302 = vmatpush2.bf16.msra.mxu0 0
  %2303 = vmatprep.subr.bf16.mxu0 0
  %2304 = vmatpush2.bf16.msra.mxu0 0
  %2305 = vmatprep.subr.bf16.mxu0 0
  %2306 = vmatpush2.bf16.msra.mxu0 0
  %2307 = vmatprep.subr.bf16.mxu0 0
  %2308 = vmatpush2.bf16.msra.mxu0 0
  %2309 = vmatprep.subr.bf16.mxu0 0
  %2310 = vmatpush2.bf16.msra.mxu0 0
  %2311 = vmatprep.subr.bf16.mxu0 0
  %2312 = vmatpush2.bf16.msra.mxu0 0
  %2313 = vmatprep.subr.bf16.mxu0 0
  %2314 = vmatpush2.bf16.msra.mxu0 0
  %2315 = vmatprep.mubr.bf16.mxu0 0
  %2316 = vmatmul.mubr.bf16.gmra.mxu0 %v2281
  %v2317 = vpop.f32.mrf.mxu0
  %v2318 = vadd.f32 0.0, %v2317
  %v2319 = vpop.f32.mrf.mxu0
  %v2320 = vadd.f32 0.0, %v2319
  %v2321 = vpop.f32.mrf.mxu0
  %v2322 = vadd.f32 0.0, %v2321
  %v2323 = vpop.f32.mrf.mxu0
  %v2324 = vadd.f32 0.0, %v2323
  %2325 = vdwg.mxu0
  %2326 = vmatprep.subr.bf16.mxu0 0
  %2327 = vmatpush1.bf16.msra.mxu0 0
  %2328 = vmatprep.subr.bf16.mxu0 0
  %2329 = vmatpush1.bf16.msra.mxu0 0
  %2330 = vmatprep.subr.bf16.mxu0 0
  %2331 = vmatpush1.bf16.msra.mxu0 0
  %2332 = vmatprep.subr.bf16.mxu0 0
  %2333 = vmatpush1.bf16.msra.mxu0 0
  %2334 = vmatprep.subr.bf16.mxu0 0
  %2335 = vmatpush1.bf16.msra.mxu0 0
  %2336 = vmatprep.subr.bf16.mxu0 0
  %2337 = vmatpush1.bf16.msra.mxu0 0
  %2338 = vmatprep.subr.bf16.mxu0 0
  %2339 = vmatpush1.bf16.msra.mxu0 0
  %2340 = vmatprep.subr.bf16.mxu0 %v2274
  %2341 = vmatpush1.bf16.msra.mxu0 %v2273
  %2342 = vmatprep.subr.bf16.mxu0 0
  %2343 = vmatpush2.bf16.msra.mxu0 0
  %2344 = vmatprep.subr.bf16.mxu0 0
  %2345 = vmatpush2.bf16.msra.mxu0 0
  %2346 = vmatprep.subr.bf16.mxu0 0
  %2347 = vmatpush2.bf16.msra.mxu0 0
  %2348 = vmatprep.subr.bf16.mxu0 0
  %2349 = vmatpush2.bf16.msra.mxu0 0
  %2350 = vmatprep.subr.bf16.mxu0 0
  %2351 = vmatpush2.bf16.msra.mxu0 0
  %2352 = vmatprep.subr.bf16.mxu0 0
  %2353 = vmatpush2.bf16.msra.mxu0 0
  %2354 = vmatprep.subr.bf16.mxu0 0
  %2355 = vmatpush2.bf16.msra.mxu0 0
  %2356 = vmatprep.subr.bf16.mxu0 0
  %2357 = vmatpush2.bf16.msra.mxu0 0
  %2358 = vmatprep.mubr.bf16.mxu0 0
  %2359 = vmatmul.mubr.bf16.gmra.mxu0 %v2281
  %v2360 = vpop.f32.mrf.mxu0
  %v2361 = vadd.f32 0.0, %v2360
  %v2362 = vpop.f32.mrf.mxu0
  %v2363 = vadd.f32 0.0, %v2362
  %v2364 = vpop.f32.mrf.mxu0
  %v2365 = vadd.f32 0.0, %v2364
  %v2366 = vpop.f32.mrf.mxu0
  %v2367 = vadd.f32 0.0, %v2366
  %2368 = vdwg.mxu0
  %v2369 = vadd.f32 %v2260, %v2318
  %v2370 = vadd.f32 %v2261, %v2320
  %v2371 = vadd.f32 %v2262, %v2361
  %v2372 = vadd.f32 %v2263, %v2363
  %v2373 = vadd.f32 %v2264, %v2322
  %v2374 = vadd.f32 %v2265, %v2324
  %v2375 = vadd.f32 %v2266, %v2365
  %v2376 = vadd.f32 %v2267, %v2367
  %v2377 = vld [vmem:[#allocation2 + $0x8] sm:$0xff]
  %v2378 = vld [vmem:[#allocation2 + $0x10] sm:$0xff]
  %v2379 = vld [vmem:[#allocation2 + $0x18] sm:$0xff]
  %v2380 = vld [vmem:[#allocation2 + $0x20] sm:$0xff]
  %v2381 = vld [vmem:[#allocation2 + $0x28] sm:$0xff]
  %v2382 = vld [vmem:[#allocation2 + $0x38] sm:$0xff]
  %v2383 = vld [vmem:[#allocation2 + $0x40] sm:$0xff]
  %v2384 = vld [vmem:[#allocation2 + $0x48] sm:$0xff]
  %v2385 = vld [vmem:[#allocation2 + $0x50] sm:$0xff]
  %v2386 = vld [vmem:[#allocation2 + $0x58] sm:$0xff]
  %v2387 = vmul.f32 %v2377, %v923
  %v2388 = vmul.f32 %v2378, %v931
  %v2389 = vmul.f32 %v2379, %v932
  %v2390 = vmul.f32 %v2380, %v933
  %v2391 = vmul.f32 %v2381, %v929
  %v2392 = vmul.f32 %v2382, %v923
  %v2393 = vmul.f32 %v2383, %v931
  %v2394 = vmul.f32 %v2384, %v932
  %v2395 = vmul.f32 %v2385, %v933
  %v2396 = vmul.f32 %v2386, %v929
  %s2397 = scalar_lea.vmem %s4, 40
  %v2398 = vld [vmem:[%s2397] sm:$0xf]
  %v2399 = vld [vmem:[%s2397 + $0x4] sm:$0xf]
  %v2400 = vpack.c.bf16 %v2392, %v2387
  %v2401 = vpack.c.bf16 %v2393, %v2388
  %v2402 = vpack.c.bf16 %v2394, %v2389
  %v2403 = vpack.c.bf16 %v2395, %v2390
  %v2404 = vpack.c.bf16 %v2396, %v2391
  %v2407 = vunpack.c.l.b16 %v2398
  %v2408 = vunpack.c.l.b16 %v2399
  %v2409 = vpack.c.b16 %v2408, %v2407
  %2415 = vrot.lane.b32.xlu0 %v2400, 127
  %v2416 = vpop.permute.xlu0 %2415
  %2417 = vrot.lane.b32.xlu0 %v2401, 127
  %v2418 = vpop.permute.xlu0 %2417
  %2419 = vrot.lane.b32.xlu0 %v2402, 127
  %v2420 = vpop.permute.xlu0 %2419
  %2421 = vrot.lane.b32.xlu0 %v2403, 127
  %v2422 = vpop.permute.xlu0 %2421
  %2423 = vrot.lane.b32.xlu0 %v2404, 127
  %v2424 = vpop.permute.xlu0 %2423
  %v2425 = vsel %vm977, %v2416, %v2418
  %v2426 = vsel %vm977, %v2418, %v2420
  %v2427 = vsel %vm977, %v2420, %v2422
  %v2428 = vsel %vm977, %v2422, %v2424
  %v2434 = vsel %vm261, %v2409, 0
  %2436 = vmatprep.subr.bf16.mxu0 0
  %2437 = vmatpush1.bf16.msra.mxu0 0
  %2438 = vmatprep.subr.bf16.mxu0 0
  %2439 = vmatpush1.bf16.msra.mxu0 0
  %2440 = vmatprep.subr.bf16.mxu0 0
  %2441 = vmatpush1.bf16.msra.mxu0 0
  %2442 = vmatprep.subr.bf16.mxu0 0
  %2443 = vmatpush1.bf16.msra.mxu0 0
  %2444 = vmatprep.subr.bf16.mxu0 0
  %2445 = vmatpush1.bf16.msra.mxu0 0
  %2446 = vmatprep.subr.bf16.mxu0 0
  %2447 = vmatpush1.bf16.msra.mxu0 0
  %2448 = vmatprep.subr.bf16.mxu0 0
  %2449 = vmatpush1.bf16.msra.mxu0 0
  %2450 = vmatprep.subr.bf16.mxu0 %v2426
  %2451 = vmatpush1.bf16.msra.mxu0 %v2425
  %2452 = vmatprep.subr.bf16.mxu0 0
  %2453 = vmatpush2.bf16.msra.mxu0 0
  %2454 = vmatprep.subr.bf16.mxu0 0
  %2455 = vmatpush2.bf16.msra.mxu0 0
  %2456 = vmatprep.subr.bf16.mxu0 0
  %2457 = vmatpush2.bf16.msra.mxu0 0
  %2458 = vmatprep.subr.bf16.mxu0 0
  %2459 = vmatpush2.bf16.msra.mxu0 0
  %2460 = vmatprep.subr.bf16.mxu0 0
  %2461 = vmatpush2.bf16.msra.mxu0 0
  %2462 = vmatprep.subr.bf16.mxu0 0
  %2463 = vmatpush2.bf16.msra.mxu0 0
  %2464 = vmatprep.subr.bf16.mxu0 0
  %2465 = vmatpush2.bf16.msra.mxu0 0
  %2466 = vmatprep.subr.bf16.mxu0 0
  %2467 = vmatpush2.bf16.msra.mxu0 0
  %2468 = vmatprep.mubr.bf16.mxu0 0
  %2469 = vmatmul.mubr.bf16.gmra.mxu0 %v2434
  %v2470 = vpop.f32.mrf.mxu0
  %v2471 = vadd.f32 0.0, %v2470
  %v2472 = vpop.f32.mrf.mxu0
  %v2473 = vadd.f32 0.0, %v2472
  %v2474 = vpop.f32.mrf.mxu0
  %v2475 = vadd.f32 0.0, %v2474
  %v2476 = vpop.f32.mrf.mxu0
  %v2477 = vadd.f32 0.0, %v2476
  %2478 = vdwg.mxu0
  %2479 = vmatprep.subr.bf16.mxu0 0
  %2480 = vmatpush1.bf16.msra.mxu0 0
  %2481 = vmatprep.subr.bf16.mxu0 0
  %2482 = vmatpush1.bf16.msra.mxu0 0
  %2483 = vmatprep.subr.bf16.mxu0 0
  %2484 = vmatpush1.bf16.msra.mxu0 0
  %2485 = vmatprep.subr.bf16.mxu0 0
  %2486 = vmatpush1.bf16.msra.mxu0 0
  %2487 = vmatprep.subr.bf16.mxu0 0
  %2488 = vmatpush1.bf16.msra.mxu0 0
  %2489 = vmatprep.subr.bf16.mxu0 0
  %2490 = vmatpush1.bf16.msra.mxu0 0
  %2491 = vmatprep.subr.bf16.mxu0 0
  %2492 = vmatpush1.bf16.msra.mxu0 0
  %2493 = vmatprep.subr.bf16.mxu0 %v2428
  %2494 = vmatpush1.bf16.msra.mxu0 %v2427
  %2495 = vmatprep.subr.bf16.mxu0 0
  %2496 = vmatpush2.bf16.msra.mxu0 0
  %2497 = vmatprep.subr.bf16.mxu0 0
  %2498 = vmatpush2.bf16.msra.mxu0 0
  %2499 = vmatprep.subr.bf16.mxu0 0
  %2500 = vmatpush2.bf16.msra.mxu0 0
  %2501 = vmatprep.subr.bf16.mxu0 0
  %2502 = vmatpush2.bf16.msra.mxu0 0
  %2503 = vmatprep.subr.bf16.mxu0 0
  %2504 = vmatpush2.bf16.msra.mxu0 0
  %2505 = vmatprep.subr.bf16.mxu0 0
  %2506 = vmatpush2.bf16.msra.mxu0 0
  %2507 = vmatprep.subr.bf16.mxu0 0
  %2508 = vmatpush2.bf16.msra.mxu0 0
  %2509 = vmatprep.subr.bf16.mxu0 0
  %2510 = vmatpush2.bf16.msra.mxu0 0
  %2511 = vmatprep.mubr.bf16.mxu0 0
  %2512 = vmatmul.mubr.bf16.gmra.mxu0 %v2434
  %v2513 = vpop.f32.mrf.mxu0
  %v2514 = vadd.f32 0.0, %v2513
  %v2515 = vpop.f32.mrf.mxu0
  %v2516 = vadd.f32 0.0, %v2515
  %v2517 = vpop.f32.mrf.mxu0
  %v2518 = vadd.f32 0.0, %v2517
  %v2519 = vpop.f32.mrf.mxu0
  %v2520 = vadd.f32 0.0, %v2519
  %2521 = vdwg.mxu0
  %v2522 = vadd.f32 %v2369, %v2471
  %v2523 = vadd.f32 %v2370, %v2473
  %v2524 = vadd.f32 %v2371, %v2514
  %v2525 = vadd.f32 %v2372, %v2516
  %v2526 = vadd.f32 %v2373, %v2475
  %v2527 = vadd.f32 %v2374, %v2477
  %v2528 = vadd.f32 %v2375, %v2518
  %v2529 = vadd.f32 %v2376, %v2520
  %v2530 = vmul.f32 %v2377, %v1088
  %v2531 = vmul.f32 %v2378, %v1096
  %v2532 = vmul.f32 %v2379, %v1097
  %v2533 = vmul.f32 %v2380, %v1098
  %v2534 = vmul.f32 %v2381, %v1094
  %v2535 = vmul.f32 %v2382, %v1088
  %v2536 = vmul.f32 %v2383, %v1096
  %v2537 = vmul.f32 %v2384, %v1097
  %v2538 = vmul.f32 %v2385, %v1098
  %v2539 = vmul.f32 %v2386, %v1094
  %s2540 = scalar_lea.vmem %s4, 48
  %v2541 = vld [vmem:[%s2540] sm:$0xf]
  %v2542 = vld [vmem:[%s2540 + $0x4] sm:$0xf]
  %v2543 = vpack.c.bf16 %v2535, %v2530
  %v2544 = vpack.c.bf16 %v2536, %v2531
  %v2545 = vpack.c.bf16 %v2537, %v2532
  %v2546 = vpack.c.bf16 %v2538, %v2533
  %v2547 = vpack.c.bf16 %v2539, %v2534
  %v2550 = vunpack.c.l.b16 %v2541
  %v2551 = vunpack.c.l.b16 %v2542
  %v2552 = vpack.c.b16 %v2551, %v2550
  %2558 = vrot.lane.b32.xlu0 %v2543, 113
  %v2559 = vpop.permute.xlu0 %2558
  %2560 = vrot.lane.b32.xlu0 %v2544, 113
  %v2561 = vpop.permute.xlu0 %2560
  %2562 = vrot.lane.b32.xlu0 %v2545, 113
  %v2563 = vpop.permute.xlu0 %2562
  %2564 = vrot.lane.b32.xlu0 %v2546, 113
  %v2565 = vpop.permute.xlu0 %2564
  %2566 = vrot.lane.b32.xlu0 %v2547, 113
  %v2567 = vpop.permute.xlu0 %2566
  %v2568 = vsel %vm1142, %v2559, %v2561
  %v2569 = vsel %vm1142, %v2561, %v2563
  %v2570 = vsel %vm1142, %v2563, %v2565
  %v2571 = vsel %vm1142, %v2565, %v2567
  %v2577 = vsel %vm261, %v2552, 0
  %2579 = vmatprep.subr.bf16.mxu0 0
  %2580 = vmatpush1.bf16.msra.mxu0 0
  %2581 = vmatprep.subr.bf16.mxu0 0
  %2582 = vmatpush1.bf16.msra.mxu0 0
  %2583 = vmatprep.subr.bf16.mxu0 0
  %2584 = vmatpush1.bf16.msra.mxu0 0
  %2585 = vmatprep.subr.bf16.mxu0 0
  %2586 = vmatpush1.bf16.msra.mxu0 0
  %2587 = vmatprep.subr.bf16.mxu0 0
  %2588 = vmatpush1.bf16.msra.mxu0 0
  %2589 = vmatprep.subr.bf16.mxu0 0
  %2590 = vmatpush1.bf16.msra.mxu0 0
  %2591 = vmatprep.subr.bf16.mxu0 0
  %2592 = vmatpush1.bf16.msra.mxu0 0
  %2593 = vmatprep.subr.bf16.mxu0 %v2569
  %2594 = vmatpush1.bf16.msra.mxu0 %v2568
  %2595 = vmatprep.subr.bf16.mxu0 0
  %2596 = vmatpush2.bf16.msra.mxu0 0
  %2597 = vmatprep.subr.bf16.mxu0 0
  %2598 = vmatpush2.bf16.msra.mxu0 0
  %2599 = vmatprep.subr.bf16.mxu0 0
  %2600 = vmatpush2.bf16.msra.mxu0 0
  %2601 = vmatprep.subr.bf16.mxu0 0
  %2602 = vmatpush2.bf16.msra.mxu0 0
  %2603 = vmatprep.subr.bf16.mxu0 0
  %2604 = vmatpush2.bf16.msra.mxu0 0
  %2605 = vmatprep.subr.bf16.mxu0 0
  %2606 = vmatpush2.bf16.msra.mxu0 0
  %2607 = vmatprep.subr.bf16.mxu0 0
  %2608 = vmatpush2.bf16.msra.mxu0 0
  %2609 = vmatprep.subr.bf16.mxu0 0
  %2610 = vmatpush2.bf16.msra.mxu0 0
  %2611 = vmatprep.mubr.bf16.mxu0 0
  %2612 = vmatmul.mubr.bf16.gmra.mxu0 %v2577
  %v2613 = vpop.f32.mrf.mxu0
  %v2614 = vadd.f32 0.0, %v2613
  %v2615 = vpop.f32.mrf.mxu0
  %v2616 = vadd.f32 0.0, %v2615
  %v2617 = vpop.f32.mrf.mxu0
  %v2618 = vadd.f32 0.0, %v2617
  %v2619 = vpop.f32.mrf.mxu0
  %v2620 = vadd.f32 0.0, %v2619
  %2621 = vdwg.mxu0
  %2622 = vmatprep.subr.bf16.mxu0 0
  %2623 = vmatpush1.bf16.msra.mxu0 0
  %2624 = vmatprep.subr.bf16.mxu0 0
  %2625 = vmatpush1.bf16.msra.mxu0 0
  %2626 = vmatprep.subr.bf16.mxu0 0
  %2627 = vmatpush1.bf16.msra.mxu0 0
  %2628 = vmatprep.subr.bf16.mxu0 0
  %2629 = vmatpush1.bf16.msra.mxu0 0
  %2630 = vmatprep.subr.bf16.mxu0 0
  %2631 = vmatpush1.bf16.msra.mxu0 0
  %2632 = vmatprep.subr.bf16.mxu0 0
  %2633 = vmatpush1.bf16.msra.mxu0 0
  %2634 = vmatprep.subr.bf16.mxu0 0
  %2635 = vmatpush1.bf16.msra.mxu0 0
  %2636 = vmatprep.subr.bf16.mxu0 %v2571
  %2637 = vmatpush1.bf16.msra.mxu0 %v2570
  %2638 = vmatprep.subr.bf16.mxu0 0
  %2639 = vmatpush2.bf16.msra.mxu0 0
  %2640 = vmatprep.subr.bf16.mxu0 0
  %2641 = vmatpush2.bf16.msra.mxu0 0
  %2642 = vmatprep.subr.bf16.mxu0 0
  %2643 = vmatpush2.bf16.msra.mxu0 0
  %2644 = vmatprep.subr.bf16.mxu0 0
  %2645 = vmatpush2.bf16.msra.mxu0 0
  %2646 = vmatprep.subr.bf16.mxu0 0
  %2647 = vmatpush2.bf16.msra.mxu0 0
  %2648 = vmatprep.subr.bf16.mxu0 0
  %2649 = vmatpush2.bf16.msra.mxu0 0
  %2650 = vmatprep.subr.bf16.mxu0 0
  %2651 = vmatpush2.bf16.msra.mxu0 0
  %2652 = vmatprep.subr.bf16.mxu0 0
  %2653 = vmatpush2.bf16.msra.mxu0 0
  %2654 = vmatprep.mubr.bf16.mxu0 0
  %2655 = vmatmul.mubr.bf16.gmra.mxu0 %v2577
  %v2656 = vpop.f32.mrf.mxu0
  %v2657 = vadd.f32 0.0, %v2656
  %v2658 = vpop.f32.mrf.mxu0
  %v2659 = vadd.f32 0.0, %v2658
  %v2660 = vpop.f32.mrf.mxu0
  %v2661 = vadd.f32 0.0, %v2660
  %v2662 = vpop.f32.mrf.mxu0
  %v2663 = vadd.f32 0.0, %v2662
  %2664 = vdwg.mxu0
  %v2665 = vadd.f32 %v2522, %v2614
  %v2666 = vadd.f32 %v2523, %v2616
  %v2667 = vadd.f32 %v2524, %v2657
  %v2668 = vadd.f32 %v2525, %v2659
  %v2669 = vadd.f32 %v2526, %v2618
  %v2670 = vadd.f32 %v2527, %v2620
  %v2671 = vadd.f32 %v2528, %v2661
  %v2672 = vadd.f32 %v2529, %v2663
  %v2673 = vmul.f32 %v2377, %v1253
  %v2674 = vmul.f32 %v2378, %v1260
  %v2675 = vmul.f32 %v2379, %v1261
  %v2676 = vmul.f32 %v2380, %v1262
  %v2677 = vmul.f32 %v2381, %v1259
  %v2678 = vmul.f32 %v2382, %v1253
  %v2679 = vmul.f32 %v2383, %v1260
  %v2680 = vmul.f32 %v2384, %v1261
  %v2681 = vmul.f32 %v2385, %v1262
  %v2682 = vmul.f32 %v2386, %v1259
  %s2683 = scalar_lea.vmem %s4, 56
  %v2684 = vld [vmem:[%s2683] sm:$0xf]
  %v2685 = vld [vmem:[%s2683 + $0x4] sm:$0xf]
  %v2686 = vpack.c.bf16 %v2678, %v2673
  %v2687 = vpack.c.bf16 %v2679, %v2674
  %v2688 = vpack.c.bf16 %v2680, %v2675
  %v2689 = vpack.c.bf16 %v2681, %v2676
  %v2690 = vpack.c.bf16 %v2682, %v2677
  %v2693 = vunpack.c.l.b16 %v2684
  %v2694 = vunpack.c.l.b16 %v2685
  %v2695 = vpack.c.b16 %v2694, %v2693
  %2701 = vrot.lane.b32.xlu0 %v2686, 112
  %v2702 = vpop.permute.xlu0 %2701
  %2703 = vrot.lane.b32.xlu0 %v2687, 112
  %v2704 = vpop.permute.xlu0 %2703
  %2705 = vrot.lane.b32.xlu0 %v2688, 112
  %v2706 = vpop.permute.xlu0 %2705
  %2707 = vrot.lane.b32.xlu0 %v2689, 112
  %v2708 = vpop.permute.xlu0 %2707
  %2709 = vrot.lane.b32.xlu0 %v2690, 112
  %v2710 = vpop.permute.xlu0 %2709
  %v2711 = vsel %vm1306, %v2702, %v2704
  %v2712 = vsel %vm1306, %v2704, %v2706
  %v2713 = vsel %vm1306, %v2706, %v2708
  %v2714 = vsel %vm1306, %v2708, %v2710
  %v2720 = vsel %vm261, %v2695, 0
  %2722 = vmatprep.subr.bf16.mxu0 0
  %2723 = vmatpush1.bf16.msra.mxu0 0
  %2724 = vmatprep.subr.bf16.mxu0 0
  %2725 = vmatpush1.bf16.msra.mxu0 0
  %2726 = vmatprep.subr.bf16.mxu0 0
  %2727 = vmatpush1.bf16.msra.mxu0 0
  %2728 = vmatprep.subr.bf16.mxu0 0
  %2729 = vmatpush1.bf16.msra.mxu0 0
  %2730 = vmatprep.subr.bf16.mxu0 0
  %2731 = vmatpush1.bf16.msra.mxu0 0
  %2732 = vmatprep.subr.bf16.mxu0 0
  %2733 = vmatpush1.bf16.msra.mxu0 0
  %2734 = vmatprep.subr.bf16.mxu0 0
  %2735 = vmatpush1.bf16.msra.mxu0 0
  %2736 = vmatprep.subr.bf16.mxu0 %v2712
  %2737 = vmatpush1.bf16.msra.mxu0 %v2711
  %2738 = vmatprep.subr.bf16.mxu0 0
  %2739 = vmatpush2.bf16.msra.mxu0 0
  %2740 = vmatprep.subr.bf16.mxu0 0
  %2741 = vmatpush2.bf16.msra.mxu0 0
  %2742 = vmatprep.subr.bf16.mxu0 0
  %2743 = vmatpush2.bf16.msra.mxu0 0
  %2744 = vmatprep.subr.bf16.mxu0 0
  %2745 = vmatpush2.bf16.msra.mxu0 0
  %2746 = vmatprep.subr.bf16.mxu0 0
  %2747 = vmatpush2.bf16.msra.mxu0 0
  %2748 = vmatprep.subr.bf16.mxu0 0
  %2749 = vmatpush2.bf16.msra.mxu0 0
  %2750 = vmatprep.subr.bf16.mxu0 0
  %2751 = vmatpush2.bf16.msra.mxu0 0
  %2752 = vmatprep.subr.bf16.mxu0 0
  %2753 = vmatpush2.bf16.msra.mxu0 0
  %2754 = vmatprep.mubr.bf16.mxu0 0
  %2755 = vmatmul.mubr.bf16.gmra.mxu0 %v2720
  %v2756 = vpop.f32.mrf.mxu0
  %v2757 = vadd.f32 0.0, %v2756
  %v2758 = vpop.f32.mrf.mxu0
  %v2759 = vadd.f32 0.0, %v2758
  %v2760 = vpop.f32.mrf.mxu0
  %v2761 = vadd.f32 0.0, %v2760
  %v2762 = vpop.f32.mrf.mxu0
  %v2763 = vadd.f32 0.0, %v2762
  %2764 = vdwg.mxu0
  %2765 = vmatprep.subr.bf16.mxu0 0
  %2766 = vmatpush1.bf16.msra.mxu0 0
  %2767 = vmatprep.subr.bf16.mxu0 0
  %2768 = vmatpush1.bf16.msra.mxu0 0
  %2769 = vmatprep.subr.bf16.mxu0 0
  %2770 = vmatpush1.bf16.msra.mxu0 0
  %2771 = vmatprep.subr.bf16.mxu0 0
  %2772 = vmatpush1.bf16.msra.mxu0 0
  %2773 = vmatprep.subr.bf16.mxu0 0
  %2774 = vmatpush1.bf16.msra.mxu0 0
  %2775 = vmatprep.subr.bf16.mxu0 0
  %2776 = vmatpush1.bf16.msra.mxu0 0
  %2777 = vmatprep.subr.bf16.mxu0 0
  %2778 = vmatpush1.bf16.msra.mxu0 0
  %2779 = vmatprep.subr.bf16.mxu0 %v2714
  %2780 = vmatpush1.bf16.msra.mxu0 %v2713
  %2781 = vmatprep.subr.bf16.mxu0 0
  %2782 = vmatpush2.bf16.msra.mxu0 0
  %2783 = vmatprep.subr.bf16.mxu0 0
  %2784 = vmatpush2.bf16.msra.mxu0 0
  %2785 = vmatprep.subr.bf16.mxu0 0
  %2786 = vmatpush2.bf16.msra.mxu0 0
  %2787 = vmatprep.subr.bf16.mxu0 0
  %2788 = vmatpush2.bf16.msra.mxu0 0
  %2789 = vmatprep.subr.bf16.mxu0 0
  %2790 = vmatpush2.bf16.msra.mxu0 0
  %2791 = vmatprep.subr.bf16.mxu0 0
  %2792 = vmatpush2.bf16.msra.mxu0 0
  %2793 = vmatprep.subr.bf16.mxu0 0
  %2794 = vmatpush2.bf16.msra.mxu0 0
  %2795 = vmatprep.subr.bf16.mxu0 0
  %2796 = vmatpush2.bf16.msra.mxu0 0
  %2797 = vmatprep.mubr.bf16.mxu0 0
  %2798 = vmatmul.mubr.bf16.gmra.mxu0 %v2720
  %v2799 = vpop.f32.mrf.mxu0
  %v2800 = vadd.f32 0.0, %v2799
  %v2801 = vpop.f32.mrf.mxu0
  %v2802 = vadd.f32 0.0, %v2801
  %v2803 = vpop.f32.mrf.mxu0
  %v2804 = vadd.f32 0.0, %v2803
  %v2805 = vpop.f32.mrf.mxu0
  %v2806 = vadd.f32 0.0, %v2805
  %2807 = vdwg.mxu0
  %v2808 = vadd.f32 %v2665, %v2757
  %v2809 = vadd.f32 %v2666, %v2759
  %v2810 = vadd.f32 %v2667, %v2800
  %v2811 = vadd.f32 %v2668, %v2802
  %v2812 = vadd.f32 %v2669, %v2761
  %v2813 = vadd.f32 %v2670, %v2763
  %v2814 = vadd.f32 %v2671, %v2804
  %v2815 = vadd.f32 %v2672, %v2806
  %v2816 = vmul.f32 %v2377, %v1417
  %v2817 = vmul.f32 %v2378, %v1425
  %v2818 = vmul.f32 %v2379, %v1426
  %v2819 = vmul.f32 %v2380, %v1427
  %v2820 = vmul.f32 %v2381, %v1423
  %v2821 = vmul.f32 %v2382, %v1417
  %v2822 = vmul.f32 %v2383, %v1425
  %v2823 = vmul.f32 %v2384, %v1426
  %v2824 = vmul.f32 %v2385, %v1427
  %v2825 = vmul.f32 %v2386, %v1423
  %s2826 = scalar_lea.vmem %s4, 64
  %v2827 = vld [vmem:[%s2826] sm:$0xf]
  %v2828 = vld [vmem:[%s2826 + $0x4] sm:$0xf]
  %v2829 = vpack.c.bf16 %v2821, %v2816
  %v2830 = vpack.c.bf16 %v2822, %v2817
  %v2831 = vpack.c.bf16 %v2823, %v2818
  %v2832 = vpack.c.bf16 %v2824, %v2819
  %v2833 = vpack.c.bf16 %v2825, %v2820
  %v2836 = vunpack.c.l.b16 %v2827
  %v2837 = vunpack.c.l.b16 %v2828
  %v2838 = vpack.c.b16 %v2837, %v2836
  %2844 = vrot.lane.b32.xlu0 %v2829, 111
  %v2845 = vpop.permute.xlu0 %2844
  %2846 = vrot.lane.b32.xlu0 %v2830, 111
  %v2847 = vpop.permute.xlu0 %2846
  %2848 = vrot.lane.b32.xlu0 %v2831, 111
  %v2849 = vpop.permute.xlu0 %2848
  %2850 = vrot.lane.b32.xlu0 %v2832, 111
  %v2851 = vpop.permute.xlu0 %2850
  %2852 = vrot.lane.b32.xlu0 %v2833, 111
  %v2853 = vpop.permute.xlu0 %2852
  %v2854 = vsel %vm1471, %v2845, %v2847
  %v2855 = vsel %vm1471, %v2847, %v2849
  %v2856 = vsel %vm1471, %v2849, %v2851
  %v2857 = vsel %vm1471, %v2851, %v2853
  %v2863 = vsel %vm261, %v2838, 0
  %2865 = vmatprep.subr.bf16.mxu0 0
  %2866 = vmatpush1.bf16.msra.mxu0 0
  %2867 = vmatprep.subr.bf16.mxu0 0
  %2868 = vmatpush1.bf16.msra.mxu0 0
  %2869 = vmatprep.subr.bf16.mxu0 0
  %2870 = vmatpush1.bf16.msra.mxu0 0
  %2871 = vmatprep.subr.bf16.mxu0 0
  %2872 = vmatpush1.bf16.msra.mxu0 0
  %2873 = vmatprep.subr.bf16.mxu0 0
  %2874 = vmatpush1.bf16.msra.mxu0 0
  %2875 = vmatprep.subr.bf16.mxu0 0
  %2876 = vmatpush1.bf16.msra.mxu0 0
  %2877 = vmatprep.subr.bf16.mxu0 0
  %2878 = vmatpush1.bf16.msra.mxu0 0
  %2879 = vmatprep.subr.bf16.mxu0 %v2855
  %2880 = vmatpush1.bf16.msra.mxu0 %v2854
  %2881 = vmatprep.subr.bf16.mxu0 0
  %2882 = vmatpush2.bf16.msra.mxu0 0
  %2883 = vmatprep.subr.bf16.mxu0 0
  %2884 = vmatpush2.bf16.msra.mxu0 0
  %2885 = vmatprep.subr.bf16.mxu0 0
  %2886 = vmatpush2.bf16.msra.mxu0 0
  %2887 = vmatprep.subr.bf16.mxu0 0
  %2888 = vmatpush2.bf16.msra.mxu0 0
  %2889 = vmatprep.subr.bf16.mxu0 0
  %2890 = vmatpush2.bf16.msra.mxu0 0
  %2891 = vmatprep.subr.bf16.mxu0 0
  %2892 = vmatpush2.bf16.msra.mxu0 0
  %2893 = vmatprep.subr.bf16.mxu0 0
  %2894 = vmatpush2.bf16.msra.mxu0 0
  %2895 = vmatprep.subr.bf16.mxu0 0
  %2896 = vmatpush2.bf16.msra.mxu0 0
  %2897 = vmatprep.mubr.bf16.mxu0 0
  %2898 = vmatmul.mubr.bf16.gmra.mxu0 %v2863
  %v2899 = vpop.f32.mrf.mxu0
  %v2900 = vadd.f32 0.0, %v2899
  %v2901 = vpop.f32.mrf.mxu0
  %v2902 = vadd.f32 0.0, %v2901
  %v2903 = vpop.f32.mrf.mxu0
  %v2904 = vadd.f32 0.0, %v2903
  %v2905 = vpop.f32.mrf.mxu0
  %v2906 = vadd.f32 0.0, %v2905
  %2907 = vdwg.mxu0
  %2908 = vmatprep.subr.bf16.mxu0 0
  %2909 = vmatpush1.bf16.msra.mxu0 0
  %2910 = vmatprep.subr.bf16.mxu0 0
  %2911 = vmatpush1.bf16.msra.mxu0 0
  %2912 = vmatprep.subr.bf16.mxu0 0
  %2913 = vmatpush1.bf16.msra.mxu0 0
  %2914 = vmatprep.subr.bf16.mxu0 0
  %2915 = vmatpush1.bf16.msra.mxu0 0
  %2916 = vmatprep.subr.bf16.mxu0 0
  %2917 = vmatpush1.bf16.msra.mxu0 0
  %2918 = vmatprep.subr.bf16.mxu0 0
  %2919 = vmatpush1.bf16.msra.mxu0 0
  %2920 = vmatprep.subr.bf16.mxu0 0
  %2921 = vmatpush1.bf16.msra.mxu0 0
  %2922 = vmatprep.subr.bf16.mxu0 %v2857
  %2923 = vmatpush1.bf16.msra.mxu0 %v2856
  %2924 = vmatprep.subr.bf16.mxu0 0
  %2925 = vmatpush2.bf16.msra.mxu0 0
  %2926 = vmatprep.subr.bf16.mxu0 0
  %2927 = vmatpush2.bf16.msra.mxu0 0
  %2928 = vmatprep.subr.bf16.mxu0 0
  %2929 = vmatpush2.bf16.msra.mxu0 0
  %2930 = vmatprep.subr.bf16.mxu0 0
  %2931 = vmatpush2.bf16.msra.mxu0 0
  %2932 = vmatprep.subr.bf16.mxu0 0
  %2933 = vmatpush2.bf16.msra.mxu0 0
  %2934 = vmatprep.subr.bf16.mxu0 0
  %2935 = vmatpush2.bf16.msra.mxu0 0
  %2936 = vmatprep.subr.bf16.mxu0 0
  %2937 = vmatpush2.bf16.msra.mxu0 0
  %2938 = vmatprep.subr.bf16.mxu0 0
  %2939 = vmatpush2.bf16.msra.mxu0 0
  %2940 = vmatprep.mubr.bf16.mxu0 0
  %2941 = vmatmul.mubr.bf16.gmra.mxu0 %v2863
  %v2942 = vpop.f32.mrf.mxu0
  %v2943 = vadd.f32 0.0, %v2942
  %v2944 = vpop.f32.mrf.mxu0
  %v2945 = vadd.f32 0.0, %v2944
  %v2946 = vpop.f32.mrf.mxu0
  %v2947 = vadd.f32 0.0, %v2946
  %v2948 = vpop.f32.mrf.mxu0
  %v2949 = vadd.f32 0.0, %v2948
  %2950 = vdwg.mxu0
  %v2951 = vadd.f32 %v2808, %v2900
  %v2952 = vadd.f32 %v2809, %v2902
  %v2953 = vadd.f32 %v2810, %v2943
  %v2954 = vadd.f32 %v2811, %v2945
  %v2955 = vadd.f32 %v2812, %v2904
  %v2956 = vadd.f32 %v2813, %v2906
  %v2957 = vadd.f32 %v2814, %v2947
  %v2958 = vadd.f32 %v2815, %v2949
  %v2959 = vadd.f32 %v2951, %v2952
  %v2960 = vadd.f32 %v2959, %v2953
  %v2961 = vadd.f32 %v2960, %v2954
  %2962 = vadd.xlane.f32.xlu0 %v2961
  %v2963 = vpop.xlane.xlu0 %2962
  %v2964 = vadd.f32 %v2955, %v2956
  %v2965 = vadd.f32 %v2964, %v2957
  %v2966 = vadd.f32 %v2965, %v2958
  %2967 = vadd.xlane.f32.xlu0 %v2966
  %v2968 = vpop.xlane.xlu0 %2967
  %v2969 = vmul.f32 %v2963, 0.001953125
  %v2970 = vmul.f32 %v2968, 0.001953125
  %v2971 = vmul.f32 %v2951, %v2951
  %v2972 = vmul.f32 %v2952, %v2952
  %v2973 = vmul.f32 %v2953, %v2953
  %v2974 = vmul.f32 %v2954, %v2954
  %v2975 = vmul.f32 %v2955, %v2955
  %v2976 = vmul.f32 %v2956, %v2956
  %v2977 = vmul.f32 %v2957, %v2957
  %v2978 = vmul.f32 %v2958, %v2958
  %v2979 = vadd.f32 %v2971, %v2972
  %v2980 = vadd.f32 %v2979, %v2973
  %v2981 = vadd.f32 %v2980, %v2974
  %2982 = vadd.xlane.f32.xlu0 %v2981
  %v2983 = vpop.xlane.xlu0 %2982
  %v2984 = vadd.f32 %v2975, %v2976
  %v2985 = vadd.f32 %v2984, %v2977
  %v2986 = vadd.f32 %v2985, %v2978
  %2987 = vadd.xlane.f32.xlu0 %v2986
  %v2988 = vpop.xlane.xlu0 %2987
  %v2989 = vmul.f32 %v2983, 0.001953125
  %v2990 = vmul.f32 %v2988, 0.001953125
  %v2991 = vmul.f32 %v2969, %v2969
  %v2992 = vmul.f32 %v2970, %v2970
  %v2993 = vsub.f32 %v2989, %v2991
  %v2994 = vsub.f32 %v2990, %v2992
  %v2995 = vld [vmem:[%s5] sm:$0xff]
  %v2996 = vld [vmem:[%s5 + $0x8] sm:$0xff]
  %v2997 = vadd.f32 %v2993, 1e-05
  %v2998 = vadd.f32 %v2994, 1e-05
  %v2999 = vrsqrt.pop %v2997
  %v3000 = vrsqrt.pop %v2998
  %v3001 = vmul.f32 %v2995, %v2999
  %v3002 = vmul.f32 %v2996, %v3000
  %v3003 = vld [vmem:[%s6] sm:$0xff]
  %v3004 = vld [vmem:[%s6 + $0x8] sm:$0xff]
  %v3005 = vmul.f32 %v2969, %v3001
  %v3006 = vmul.f32 %v2970, %v3002
  %v3007 = vsub.f32 %v3003, %v3005
  %v3008 = vsub.f32 %v3004, %v3006
  %3010 = vset.pattern.permute.xlu0 0
  %3011 = vperm.xlu0 %3010, %v3001
  %v3012 = vpop.permute.xlu0 %3011
  %3015 = vset.pattern.permute.xlu0 0
  %3016 = vperm.xlu0 %3015, %v3002
  %v3017 = vpop.permute.xlu0 %3016
  %v3019 = vmul.f32 %v2951, %v3012
  %v3020 = vmul.f32 %v2952, %v3012
  %v3021 = vmul.f32 %v2953, %v3012
  %v3022 = vmul.f32 %v2954, %v3012
  %v3023 = vmul.f32 %v2955, %v3017
  %v3024 = vmul.f32 %v2956, %v3017
  %v3025 = vmul.f32 %v2957, %v3017
  %v3026 = vmul.f32 %v2958, %v3017
  %3028 = vset.pattern.permute.xlu0 0
  %3029 = vperm.xlu0 %3028, %v3007
  %v3030 = vpop.permute.xlu0 %3029
  %3033 = vset.pattern.permute.xlu0 0
  %3034 = vperm.xlu0 %3033, %v3008
  %v3035 = vpop.permute.xlu0 %3034
  %v3037 = vadd.f32 %v3019, %v3030
  %v3038 = vadd.f32 %v3020, %v3030
  %v3039 = vadd.f32 %v3021, %v3030
  %v3040 = vadd.f32 %v3022, %v3030
  %v3041 = vadd.f32 %v3023, %v3035
  %v3042 = vadd.f32 %v3024, %v3035
  %v3043 = vadd.f32 %v3025, %v3035
  %v3044 = vadd.f32 %v3026, %v3035
  %vm3045 = vcmp.gt.f32.partialorder %v3037, 0.0
  %vm3046 = vcmp.gt.f32.partialorder %v3038, 0.0
  %vm3047 = vcmp.gt.f32.partialorder %v3039, 0.0
  %vm3048 = vcmp.gt.f32.partialorder %v3040, 0.0
  %vm3049 = vcmp.gt.f32.partialorder %v3041, 0.0
  %vm3050 = vcmp.gt.f32.partialorder %v3042, 0.0
  %vm3051 = vcmp.gt.f32.partialorder %v3043, 0.0
  %vm3052 = vcmp.gt.f32.partialorder %v3044, 0.0
  %v3053 = vmul.f32 %v3037, 0.25
  %v3054 = vmul.f32 %v3038, 0.25
  %v3055 = vmul.f32 %v3039, 0.25
  %v3056 = vmul.f32 %v3040, 0.25
  %v3057 = vmul.f32 %v3041, 0.25
  %v3058 = vmul.f32 %v3042, 0.25
  %v3059 = vmul.f32 %v3043, 0.25
  %v3060 = vmul.f32 %v3044, 0.25
  %v3061 = vsel %vm3045, %v3037, %v3053
  %v3062 = vsel %vm3046, %v3038, %v3054
  %v3063 = vsel %vm3047, %v3039, %v3055
  %v3064 = vsel %vm3048, %v3040, %v3056
  %v3065 = vsel %vm3049, %v3041, %v3057
  %v3066 = vsel %vm3050, %v3042, %v3058
  %v3067 = vsel %vm3051, %v3043, %v3059
  %v3068 = vsel %vm3052, %v3044, %v3060
  %3069 = vst [vmem:[%s11] sm:$0xff] %v3061
  %3070 = vst [vmem:[%s11 + $0x8] sm:$0xff] %v3062
  %3071 = vst [vmem:[%s11 + $0x10] sm:$0xff] %v3063
  %3072 = vst [vmem:[%s11 + $0x18] sm:$0xff] %v3064
  %3073 = vst [vmem:[%s11 + $0x20] sm:$0xff] %v3065
  %3074 = vst [vmem:[%s11 + $0x28] sm:$0xff] %v3066
  %3075 = vst [vmem:[%s11 + $0x30] sm:$0xff] %v3067
  %3076 = vst [vmem:[%s11 + $0x38] sm:$0xff] %v3068
  %3077 = vst [vmem:[#allocation2 + $0x8] sm:$0xff] %v3061
  %3078 = vst [vmem:[#allocation2 + $0x10] sm:$0xff] %v3062
  %3079 = vst [vmem:[#allocation2 + $0x18] sm:$0xff] %v3063
  %3080 = vst [vmem:[#allocation2 + $0x20] sm:$0xff] %v3064
  %3081 = vst [vmem:[#allocation2 + $0x38] sm:$0xff] %v3065
  %3082 = vst [vmem:[#allocation2 + $0x40] sm:$0xff] %v3066
  %3083 = vst [vmem:[#allocation2 + $0x48] sm:$0xff] %v3067
  %3084 = vst [vmem:[#allocation2 + $0x50] sm:$0xff] %v3068
  %v3085 = vld [vmem:[#allocation2] sm:$0xff]
  %v3086 = vld [vmem:[#allocation2 + $0x8] sm:$0xff]
  %v3087 = vld [vmem:[#allocation2 + $0x10] sm:$0xff]
  %v3088 = vld [vmem:[#allocation2 + $0x18] sm:$0xff]
  %v3089 = vld [vmem:[#allocation2 + $0x20] sm:$0xff]
  %v3090 = vld [vmem:[#allocation2 + $0x30] sm:$0xff]
  %v3091 = vld [vmem:[#allocation2 + $0x38] sm:$0xff]
  %v3092 = vld [vmem:[#allocation2 + $0x40] sm:$0xff]
  %v3093 = vld [vmem:[#allocation2 + $0x48] sm:$0xff]
  %v3094 = vld [vmem:[#allocation2 + $0x50] sm:$0xff]
  %v3095 = vmul.f32 %v3085, %v160
  %v3096 = vmul.f32 %v3086, %v168
  %v3097 = vmul.f32 %v3087, %v169
  %v3098 = vmul.f32 %v3088, %v170
  %v3099 = vmul.f32 %v3089, %v166
  %v3100 = vmul.f32 %v3090, %v160
  %v3101 = vmul.f32 %v3091, %v168
  %v3102 = vmul.f32 %v3092, %v169
  %v3103 = vmul.f32 %v3093, %v170
  %v3104 = vmul.f32 %v3094, %v166
  %v3105 = vld [vmem:[%s7] sm:$0xf]
  %v3106 = vld [vmem:[%s7 + $0x4] sm:$0xf]
  %v3107 = vld [vmem:[%s7 + $0x8] sm:$0xf]
  %v3108 = vld [vmem:[%s7 + $0xc] sm:$0xf]
  %v3109 = vpack.c.bf16 %v3100, %v3095
  %v3110 = vpack.c.bf16 %v3101, %v3096
  %v3111 = vpack.c.bf16 %v3102, %v3097
  %v3112 = vpack.c.bf16 %v3103, %v3098
  %v3113 = vpack.c.bf16 %v3104, %v3099
  %v3114 = vmul.f32 %v3085, %v198
  %v3115 = vmul.f32 %v3086, %v206
  %v3116 = vmul.f32 %v3087, %v207
  %v3117 = vmul.f32 %v3088, %v208
  %v3118 = vmul.f32 %v3089, %v204
  %v3119 = vmul.f32 %v3090, %v198
  %v3120 = vmul.f32 %v3091, %v206
  %v3121 = vmul.f32 %v3092, %v207
  %v3122 = vmul.f32 %v3093, %v208
  %v3123 = vmul.f32 %v3094, %v204
  %s3124 = scalar_lea.vmem %s7, 16
  %v3125 = vld [vmem:[%s3124] sm:$0xf]
  %v3126 = vld [vmem:[%s3124 + $0x4] sm:$0xf]
  %v3127 = vld [vmem:[%s3124 + $0x8] sm:$0xf]
  %v3128 = vld [vmem:[%s3124 + $0xc] sm:$0xf]
  %v3129 = vpack.c.bf16 %v3119, %v3114
  %v3130 = vpack.c.bf16 %v3120, %v3115
  %v3131 = vpack.c.bf16 %v3121, %v3116
  %v3132 = vpack.c.bf16 %v3122, %v3117
  %v3133 = vpack.c.bf16 %v3123, %v3118
  %v3138 = vunpack.c.l.b16 %v3125
  %v3139 = vunpack.c.l.b16 %v3126
  %v3140 = vunpack.c.l.b16 %v3127
  %v3141 = vunpack.c.l.b16 %v3128
  %v3142 = vpack.c.b16 %v3139, %v3138
  %v3143 = vpack.c.b16 %v3141, %v3140
  %3149 = vrot.lane.b32.xlu0 %v3129, 16
  %v3150 = vpop.permute.xlu0 %3149
  %3151 = vrot.lane.b32.xlu0 %v3130, 16
  %v3152 = vpop.permute.xlu0 %3151
  %3153 = vrot.lane.b32.xlu0 %v3131, 16
  %v3154 = vpop.permute.xlu0 %3153
  %3155 = vrot.lane.b32.xlu0 %v3132, 16
  %v3156 = vpop.permute.xlu0 %3155
  %3157 = vrot.lane.b32.xlu0 %v3133, 16
  %v3158 = vpop.permute.xlu0 %3157
  %v3159 = vsel %vm252, %v3150, %v3152
  %v3160 = vsel %vm252, %v3152, %v3154
  %v3161 = vsel %vm252, %v3154, %v3156
  %v3162 = vsel %vm252, %v3156, %v3158
  %v3168 = vsel %vm261, %v3142, 0
  %v3171 = vsel %vm261, %v3143, 0
  %3173 = vmatprep.subr.bf16.mxu0 0
  %3174 = vmatpush1.bf16.msra.mxu0 0
  %3175 = vmatprep.subr.bf16.mxu0 0
  %3176 = vmatpush1.bf16.msra.mxu0 0
  %3177 = vmatprep.subr.bf16.mxu0 0
  %3178 = vmatpush1.bf16.msra.mxu0 0
  %3179 = vmatprep.subr.bf16.mxu0 0
  %3180 = vmatpush1.bf16.msra.mxu0 0
  %3181 = vmatprep.subr.bf16.mxu0 0
  %3182 = vmatpush1.bf16.msra.mxu0 0
  %3183 = vmatprep.subr.bf16.mxu0 0
  %3184 = vmatpush1.bf16.msra.mxu0 0
  %3185 = vmatprep.subr.bf16.mxu0 0
  %3186 = vmatpush1.bf16.msra.mxu0 0
  %3187 = vmatprep.subr.bf16.mxu0 %v3160
  %3188 = vmatpush1.bf16.msra.mxu0 %v3159
  %3189 = vmatprep.subr.bf16.mxu0 0
  %3190 = vmatpush2.bf16.msra.mxu0 0
  %3191 = vmatprep.subr.bf16.mxu0 0
  %3192 = vmatpush2.bf16.msra.mxu0 0
  %3193 = vmatprep.subr.bf16.mxu0 0
  %3194 = vmatpush2.bf16.msra.mxu0 0
  %3195 = vmatprep.subr.bf16.mxu0 0
  %3196 = vmatpush2.bf16.msra.mxu0 0
  %3197 = vmatprep.subr.bf16.mxu0 0
  %3198 = vmatpush2.bf16.msra.mxu0 0
  %3199 = vmatprep.subr.bf16.mxu0 0
  %3200 = vmatpush2.bf16.msra.mxu0 0
  %3201 = vmatprep.subr.bf16.mxu0 0
  %3202 = vmatpush2.bf16.msra.mxu0 0
  %3203 = vmatprep.subr.bf16.mxu0 0
  %3204 = vmatpush2.bf16.msra.mxu0 0
  %3205 = vmatprep.mubr.bf16.mxu0 0
  %3206 = vmatmul.mubr.bf16.gmra.mxu0 %v3168
  %v3207 = vpop.f32.mrf.mxu0
  %v3208 = vadd.f32 0.0, %v3207
  %v3209 = vpop.f32.mrf.mxu0
  %v3210 = vadd.f32 0.0, %v3209
  %v3211 = vpop.f32.mrf.mxu0
  %v3212 = vadd.f32 0.0, %v3211
  %v3213 = vpop.f32.mrf.mxu0
  %v3214 = vadd.f32 0.0, %v3213
  %3215 = vmatprep.mubr.bf16.mxu0 0
  %3216 = vmatmul.mubr.bf16.gmra.mxu0 %v3171
  %v3217 = vpop.f32.mrf.mxu0
  %v3218 = vadd.f32 0.0, %v3217
  %v3219 = vpop.f32.mrf.mxu0
  %v3220 = vadd.f32 0.0, %v3219
  %v3221 = vpop.f32.mrf.mxu0
  %v3222 = vadd.f32 0.0, %v3221
  %v3223 = vpop.f32.mrf.mxu0
  %v3224 = vadd.f32 0.0, %v3223
  %3225 = vdwg.mxu0
  %3226 = vmatprep.subr.bf16.mxu0 0
  %3227 = vmatpush1.bf16.msra.mxu0 0
  %3228 = vmatprep.subr.bf16.mxu0 0
  %3229 = vmatpush1.bf16.msra.mxu0 0
  %3230 = vmatprep.subr.bf16.mxu0 0
  %3231 = vmatpush1.bf16.msra.mxu0 0
  %3232 = vmatprep.subr.bf16.mxu0 0
  %3233 = vmatpush1.bf16.msra.mxu0 0
  %3234 = vmatprep.subr.bf16.mxu0 0
  %3235 = vmatpush1.bf16.msra.mxu0 0
  %3236 = vmatprep.subr.bf16.mxu0 0
  %3237 = vmatpush1.bf16.msra.mxu0 0
  %3238 = vmatprep.subr.bf16.mxu0 0
  %3239 = vmatpush1.bf16.msra.mxu0 0
  %3240 = vmatprep.subr.bf16.mxu0 %v3162
  %3241 = vmatpush1.bf16.msra.mxu0 %v3161
  %3242 = vmatprep.subr.bf16.mxu0 0
  %3243 = vmatpush2.bf16.msra.mxu0 0
  %3244 = vmatprep.subr.bf16.mxu0 0
  %3245 = vmatpush2.bf16.msra.mxu0 0
  %3246 = vmatprep.subr.bf16.mxu0 0
  %3247 = vmatpush2.bf16.msra.mxu0 0
  %3248 = vmatprep.subr.bf16.mxu0 0
  %3249 = vmatpush2.bf16.msra.mxu0 0
  %3250 = vmatprep.subr.bf16.mxu0 0
  %3251 = vmatpush2.bf16.msra.mxu0 0
  %3252 = vmatprep.subr.bf16.mxu0 0
  %3253 = vmatpush2.bf16.msra.mxu0 0
  %3254 = vmatprep.subr.bf16.mxu0 0
  %3255 = vmatpush2.bf16.msra.mxu0 0
  %3256 = vmatprep.subr.bf16.mxu0 0
  %3257 = vmatpush2.bf16.msra.mxu0 0
  %3258 = vmatprep.mubr.bf16.mxu0 0
  %3259 = vmatmul.mubr.bf16.gmra.mxu0 %v3168
  %v3260 = vpop.f32.mrf.mxu0
  %v3261 = vadd.f32 0.0, %v3260
  %v3262 = vpop.f32.mrf.mxu0
  %v3263 = vadd.f32 0.0, %v3262
  %v3264 = vpop.f32.mrf.mxu0
  %v3265 = vadd.f32 0.0, %v3264
  %v3266 = vpop.f32.mrf.mxu0
  %v3267 = vadd.f32 0.0, %v3266
  %3268 = vmatprep.mubr.bf16.mxu0 0
  %3269 = vmatmul.mubr.bf16.gmra.mxu0 %v3171
  %v3270 = vpop.f32.mrf.mxu0
  %v3271 = vadd.f32 0.0, %v3270
  %v3272 = vpop.f32.mrf.mxu0
  %v3273 = vadd.f32 0.0, %v3272
  %v3274 = vpop.f32.mrf.mxu0
  %v3275 = vadd.f32 0.0, %v3274
  %v3276 = vpop.f32.mrf.mxu0
  %v3277 = vadd.f32 0.0, %v3276
  %3278 = vdwg.mxu0
  %v3283 = vunpack.c.l.b16 %v3105
  %v3284 = vunpack.c.l.b16 %v3106
  %v3285 = vunpack.c.l.b16 %v3107
  %v3286 = vunpack.c.l.b16 %v3108
  %v3287 = vpack.c.b16 %v3284, %v3283
  %v3288 = vpack.c.b16 %v3286, %v3285
  %3294 = vrot.lane.b32.xlu0 %v3109, 17
  %v3295 = vpop.permute.xlu0 %3294
  %3296 = vrot.lane.b32.xlu0 %v3110, 17
  %v3297 = vpop.permute.xlu0 %3296
  %3298 = vrot.lane.b32.xlu0 %v3111, 17
  %v3299 = vpop.permute.xlu0 %3298
  %3300 = vrot.lane.b32.xlu0 %v3112, 17
  %v3301 = vpop.permute.xlu0 %3300
  %3302 = vrot.lane.b32.xlu0 %v3113, 17
  %v3303 = vpop.permute.xlu0 %3302
  %v3304 = vsel %vm371, %v3295, %v3297
  %v3305 = vsel %vm371, %v3297, %v3299
  %v3306 = vsel %vm371, %v3299, %v3301
  %v3307 = vsel %vm371, %v3301, %v3303
  %v3313 = vsel %vm261, %v3287, 0
  %v3316 = vsel %vm261, %v3288, 0
  %3318 = vmatprep.subr.bf16.mxu0 0
  %3319 = vmatpush1.bf16.msra.mxu0 0
  %3320 = vmatprep.subr.bf16.mxu0 0
  %3321 = vmatpush1.bf16.msra.mxu0 0
  %3322 = vmatprep.subr.bf16.mxu0 0
  %3323 = vmatpush1.bf16.msra.mxu0 0
  %3324 = vmatprep.subr.bf16.mxu0 0
  %3325 = vmatpush1.bf16.msra.mxu0 0
  %3326 = vmatprep.subr.bf16.mxu0 0
  %3327 = vmatpush1.bf16.msra.mxu0 0
  %3328 = vmatprep.subr.bf16.mxu0 0
  %3329 = vmatpush1.bf16.msra.mxu0 0
  %3330 = vmatprep.subr.bf16.mxu0 0
  %3331 = vmatpush1.bf16.msra.mxu0 0
  %3332 = vmatprep.subr.bf16.mxu0 %v3305
  %3333 = vmatpush1.bf16.msra.mxu0 %v3304
  %3334 = vmatprep.subr.bf16.mxu0 0
  %3335 = vmatpush2.bf16.msra.mxu0 0
  %3336 = vmatprep.subr.bf16.mxu0 0
  %3337 = vmatpush2.bf16.msra.mxu0 0
  %3338 = vmatprep.subr.bf16.mxu0 0
  %3339 = vmatpush2.bf16.msra.mxu0 0
  %3340 = vmatprep.subr.bf16.mxu0 0
  %3341 = vmatpush2.bf16.msra.mxu0 0
  %3342 = vmatprep.subr.bf16.mxu0 0
  %3343 = vmatpush2.bf16.msra.mxu0 0
  %3344 = vmatprep.subr.bf16.mxu0 0
  %3345 = vmatpush2.bf16.msra.mxu0 0
  %3346 = vmatprep.subr.bf16.mxu0 0
  %3347 = vmatpush2.bf16.msra.mxu0 0
  %3348 = vmatprep.subr.bf16.mxu0 0
  %3349 = vmatpush2.bf16.msra.mxu0 0
  %3350 = vmatprep.mubr.bf16.mxu0 0
  %3351 = vmatmul.mubr.bf16.gmra.mxu0 %v3313
  %v3352 = vpop.f32.mrf.mxu0
  %v3353 = vadd.f32 %v3208, %v3352
  %v3354 = vpop.f32.mrf.mxu0
  %v3355 = vadd.f32 %v3210, %v3354
  %v3356 = vpop.f32.mrf.mxu0
  %v3357 = vadd.f32 %v3212, %v3356
  %v3358 = vpop.f32.mrf.mxu0
  %v3359 = vadd.f32 %v3214, %v3358
  %3360 = vmatprep.mubr.bf16.mxu0 0
  %3361 = vmatmul.mubr.bf16.gmra.mxu0 %v3316
  %v3362 = vpop.f32.mrf.mxu0
  %v3363 = vadd.f32 %v3218, %v3362
  %v3364 = vpop.f32.mrf.mxu0
  %v3365 = vadd.f32 %v3220, %v3364
  %v3366 = vpop.f32.mrf.mxu0
  %v3367 = vadd.f32 %v3222, %v3366
  %v3368 = vpop.f32.mrf.mxu0
  %v3369 = vadd.f32 %v3224, %v3368
  %3370 = vdwg.mxu0
  %3371 = vmatprep.subr.bf16.mxu0 0
  %3372 = vmatpush1.bf16.msra.mxu0 0
  %3373 = vmatprep.subr.bf16.mxu0 0
  %3374 = vmatpush1.bf16.msra.mxu0 0
  %3375 = vmatprep.subr.bf16.mxu0 0
  %3376 = vmatpush1.bf16.msra.mxu0 0
  %3377 = vmatprep.subr.bf16.mxu0 0
  %3378 = vmatpush1.bf16.msra.mxu0 0
  %3379 = vmatprep.subr.bf16.mxu0 0
  %3380 = vmatpush1.bf16.msra.mxu0 0
  %3381 = vmatprep.subr.bf16.mxu0 0
  %3382 = vmatpush1.bf16.msra.mxu0 0
  %3383 = vmatprep.subr.bf16.mxu0 0
  %3384 = vmatpush1.bf16.msra.mxu0 0
  %3385 = vmatprep.subr.bf16.mxu0 %v3307
  %3386 = vmatpush1.bf16.msra.mxu0 %v3306
  %3387 = vmatprep.subr.bf16.mxu0 0
  %3388 = vmatpush2.bf16.msra.mxu0 0
  %3389 = vmatprep.subr.bf16.mxu0 0
  %3390 = vmatpush2.bf16.msra.mxu0 0
  %3391 = vmatprep.subr.bf16.mxu0 0
  %3392 = vmatpush2.bf16.msra.mxu0 0
  %3393 = vmatprep.subr.bf16.mxu0 0
  %3394 = vmatpush2.bf16.msra.mxu0 0
  %3395 = vmatprep.subr.bf16.mxu0 0
  %3396 = vmatpush2.bf16.msra.mxu0 0
  %3397 = vmatprep.subr.bf16.mxu0 0
  %3398 = vmatpush2.bf16.msra.mxu0 0
  %3399 = vmatprep.subr.bf16.mxu0 0
  %3400 = vmatpush2.bf16.msra.mxu0 0
  %3401 = vmatprep.subr.bf16.mxu0 0
  %3402 = vmatpush2.bf16.msra.mxu0 0
  %3403 = vmatprep.mubr.bf16.mxu0 0
  %3404 = vmatmul.mubr.bf16.gmra.mxu0 %v3313
  %v3405 = vpop.f32.mrf.mxu0
  %v3406 = vadd.f32 %v3261, %v3405
  %v3407 = vpop.f32.mrf.mxu0
  %v3408 = vadd.f32 %v3263, %v3407
  %v3409 = vpop.f32.mrf.mxu0
  %v3410 = vadd.f32 %v3265, %v3409
  %v3411 = vpop.f32.mrf.mxu0
  %v3412 = vadd.f32 %v3267, %v3411
  %3413 = vmatprep.mubr.bf16.mxu0 0
  %3414 = vmatmul.mubr.bf16.gmra.mxu0 %v3316
  %v3415 = vpop.f32.mrf.mxu0
  %v3416 = vadd.f32 %v3271, %v3415
  %v3417 = vpop.f32.mrf.mxu0
  %v3418 = vadd.f32 %v3273, %v3417
  %v3419 = vpop.f32.mrf.mxu0
  %v3420 = vadd.f32 %v3275, %v3419
  %v3421 = vpop.f32.mrf.mxu0
  %v3422 = vadd.f32 %v3277, %v3421
  %3423 = vdwg.mxu0
  %v3424 = vmul.f32 %v3085, %v474
  %v3425 = vmul.f32 %v3086, %v482
  %v3426 = vmul.f32 %v3087, %v483
  %v3427 = vmul.f32 %v3088, %v484
  %v3428 = vmul.f32 %v3089, %v480
  %v3429 = vmul.f32 %v3090, %v474
  %v3430 = vmul.f32 %v3091, %v482
  %v3431 = vmul.f32 %v3092, %v483
  %v3432 = vmul.f32 %v3093, %v484
  %v3433 = vmul.f32 %v3094, %v480
  %s3434 = scalar_lea.vmem %s7, 32
  %v3435 = vld [vmem:[%s3434] sm:$0xf]
  %v3436 = vld [vmem:[%s3434 + $0x4] sm:$0xf]
  %v3437 = vld [vmem:[%s3434 + $0x8] sm:$0xf]
  %v3438 = vld [vmem:[%s3434 + $0xc] sm:$0xf]
  %v3439 = vpack.c.bf16 %v3429, %v3424
  %v3440 = vpack.c.bf16 %v3430, %v3425
  %v3441 = vpack.c.bf16 %v3431, %v3426
  %v3442 = vpack.c.bf16 %v3432, %v3427
  %v3443 = vpack.c.bf16 %v3433, %v3428
  %v3448 = vunpack.c.l.b16 %v3435
  %v3449 = vunpack.c.l.b16 %v3436
  %v3450 = vunpack.c.l.b16 %v3437
  %v3451 = vunpack.c.l.b16 %v3438
  %v3452 = vpack.c.b16 %v3449, %v3448
  %v3453 = vpack.c.b16 %v3451, %v3450
  %3459 = vrot.lane.b32.xlu0 %v3439, 15
  %v3460 = vpop.permute.xlu0 %3459
  %3461 = vrot.lane.b32.xlu0 %v3440, 15
  %v3462 = vpop.permute.xlu0 %3461
  %3463 = vrot.lane.b32.xlu0 %v3441, 15
  %v3464 = vpop.permute.xlu0 %3463
  %3465 = vrot.lane.b32.xlu0 %v3442, 15
  %v3466 = vpop.permute.xlu0 %3465
  %3467 = vrot.lane.b32.xlu0 %v3443, 15
  %v3468 = vpop.permute.xlu0 %3467
  %v3469 = vsel %vm528, %v3460, %v3462
  %v3470 = vsel %vm528, %v3462, %v3464
  %v3471 = vsel %vm528, %v3464, %v3466
  %v3472 = vsel %vm528, %v3466, %v3468
  %v3478 = vsel %vm261, %v3452, 0
  %v3481 = vsel %vm261, %v3453, 0
  %3483 = vmatprep.subr.bf16.mxu0 0
  %3484 = vmatpush1.bf16.msra.mxu0 0
  %3485 = vmatprep.subr.bf16.mxu0 0
  %3486 = vmatpush1.bf16.msra.mxu0 0
  %3487 = vmatprep.subr.bf16.mxu0 0
  %3488 = vmatpush1.bf16.msra.mxu0 0
  %3489 = vmatprep.subr.bf16.mxu0 0
  %3490 = vmatpush1.bf16.msra.mxu0 0
  %3491 = vmatprep.subr.bf16.mxu0 0
  %3492 = vmatpush1.bf16.msra.mxu0 0
  %3493 = vmatprep.subr.bf16.mxu0 0
  %3494 = vmatpush1.bf16.msra.mxu0 0
  %3495 = vmatprep.subr.bf16.mxu0 0
  %3496 = vmatpush1.bf16.msra.mxu0 0
  %3497 = vmatprep.subr.bf16.mxu0 %v3470
  %3498 = vmatpush1.bf16.msra.mxu0 %v3469
  %3499 = vmatprep.subr.bf16.mxu0 0
  %3500 = vmatpush2.bf16.msra.mxu0 0
  %3501 = vmatprep.subr.bf16.mxu0 0
  %3502 = vmatpush2.bf16.msra.mxu0 0
  %3503 = vmatprep.subr.bf16.mxu0 0
  %3504 = vmatpush2.bf16.msra.mxu0 0
  %3505 = vmatprep.subr.bf16.mxu0 0
  %3506 = vmatpush2.bf16.msra.mxu0 0
  %3507 = vmatprep.subr.bf16.mxu0 0
  %3508 = vmatpush2.bf16.msra.mxu0 0
  %3509 = vmatprep.subr.bf16.mxu0 0
  %3510 = vmatpush2.bf16.msra.mxu0 0
  %3511 = vmatprep.subr.bf16.mxu0 0
  %3512 = vmatpush2.bf16.msra.mxu0 0
  %3513 = vmatprep.subr.bf16.mxu0 0
  %3514 = vmatpush2.bf16.msra.mxu0 0
  %3515 = vmatprep.mubr.bf16.mxu0 0
  %3516 = vmatmul.mubr.bf16.gmra.mxu0 %v3478
  %v3517 = vpop.f32.mrf.mxu0
  %v3518 = vadd.f32 0.0, %v3517
  %v3519 = vpop.f32.mrf.mxu0
  %v3520 = vadd.f32 0.0, %v3519
  %v3521 = vpop.f32.mrf.mxu0
  %v3522 = vadd.f32 0.0, %v3521
  %v3523 = vpop.f32.mrf.mxu0
  %v3524 = vadd.f32 0.0, %v3523
  %3525 = vmatprep.mubr.bf16.mxu0 0
  %3526 = vmatmul.mubr.bf16.gmra.mxu0 %v3481
  %v3527 = vpop.f32.mrf.mxu0
  %v3528 = vadd.f32 0.0, %v3527
  %v3529 = vpop.f32.mrf.mxu0
  %v3530 = vadd.f32 0.0, %v3529
  %v3531 = vpop.f32.mrf.mxu0
  %v3532 = vadd.f32 0.0, %v3531
  %v3533 = vpop.f32.mrf.mxu0
  %v3534 = vadd.f32 0.0, %v3533
  %3535 = vdwg.mxu0
  %3536 = vmatprep.subr.bf16.mxu0 0
  %3537 = vmatpush1.bf16.msra.mxu0 0
  %3538 = vmatprep.subr.bf16.mxu0 0
  %3539 = vmatpush1.bf16.msra.mxu0 0
  %3540 = vmatprep.subr.bf16.mxu0 0
  %3541 = vmatpush1.bf16.msra.mxu0 0
  %3542 = vmatprep.subr.bf16.mxu0 0
  %3543 = vmatpush1.bf16.msra.mxu0 0
  %3544 = vmatprep.subr.bf16.mxu0 0
  %3545 = vmatpush1.bf16.msra.mxu0 0
  %3546 = vmatprep.subr.bf16.mxu0 0
  %3547 = vmatpush1.bf16.msra.mxu0 0
  %3548 = vmatprep.subr.bf16.mxu0 0
  %3549 = vmatpush1.bf16.msra.mxu0 0
  %3550 = vmatprep.subr.bf16.mxu0 %v3472
  %3551 = vmatpush1.bf16.msra.mxu0 %v3471
  %3552 = vmatprep.subr.bf16.mxu0 0
  %3553 = vmatpush2.bf16.msra.mxu0 0
  %3554 = vmatprep.subr.bf16.mxu0 0
  %3555 = vmatpush2.bf16.msra.mxu0 0
  %3556 = vmatprep.subr.bf16.mxu0 0
  %3557 = vmatpush2.bf16.msra.mxu0 0
  %3558 = vmatprep.subr.bf16.mxu0 0
  %3559 = vmatpush2.bf16.msra.mxu0 0
  %3560 = vmatprep.subr.bf16.mxu0 0
  %3561 = vmatpush2.bf16.msra.mxu0 0
  %3562 = vmatprep.subr.bf16.mxu0 0
  %3563 = vmatpush2.bf16.msra.mxu0 0
  %3564 = vmatprep.subr.bf16.mxu0 0
  %3565 = vmatpush2.bf16.msra.mxu0 0
  %3566 = vmatprep.subr.bf16.mxu0 0
  %3567 = vmatpush2.bf16.msra.mxu0 0
  %3568 = vmatprep.mubr.bf16.mxu0 0
  %3569 = vmatmul.mubr.bf16.gmra.mxu0 %v3478
  %v3570 = vpop.f32.mrf.mxu0
  %v3571 = vadd.f32 0.0, %v3570
  %v3572 = vpop.f32.mrf.mxu0
  %v3573 = vadd.f32 0.0, %v3572
  %v3574 = vpop.f32.mrf.mxu0
  %v3575 = vadd.f32 0.0, %v3574
  %v3576 = vpop.f32.mrf.mxu0
  %v3577 = vadd.f32 0.0, %v3576
  %3578 = vmatprep.mubr.bf16.mxu0 0
  %3579 = vmatmul.mubr.bf16.gmra.mxu0 %v3481
  %v3580 = vpop.f32.mrf.mxu0
  %v3581 = vadd.f32 0.0, %v3580
  %v3582 = vpop.f32.mrf.mxu0
  %v3583 = vadd.f32 0.0, %v3582
  %v3584 = vpop.f32.mrf.mxu0
  %v3585 = vadd.f32 0.0, %v3584
  %v3586 = vpop.f32.mrf.mxu0
  %v3587 = vadd.f32 0.0, %v3586
  %3588 = vdwg.mxu0
  %v3589 = vadd.f32 %v3353, %v3518
  %v3590 = vadd.f32 %v3355, %v3520
  %v3591 = vadd.f32 %v3406, %v3571
  %v3592 = vadd.f32 %v3408, %v3573
  %v3593 = vadd.f32 %v3357, %v3522
  %v3594 = vadd.f32 %v3359, %v3524
  %v3595 = vadd.f32 %v3410, %v3575
  %v3596 = vadd.f32 %v3412, %v3577
  %v3597 = vadd.f32 %v3363, %v3528
  %v3598 = vadd.f32 %v3365, %v3530
  %v3599 = vadd.f32 %v3416, %v3581
  %v3600 = vadd.f32 %v3418, %v3583
  %v3601 = vadd.f32 %v3367, %v3532
  %v3602 = vadd.f32 %v3369, %v3534
  %v3603 = vadd.f32 %v3420, %v3585
  %v3604 = vadd.f32 %v3422, %v3587
  %v3605 = vmul.f32 %v3085, %v639
  %v3606 = vmul.f32 %v3086, %v647
  %v3607 = vmul.f32 %v3087, %v648
  %v3608 = vmul.f32 %v3088, %v649
  %v3609 = vmul.f32 %v3089, %v645
  %v3610 = vmul.f32 %v3090, %v639
  %v3611 = vmul.f32 %v3091, %v647
  %v3612 = vmul.f32 %v3092, %v648
  %v3613 = vmul.f32 %v3093, %v649
  %v3614 = vmul.f32 %v3094, %v645
  %s3615 = scalar_lea.vmem %s7, 48
  %v3616 = vld [vmem:[%s3615] sm:$0xf]
  %v3617 = vld [vmem:[%s3615 + $0x4] sm:$0xf]
  %v3618 = vld [vmem:[%s3615 + $0x8] sm:$0xf]
  %v3619 = vld [vmem:[%s3615 + $0xc] sm:$0xf]
  %v3620 = vpack.c.bf16 %v3610, %v3605
  %v3621 = vpack.c.bf16 %v3611, %v3606
  %v3622 = vpack.c.bf16 %v3612, %v3607
  %v3623 = vpack.c.bf16 %v3613, %v3608
  %v3624 = vpack.c.bf16 %v3614, %v3609
  %v3629 = vunpack.c.l.b16 %v3616
  %v3630 = vunpack.c.l.b16 %v3617
  %v3631 = vunpack.c.l.b16 %v3618
  %v3632 = vunpack.c.l.b16 %v3619
  %v3633 = vpack.c.b16 %v3630, %v3629
  %v3634 = vpack.c.b16 %v3632, %v3631
  %3640 = vrot.lane.b32.xlu0 %v3620, 1
  %v3641 = vpop.permute.xlu0 %3640
  %3642 = vrot.lane.b32.xlu0 %v3621, 1
  %v3643 = vpop.permute.xlu0 %3642
  %3644 = vrot.lane.b32.xlu0 %v3622, 1
  %v3645 = vpop.permute.xlu0 %3644
  %3646 = vrot.lane.b32.xlu0 %v3623, 1
  %v3647 = vpop.permute.xlu0 %3646
  %3648 = vrot.lane.b32.xlu0 %v3624, 1
  %v3649 = vpop.permute.xlu0 %3648
  %v3650 = vsel %vm693, %v3641, %v3643
  %v3651 = vsel %vm693, %v3643, %v3645
  %v3652 = vsel %vm693, %v3645, %v3647
  %v3653 = vsel %vm693, %v3647, %v3649
  %v3659 = vsel %vm261, %v3633, 0
  %v3662 = vsel %vm261, %v3634, 0
  %3664 = vmatprep.subr.bf16.mxu0 0
  %3665 = vmatpush1.bf16.msra.mxu0 0
  %3666 = vmatprep.subr.bf16.mxu0 0
  %3667 = vmatpush1.bf16.msra.mxu0 0
  %3668 = vmatprep.subr.bf16.mxu0 0
  %3669 = vmatpush1.bf16.msra.mxu0 0
  %3670 = vmatprep.subr.bf16.mxu0 0
  %3671 = vmatpush1.bf16.msra.mxu0 0
  %3672 = vmatprep.subr.bf16.mxu0 0
  %3673 = vmatpush1.bf16.msra.mxu0 0
  %3674 = vmatprep.subr.bf16.mxu0 0
  %3675 = vmatpush1.bf16.msra.mxu0 0
  %3676 = vmatprep.subr.bf16.mxu0 0
  %3677 = vmatpush1.bf16.msra.mxu0 0
  %3678 = vmatprep.subr.bf16.mxu0 %v3651
  %3679 = vmatpush1.bf16.msra.mxu0 %v3650
  %3680 = vmatprep.subr.bf16.mxu0 0
  %3681 = vmatpush2.bf16.msra.mxu0 0
  %3682 = vmatprep.subr.bf16.mxu0 0
  %3683 = vmatpush2.bf16.msra.mxu0 0
  %3684 = vmatprep.subr.bf16.mxu0 0
  %3685 = vmatpush2.bf16.msra.mxu0 0
  %3686 = vmatprep.subr.bf16.mxu0 0
  %3687 = vmatpush2.bf16.msra.mxu0 0
  %3688 = vmatprep.subr.bf16.mxu0 0
  %3689 = vmatpush2.bf16.msra.mxu0 0
  %3690 = vmatprep.subr.bf16.mxu0 0
  %3691 = vmatpush2.bf16.msra.mxu0 0
  %3692 = vmatprep.subr.bf16.mxu0 0
  %3693 = vmatpush2.bf16.msra.mxu0 0
  %3694 = vmatprep.subr.bf16.mxu0 0
  %3695 = vmatpush2.bf16.msra.mxu0 0
  %3696 = vmatprep.mubr.bf16.mxu0 0
  %3697 = vmatmul.mubr.bf16.gmra.mxu0 %v3659
  %v3698 = vpop.f32.mrf.mxu0
  %v3699 = vadd.f32 0.0, %v3698
  %v3700 = vpop.f32.mrf.mxu0
  %v3701 = vadd.f32 0.0, %v3700
  %v3702 = vpop.f32.mrf.mxu0
  %v3703 = vadd.f32 0.0, %v3702
  %v3704 = vpop.f32.mrf.mxu0
  %v3705 = vadd.f32 0.0, %v3704
  %3706 = vmatprep.mubr.bf16.mxu0 0
  %3707 = vmatmul.mubr.bf16.gmra.mxu0 %v3662
  %v3708 = vpop.f32.mrf.mxu0
  %v3709 = vadd.f32 0.0, %v3708
  %v3710 = vpop.f32.mrf.mxu0
  %v3711 = vadd.f32 0.0, %v3710
  %v3712 = vpop.f32.mrf.mxu0
  %v3713 = vadd.f32 0.0, %v3712
  %v3714 = vpop.f32.mrf.mxu0
  %v3715 = vadd.f32 0.0, %v3714
  %3716 = vdwg.mxu0
  %3717 = vmatprep.subr.bf16.mxu0 0
  %3718 = vmatpush1.bf16.msra.mxu0 0
  %3719 = vmatprep.subr.bf16.mxu0 0
  %3720 = vmatpush1.bf16.msra.mxu0 0
  %3721 = vmatprep.subr.bf16.mxu0 0
  %3722 = vmatpush1.bf16.msra.mxu0 0
  %3723 = vmatprep.subr.bf16.mxu0 0
  %3724 = vmatpush1.bf16.msra.mxu0 0
  %3725 = vmatprep.subr.bf16.mxu0 0
  %3726 = vmatpush1.bf16.msra.mxu0 0
  %3727 = vmatprep.subr.bf16.mxu0 0
  %3728 = vmatpush1.bf16.msra.mxu0 0
  %3729 = vmatprep.subr.bf16.mxu0 0
  %3730 = vmatpush1.bf16.msra.mxu0 0
  %3731 = vmatprep.subr.bf16.mxu0 %v3653
  %3732 = vmatpush1.bf16.msra.mxu0 %v3652
  %3733 = vmatprep.subr.bf16.mxu0 0
  %3734 = vmatpush2.bf16.msra.mxu0 0
  %3735 = vmatprep.subr.bf16.mxu0 0
  %3736 = vmatpush2.bf16.msra.mxu0 0
  %3737 = vmatprep.subr.bf16.mxu0 0
  %3738 = vmatpush2.bf16.msra.mxu0 0
  %3739 = vmatprep.subr.bf16.mxu0 0
  %3740 = vmatpush2.bf16.msra.mxu0 0
  %3741 = vmatprep.subr.bf16.mxu0 0
  %3742 = vmatpush2.bf16.msra.mxu0 0
  %3743 = vmatprep.subr.bf16.mxu0 0
  %3744 = vmatpush2.bf16.msra.mxu0 0
  %3745 = vmatprep.subr.bf16.mxu0 0
  %3746 = vmatpush2.bf16.msra.mxu0 0
  %3747 = vmatprep.subr.bf16.mxu0 0
  %3748 = vmatpush2.bf16.msra.mxu0 0
  %3749 = vmatprep.mubr.bf16.mxu0 0
  %3750 = vmatmul.mubr.bf16.gmra.mxu0 %v3659
  %v3751 = vpop.f32.mrf.mxu0
  %v3752 = vadd.f32 0.0, %v3751
  %v3753 = vpop.f32.mrf.mxu0
  %v3754 = vadd.f32 0.0, %v3753
  %v3755 = vpop.f32.mrf.mxu0
  %v3756 = vadd.f32 0.0, %v3755
  %v3757 = vpop.f32.mrf.mxu0
  %v3758 = vadd.f32 0.0, %v3757
  %3759 = vmatprep.mubr.bf16.mxu0 0
  %3760 = vmatmul.mubr.bf16.gmra.mxu0 %v3662
  %v3761 = vpop.f32.mrf.mxu0
  %v3762 = vadd.f32 0.0, %v3761
  %v3763 = vpop.f32.mrf.mxu0
  %v3764 = vadd.f32 0.0, %v3763
  %v3765 = vpop.f32.mrf.mxu0
  %v3766 = vadd.f32 0.0, %v3765
  %v3767 = vpop.f32.mrf.mxu0
  %v3768 = vadd.f32 0.0, %v3767
  %3769 = vdwg.mxu0
  %v3770 = vadd.f32 %v3589, %v3699
  %v3771 = vadd.f32 %v3590, %v3701
  %v3772 = vadd.f32 %v3591, %v3752
  %v3773 = vadd.f32 %v3592, %v3754
  %v3774 = vadd.f32 %v3593, %v3703
  %v3775 = vadd.f32 %v3594, %v3705
  %v3776 = vadd.f32 %v3595, %v3756
  %v3777 = vadd.f32 %v3596, %v3758
  %v3778 = vadd.f32 %v3597, %v3709
  %v3779 = vadd.f32 %v3598, %v3711
  %v3780 = vadd.f32 %v3599, %v3762
  %v3781 = vadd.f32 %v3600, %v3764
  %v3782 = vadd.f32 %v3601, %v3713
  %v3783 = vadd.f32 %v3602, %v3715
  %v3784 = vadd.f32 %v3603, %v3766
  %v3785 = vadd.f32 %v3604, %v3768
  %s3786 = scalar_lea.vmem %s7, 64
  %v3787 = vld [vmem:[%s3786] sm:$0xf]
  %v3788 = vld [vmem:[%s3786 + $0x4] sm:$0xf]
  %v3789 = vld [vmem:[%s3786 + $0x8] sm:$0xf]
  %v3790 = vld [vmem:[%s3786 + $0xc] sm:$0xf]
  %v3791 = vpack.c.bf16 %v3091, %v3086
  %v3792 = vpack.c.bf16 %v3092, %v3087
  %v3793 = vpack.c.bf16 %v3093, %v3088
  %v3794 = vpack.c.bf16 %v3094, %v3089
  %v3799 = vunpack.c.l.b16 %v3787
  %v3800 = vunpack.c.l.b16 %v3788
  %v3801 = vunpack.c.l.b16 %v3789
  %v3802 = vunpack.c.l.b16 %v3790
  %v3803 = vpack.c.b16 %v3800, %v3799
  %v3804 = vpack.c.b16 %v3802, %v3801
  %v3806 = vsel %vm261, %v3803, 0
  %v3809 = vsel %vm261, %v3804, 0
  %3811 = vmatprep.subr.bf16.mxu0 0
  %3812 = vmatpush1.bf16.msra.mxu0 0
  %3813 = vmatprep.subr.bf16.mxu0 0
  %3814 = vmatpush1.bf16.msra.mxu0 0
  %3815 = vmatprep.subr.bf16.mxu0 0
  %3816 = vmatpush1.bf16.msra.mxu0 0
  %3817 = vmatprep.subr.bf16.mxu0 0
  %3818 = vmatpush1.bf16.msra.mxu0 0
  %3819 = vmatprep.subr.bf16.mxu0 0
  %3820 = vmatpush1.bf16.msra.mxu0 0
  %3821 = vmatprep.subr.bf16.mxu0 0
  %3822 = vmatpush1.bf16.msra.mxu0 0
  %3823 = vmatprep.subr.bf16.mxu0 0
  %3824 = vmatpush1.bf16.msra.mxu0 0
  %3825 = vmatprep.subr.bf16.mxu0 %v3792
  %3826 = vmatpush1.bf16.msra.mxu0 %v3791
  %3827 = vmatprep.subr.bf16.mxu0 0
  %3828 = vmatpush2.bf16.msra.mxu0 0
  %3829 = vmatprep.subr.bf16.mxu0 0
  %3830 = vmatpush2.bf16.msra.mxu0 0
  %3831 = vmatprep.subr.bf16.mxu0 0
  %3832 = vmatpush2.bf16.msra.mxu0 0
  %3833 = vmatprep.subr.bf16.mxu0 0
  %3834 = vmatpush2.bf16.msra.mxu0 0
  %3835 = vmatprep.subr.bf16.mxu0 0
  %3836 = vmatpush2.bf16.msra.mxu0 0
  %3837 = vmatprep.subr.bf16.mxu0 0
  %3838 = vmatpush2.bf16.msra.mxu0 0
  %3839 = vmatprep.subr.bf16.mxu0 0
  %3840 = vmatpush2.bf16.msra.mxu0 0
  %3841 = vmatprep.subr.bf16.mxu0 0
  %3842 = vmatpush2.bf16.msra.mxu0 0
  %3843 = vmatprep.mubr.bf16.mxu0 0
  %3844 = vmatmul.mubr.bf16.gmra.mxu0 %v3806
  %v3845 = vpop.f32.mrf.mxu0
  %v3846 = vadd.f32 0.0, %v3845
  %v3847 = vpop.f32.mrf.mxu0
  %v3848 = vadd.f32 0.0, %v3847
  %v3849 = vpop.f32.mrf.mxu0
  %v3850 = vadd.f32 0.0, %v3849
  %v3851 = vpop.f32.mrf.mxu0
  %v3852 = vadd.f32 0.0, %v3851
  %3853 = vmatprep.mubr.bf16.mxu0 0
  %3854 = vmatmul.mubr.bf16.gmra.mxu0 %v3809
  %v3855 = vpop.f32.mrf.mxu0
  %v3856 = vadd.f32 0.0, %v3855
  %v3857 = vpop.f32.mrf.mxu0
  %v3858 = vadd.f32 0.0, %v3857
  %v3859 = vpop.f32.mrf.mxu0
  %v3860 = vadd.f32 0.0, %v3859
  %v3861 = vpop.f32.mrf.mxu0
  %v3862 = vadd.f32 0.0, %v3861
  %3863 = vdwg.mxu0
  %3864 = vmatprep.subr.bf16.mxu0 0
  %3865 = vmatpush1.bf16.msra.mxu0 0
  %3866 = vmatprep.subr.bf16.mxu0 0
  %3867 = vmatpush1.bf16.msra.mxu0 0
  %3868 = vmatprep.subr.bf16.mxu0 0
  %3869 = vmatpush1.bf16.msra.mxu0 0
  %3870 = vmatprep.subr.bf16.mxu0 0
  %3871 = vmatpush1.bf16.msra.mxu0 0
  %3872 = vmatprep.subr.bf16.mxu0 0
  %3873 = vmatpush1.bf16.msra.mxu0 0
  %3874 = vmatprep.subr.bf16.mxu0 0
  %3875 = vmatpush1.bf16.msra.mxu0 0
  %3876 = vmatprep.subr.bf16.mxu0 0
  %3877 = vmatpush1.bf16.msra.mxu0 0
  %3878 = vmatprep.subr.bf16.mxu0 %v3794
  %3879 = vmatpush1.bf16.msra.mxu0 %v3793
  %3880 = vmatprep.subr.bf16.mxu0 0
  %3881 = vmatpush2.bf16.msra.mxu0 0
  %3882 = vmatprep.subr.bf16.mxu0 0
  %3883 = vmatpush2.bf16.msra.mxu0 0
  %3884 = vmatprep.subr.bf16.mxu0 0
  %3885 = vmatpush2.bf16.msra.mxu0 0
  %3886 = vmatprep.subr.bf16.mxu0 0
  %3887 = vmatpush2.bf16.msra.mxu0 0
  %3888 = vmatprep.subr.bf16.mxu0 0
  %3889 = vmatpush2.bf16.msra.mxu0 0
  %3890 = vmatprep.subr.bf16.mxu0 0
  %3891 = vmatpush2.bf16.msra.mxu0 0
  %3892 = vmatprep.subr.bf16.mxu0 0
  %3893 = vmatpush2.bf16.msra.mxu0 0
  %3894 = vmatprep.subr.bf16.mxu0 0
  %3895 = vmatpush2.bf16.msra.mxu0 0
  %3896 = vmatprep.mubr.bf16.mxu0 0
  %3897 = vmatmul.mubr.bf16.gmra.mxu0 %v3806
  %v3898 = vpop.f32.mrf.mxu0
  %v3899 = vadd.f32 0.0, %v3898
  %v3900 = vpop.f32.mrf.mxu0
  %v3901 = vadd.f32 0.0, %v3900
  %v3902 = vpop.f32.mrf.mxu0
  %v3903 = vadd.f32 0.0, %v3902
  %v3904 = vpop.f32.mrf.mxu0
  %v3905 = vadd.f32 0.0, %v3904
  %3906 = vmatprep.mubr.bf16.mxu0 0
  %3907 = vmatmul.mubr.bf16.gmra.mxu0 %v3809
  %v3908 = vpop.f32.mrf.mxu0
  %v3909 = vadd.f32 0.0, %v3908
  %v3910 = vpop.f32.mrf.mxu0
  %v3911 = vadd.f32 0.0, %v3910
  %v3912 = vpop.f32.mrf.mxu0
  %v3913 = vadd.f32 0.0, %v3912
  %v3914 = vpop.f32.mrf.mxu0
  %v3915 = vadd.f32 0.0, %v3914
  %3916 = vdwg.mxu0
  %v3917 = vadd.f32 %v3770, %v3846
  %v3918 = vadd.f32 %v3771, %v3848
  %v3919 = vadd.f32 %v3772, %v3899
  %v3920 = vadd.f32 %v3773, %v3901
  %v3921 = vadd.f32 %v3774, %v3850
  %v3922 = vadd.f32 %v3775, %v3852
  %v3923 = vadd.f32 %v3776, %v3903
  %v3924 = vadd.f32 %v3777, %v3905
  %v3925 = vadd.f32 %v3778, %v3856
  %v3926 = vadd.f32 %v3779, %v3858
  %v3927 = vadd.f32 %v3780, %v3909
  %v3928 = vadd.f32 %v3781, %v3911
  %v3929 = vadd.f32 %v3782, %v3860
  %v3930 = vadd.f32 %v3783, %v3862
  %v3931 = vadd.f32 %v3784, %v3913
  %v3932 = vadd.f32 %v3785, %v3915
  %v3933 = vld [vmem:[#allocation2 + $0x8] sm:$0xff]
  %v3934 = vld [vmem:[#allocation2 + $0x10] sm:$0xff]
  %v3935 = vld [vmem:[#allocation2 + $0x18] sm:$0xff]
  %v3936 = vld [vmem:[#allocation2 + $0x20] sm:$0xff]
  %v3937 = vld [vmem:[#allocation2 + $0x28] sm:$0xff]
  %v3938 = vld [vmem:[#allocation2 + $0x38] sm:$0xff]
  %v3939 = vld [vmem:[#allocation2 + $0x40] sm:$0xff]
  %v3940 = vld [vmem:[#allocation2 + $0x48] sm:$0xff]
  %v3941 = vld [vmem:[#allocation2 + $0x50] sm:$0xff]
  %v3942 = vld [vmem:[#allocation2 + $0x58] sm:$0xff]
  %v3943 = vmul.f32 %v3933, %v923
  %v3944 = vmul.f32 %v3934, %v931
  %v3945 = vmul.f32 %v3935, %v932
  %v3946 = vmul.f32 %v3936, %v933
  %v3947 = vmul.f32 %v3937, %v929
  %v3948 = vmul.f32 %v3938, %v923
  %v3949 = vmul.f32 %v3939, %v931
  %v3950 = vmul.f32 %v3940, %v932
  %v3951 = vmul.f32 %v3941, %v933
  %v3952 = vmul.f32 %v3942, %v929
  %s3953 = scalar_lea.vmem %s7, 80
  %v3954 = vld [vmem:[%s3953] sm:$0xf]
  %v3955 = vld [vmem:[%s3953 + $0x4] sm:$0xf]
  %v3956 = vld [vmem:[%s3953 + $0x8] sm:$0xf]
  %v3957 = vld [vmem:[%s3953 + $0xc] sm:$0xf]
  %v3958 = vpack.c.bf16 %v3948, %v3943
  %v3959 = vpack.c.bf16 %v3949, %v3944
  %v3960 = vpack.c.bf16 %v3950, %v3945
  %v3961 = vpack.c.bf16 %v3951, %v3946
  %v3962 = vpack.c.bf16 %v3952, %v3947
  %v3967 = vunpack.c.l.b16 %v3954
  %v3968 = vunpack.c.l.b16 %v3955
  %v3969 = vunpack.c.l.b16 %v3956
  %v3970 = vunpack.c.l.b16 %v3957
  %v3971 = vpack.c.b16 %v3968, %v3967
  %v3972 = vpack.c.b16 %v3970, %v3969
  %3978 = vrot.lane.b32.xlu0 %v3958, 127
  %v3979 = vpop.permute.xlu0 %3978
  %3980 = vrot.lane.b32.xlu0 %v3959, 127
  %v3981 = vpop.permute.xlu0 %3980
  %3982 = vrot.lane.b32.xlu0 %v3960, 127
  %v3983 = vpop.permute.xlu0 %3982
  %3984 = vrot.lane.b32.xlu0 %v3961, 127
  %v3985 = vpop.permute.xlu0 %3984
  %3986 = vrot.lane.b32.xlu0 %v3962, 127
  %v3987 = vpop.permute.xlu0 %3986
  %v3988 = vsel %vm977, %v3979, %v3981
  %v3989 = vsel %vm977, %v3981, %v3983
  %v3990 = vsel %vm977, %v3983, %v3985
  %v3991 = vsel %vm977, %v3985, %v3987
  %v3997 = vsel %vm261, %v3971, 0
  %v4000 = vsel %vm261, %v3972, 0
  %4002 = vmatprep.subr.bf16.mxu0 0
  %4003 = vmatpush1.bf16.msra.mxu0 0
  %4004 = vmatprep.subr.bf16.mxu0 0
  %4005 = vmatpush1.bf16.msra.mxu0 0
  %4006 = vmatprep.subr.bf16.mxu0 0
  %4007 = vmatpush1.bf16.msra.mxu0 0
  %4008 = vmatprep.subr.bf16.mxu0 0
  %4009 = vmatpush1.bf16.msra.mxu0 0
  %4010 = vmatprep.subr.bf16.mxu0 0
  %4011 = vmatpush1.bf16.msra.mxu0 0
  %4012 = vmatprep.subr.bf16.mxu0 0
  %4013 = vmatpush1.bf16.msra.mxu0 0
  %4014 = vmatprep.subr.bf16.mxu0 0
  %4015 = vmatpush1.bf16.msra.mxu0 0
  %4016 = vmatprep.subr.bf16.mxu0 %v3989
  %4017 = vmatpush1.bf16.msra.mxu0 %v3988
  %4018 = vmatprep.subr.bf16.mxu0 0
  %4019 = vmatpush2.bf16.msra.mxu0 0
  %4020 = vmatprep.subr.bf16.mxu0 0
  %4021 = vmatpush2.bf16.msra.mxu0 0
  %4022 = vmatprep.subr.bf16.mxu0 0
  %4023 = vmatpush2.bf16.msra.mxu0 0
  %4024 = vmatprep.subr.bf16.mxu0 0
  %4025 = vmatpush2.bf16.msra.mxu0 0
  %4026 = vmatprep.subr.bf16.mxu0 0
  %4027 = vmatpush2.bf16.msra.mxu0 0
  %4028 = vmatprep.subr.bf16.mxu0 0
  %4029 = vmatpush2.bf16.msra.mxu0 0
  %4030 = vmatprep.subr.bf16.mxu0 0
  %4031 = vmatpush2.bf16.msra.mxu0 0
  %4032 = vmatprep.subr.bf16.mxu0 0
  %4033 = vmatpush2.bf16.msra.mxu0 0
  %4034 = vmatprep.mubr.bf16.mxu0 0
  %4035 = vmatmul.mubr.bf16.gmra.mxu0 %v3997
  %v4036 = vpop.f32.mrf.mxu0
  %v4037 = vadd.f32 0.0, %v4036
  %v4038 = vpop.f32.mrf.mxu0
  %v4039 = vadd.f32 0.0, %v4038
  %v4040 = vpop.f32.mrf.mxu0
  %v4041 = vadd.f32 0.0, %v4040
  %v4042 = vpop.f32.mrf.mxu0
  %v4043 = vadd.f32 0.0, %v4042
  %4044 = vmatprep.mubr.bf16.mxu0 0
  %4045 = vmatmul.mubr.bf16.gmra.mxu0 %v4000
  %v4046 = vpop.f32.mrf.mxu0
  %v4047 = vadd.f32 0.0, %v4046
  %v4048 = vpop.f32.mrf.mxu0
  %v4049 = vadd.f32 0.0, %v4048
  %v4050 = vpop.f32.mrf.mxu0
  %v4051 = vadd.f32 0.0, %v4050
  %v4052 = vpop.f32.mrf.mxu0
  %v4053 = vadd.f32 0.0, %v4052
  %4054 = vdwg.mxu0
  %4055 = vmatprep.subr.bf16.mxu0 0
  %4056 = vmatpush1.bf16.msra.mxu0 0
  %4057 = vmatprep.subr.bf16.mxu0 0
  %4058 = vmatpush1.bf16.msra.mxu0 0
  %4059 = vmatprep.subr.bf16.mxu0 0
  %4060 = vmatpush1.bf16.msra.mxu0 0
  %4061 = vmatprep.subr.bf16.mxu0 0
  %4062 = vmatpush1.bf16.msra.mxu0 0
  %4063 = vmatprep.subr.bf16.mxu0 0
  %4064 = vmatpush1.bf16.msra.mxu0 0
  %4065 = vmatprep.subr.bf16.mxu0 0
  %4066 = vmatpush1.bf16.msra.mxu0 0
  %4067 = vmatprep.subr.bf16.mxu0 0
  %4068 = vmatpush1.bf16.msra.mxu0 0
  %4069 = vmatprep.subr.bf16.mxu0 %v3991
  %4070 = vmatpush1.bf16.msra.mxu0 %v3990
  %4071 = vmatprep.subr.bf16.mxu0 0
  %4072 = vmatpush2.bf16.msra.mxu0 0
  %4073 = vmatprep.subr.bf16.mxu0 0
  %4074 = vmatpush2.bf16.msra.mxu0 0
  %4075 = vmatprep.subr.bf16.mxu0 0
  %4076 = vmatpush2.bf16.msra.mxu0 0
  %4077 = vmatprep.subr.bf16.mxu0 0
  %4078 = vmatpush2.bf16.msra.mxu0 0
  %4079 = vmatprep.subr.bf16.mxu0 0
  %4080 = vmatpush2.bf16.msra.mxu0 0
  %4081 = vmatprep.subr.bf16.mxu0 0
  %4082 = vmatpush2.bf16.msra.mxu0 0
  %4083 = vmatprep.subr.bf16.mxu0 0
  %4084 = vmatpush2.bf16.msra.mxu0 0
  %4085 = vmatprep.subr.bf16.mxu0 0
  %4086 = vmatpush2.bf16.msra.mxu0 0
  %4087 = vmatprep.mubr.bf16.mxu0 0
  %4088 = vmatmul.mubr.bf16.gmra.mxu0 %v3997
  %v4089 = vpop.f32.mrf.mxu0
  %v4090 = vadd.f32 0.0, %v4089
  %v4091 = vpop.f32.mrf.mxu0
  %v4092 = vadd.f32 0.0, %v4091
  %v4093 = vpop.f32.mrf.mxu0
  %v4094 = vadd.f32 0.0, %v4093
  %v4095 = vpop.f32.mrf.mxu0
  %v4096 = vadd.f32 0.0, %v4095
  %4097 = vmatprep.mubr.bf16.mxu0 0
  %4098 = vmatmul.mubr.bf16.gmra.mxu0 %v4000
  %v4099 = vpop.f32.mrf.mxu0
  %v4100 = vadd.f32 0.0, %v4099
  %v4101 = vpop.f32.mrf.mxu0
  %v4102 = vadd.f32 0.0, %v4101
  %v4103 = vpop.f32.mrf.mxu0
  %v4104 = vadd.f32 0.0, %v4103
  %v4105 = vpop.f32.mrf.mxu0
  %v4106 = vadd.f32 0.0, %v4105
  %4107 = vdwg.mxu0
  %v4108 = vadd.f32 %v3917, %v4037
  %v4109 = vadd.f32 %v3918, %v4039
  %v4110 = vadd.f32 %v3919, %v4090
  %v4111 = vadd.f32 %v3920, %v4092
  %v4112 = vadd.f32 %v3921, %v4041
  %v4113 = vadd.f32 %v3922, %v4043
  %v4114 = vadd.f32 %v3923, %v4094
  %v4115 = vadd.f32 %v3924, %v4096
  %v4116 = vadd.f32 %v3925, %v4047
  %v4117 = vadd.f32 %v3926, %v4049
  %v4118 = vadd.f32 %v3927, %v4100
  %v4119 = vadd.f32 %v3928, %v4102
  %v4120 = vadd.f32 %v3929, %v4051
  %v4121 = vadd.f32 %v3930, %v4053
  %v4122 = vadd.f32 %v3931, %v4104
  %v4123 = vadd.f32 %v3932, %v4106
  %v4124 = vmul.f32 %v3933, %v1088
  %v4125 = vmul.f32 %v3934, %v1096
  %v4126 = vmul.f32 %v3935, %v1097
  %v4127 = vmul.f32 %v3936, %v1098
  %v4128 = vmul.f32 %v3937, %v1094
  %v4129 = vmul.f32 %v3938, %v1088
  %v4130 = vmul.f32 %v3939, %v1096
  %v4131 = vmul.f32 %v3940, %v1097
  %v4132 = vmul.f32 %v3941, %v1098
  %v4133 = vmul.f32 %v3942, %v1094
  %s4134 = scalar_lea.vmem %s7, 96
  %v4135 = vld [vmem:[%s4134] sm:$0xf]
  %v4136 = vld [vmem:[%s4134 + $0x4] sm:$0xf]
  %v4137 = vld [vmem:[%s4134 + $0x8] sm:$0xf]
  %v4138 = vld [vmem:[%s4134 + $0xc] sm:$0xf]
  %v4139 = vpack.c.bf16 %v4129, %v4124
  %v4140 = vpack.c.bf16 %v4130, %v4125
  %v4141 = vpack.c.bf16 %v4131, %v4126
  %v4142 = vpack.c.bf16 %v4132, %v4127
  %v4143 = vpack.c.bf16 %v4133, %v4128
  %v4148 = vunpack.c.l.b16 %v4135
  %v4149 = vunpack.c.l.b16 %v4136
  %v4150 = vunpack.c.l.b16 %v4137
  %v4151 = vunpack.c.l.b16 %v4138
  %v4152 = vpack.c.b16 %v4149, %v4148
  %v4153 = vpack.c.b16 %v4151, %v4150
  %4159 = vrot.lane.b32.xlu0 %v4139, 113
  %v4160 = vpop.permute.xlu0 %4159
  %4161 = vrot.lane.b32.xlu0 %v4140, 113
  %v4162 = vpop.permute.xlu0 %4161
  %4163 = vrot.lane.b32.xlu0 %v4141, 113
  %v4164 = vpop.permute.xlu0 %4163
  %4165 = vrot.lane.b32.xlu0 %v4142, 113
  %v4166 = vpop.permute.xlu0 %4165
  %4167 = vrot.lane.b32.xlu0 %v4143, 113
  %v4168 = vpop.permute.xlu0 %4167
  %v4169 = vsel %vm1142, %v4160, %v4162
  %v4170 = vsel %vm1142, %v4162, %v4164
  %v4171 = vsel %vm1142, %v4164, %v4166
  %v4172 = vsel %vm1142, %v4166, %v4168
  %v4178 = vsel %vm261, %v4152, 0
  %v4181 = vsel %vm261, %v4153, 0
  %4183 = vmatprep.subr.bf16.mxu0 0
  %4184 = vmatpush1.bf16.msra.mxu0 0
  %4185 = vmatprep.subr.bf16.mxu0 0
  %4186 = vmatpush1.bf16.msra.mxu0 0
  %4187 = vmatprep.subr.bf16.mxu0 0
  %4188 = vmatpush1.bf16.msra.mxu0 0
  %4189 = vmatprep.subr.bf16.mxu0 0
  %4190 = vmatpush1.bf16.msra.mxu0 0
  %4191 = vmatprep.subr.bf16.mxu0 0
  %4192 = vmatpush1.bf16.msra.mxu0 0
  %4193 = vmatprep.subr.bf16.mxu0 0
  %4194 = vmatpush1.bf16.msra.mxu0 0
  %4195 = vmatprep.subr.bf16.mxu0 0
  %4196 = vmatpush1.bf16.msra.mxu0 0
  %4197 = vmatprep.subr.bf16.mxu0 %v4170
  %4198 = vmatpush1.bf16.msra.mxu0 %v4169
  %4199 = vmatprep.subr.bf16.mxu0 0
  %4200 = vmatpush2.bf16.msra.mxu0 0
  %4201 = vmatprep.subr.bf16.mxu0 0
  %4202 = vmatpush2.bf16.msra.mxu0 0
  %4203 = vmatprep.subr.bf16.mxu0 0
  %4204 = vmatpush2.bf16.msra.mxu0 0
  %4205 = vmatprep.subr.bf16.mxu0 0
  %4206 = vmatpush2.bf16.msra.mxu0 0
  %4207 = vmatprep.subr.bf16.mxu0 0
  %4208 = vmatpush2.bf16.msra.mxu0 0
  %4209 = vmatprep.subr.bf16.mxu0 0
  %4210 = vmatpush2.bf16.msra.mxu0 0
  %4211 = vmatprep.subr.bf16.mxu0 0
  %4212 = vmatpush2.bf16.msra.mxu0 0
  %4213 = vmatprep.subr.bf16.mxu0 0
  %4214 = vmatpush2.bf16.msra.mxu0 0
  %4215 = vmatprep.mubr.bf16.mxu0 0
  %4216 = vmatmul.mubr.bf16.gmra.mxu0 %v4178
  %v4217 = vpop.f32.mrf.mxu0
  %v4218 = vadd.f32 0.0, %v4217
  %v4219 = vpop.f32.mrf.mxu0
  %v4220 = vadd.f32 0.0, %v4219
  %v4221 = vpop.f32.mrf.mxu0
  %v4222 = vadd.f32 0.0, %v4221
  %v4223 = vpop.f32.mrf.mxu0
  %v4224 = vadd.f32 0.0, %v4223
  %4225 = vmatprep.mubr.bf16.mxu0 0
  %4226 = vmatmul.mubr.bf16.gmra.mxu0 %v4181
  %v4227 = vpop.f32.mrf.mxu0
  %v4228 = vadd.f32 0.0, %v4227
  %v4229 = vpop.f32.mrf.mxu0
  %v4230 = vadd.f32 0.0, %v4229
  %v4231 = vpop.f32.mrf.mxu0
  %v4232 = vadd.f32 0.0, %v4231
  %v4233 = vpop.f32.mrf.mxu0
  %v4234 = vadd.f32 0.0, %v4233
  %4235 = vdwg.mxu0
  %4236 = vmatprep.subr.bf16.mxu0 0
  %4237 = vmatpush1.bf16.msra.mxu0 0
  %4238 = vmatprep.subr.bf16.mxu0 0
  %4239 = vmatpush1.bf16.msra.mxu0 0
  %4240 = vmatprep.subr.bf16.mxu0 0
  %4241 = vmatpush1.bf16.msra.mxu0 0
  %4242 = vmatprep.subr.bf16.mxu0 0
  %4243 = vmatpush1.bf16.msra.mxu0 0
  %4244 = vmatprep.subr.bf16.mxu0 0
  %4245 = vmatpush1.bf16.msra.mxu0 0
  %4246 = vmatprep.subr.bf16.mxu0 0
  %4247 = vmatpush1.bf16.msra.mxu0 0
  %4248 = vmatprep.subr.bf16.mxu0 0
  %4249 = vmatpush1.bf16.msra.mxu0 0
  %4250 = vmatprep.subr.bf16.mxu0 %v4172
  %4251 = vmatpush1.bf16.msra.mxu0 %v4171
  %4252 = vmatprep.subr.bf16.mxu0 0
  %4253 = vmatpush2.bf16.msra.mxu0 0
  %4254 = vmatprep.subr.bf16.mxu0 0
  %4255 = vmatpush2.bf16.msra.mxu0 0
  %4256 = vmatprep.subr.bf16.mxu0 0
  %4257 = vmatpush2.bf16.msra.mxu0 0
  %4258 = vmatprep.subr.bf16.mxu0 0
  %4259 = vmatpush2.bf16.msra.mxu0 0
  %4260 = vmatprep.subr.bf16.mxu0 0
  %4261 = vmatpush2.bf16.msra.mxu0 0
  %4262 = vmatprep.subr.bf16.mxu0 0
  %4263 = vmatpush2.bf16.msra.mxu0 0
  %4264 = vmatprep.subr.bf16.mxu0 0
  %4265 = vmatpush2.bf16.msra.mxu0 0
  %4266 = vmatprep.subr.bf16.mxu0 0
  %4267 = vmatpush2.bf16.msra.mxu0 0
  %4268 = vmatprep.mubr.bf16.mxu0 0
  %4269 = vmatmul.mubr.bf16.gmra.mxu0 %v4178
  %v4270 = vpop.f32.mrf.mxu0
  %v4271 = vadd.f32 0.0, %v4270
  %v4272 = vpop.f32.mrf.mxu0
  %v4273 = vadd.f32 0.0, %v4272
  %v4274 = vpop.f32.mrf.mxu0
  %v4275 = vadd.f32 0.0, %v4274
  %v4276 = vpop.f32.mrf.mxu0
  %v4277 = vadd.f32 0.0, %v4276
  %4278 = vmatprep.mubr.bf16.mxu0 0
  %4279 = vmatmul.mubr.bf16.gmra.mxu0 %v4181
  %v4280 = vpop.f32.mrf.mxu0
  %v4281 = vadd.f32 0.0, %v4280
  %v4282 = vpop.f32.mrf.mxu0
  %v4283 = vadd.f32 0.0, %v4282
  %v4284 = vpop.f32.mrf.mxu0
  %v4285 = vadd.f32 0.0, %v4284
  %v4286 = vpop.f32.mrf.mxu0
  %v4287 = vadd.f32 0.0, %v4286
  %4288 = vdwg.mxu0
  %v4289 = vadd.f32 %v4108, %v4218
  %v4290 = vadd.f32 %v4109, %v4220
  %v4291 = vadd.f32 %v4110, %v4271
  %v4292 = vadd.f32 %v4111, %v4273
  %v4293 = vadd.f32 %v4112, %v4222
  %v4294 = vadd.f32 %v4113, %v4224
  %v4295 = vadd.f32 %v4114, %v4275
  %v4296 = vadd.f32 %v4115, %v4277
  %v4297 = vadd.f32 %v4116, %v4228
  %v4298 = vadd.f32 %v4117, %v4230
  %v4299 = vadd.f32 %v4118, %v4281
  %v4300 = vadd.f32 %v4119, %v4283
  %v4301 = vadd.f32 %v4120, %v4232
  %v4302 = vadd.f32 %v4121, %v4234
  %v4303 = vadd.f32 %v4122, %v4285
  %v4304 = vadd.f32 %v4123, %v4287
  %v4305 = vmul.f32 %v3933, %v1253
  %v4306 = vmul.f32 %v3934, %v1260
  %v4307 = vmul.f32 %v3935, %v1261
  %v4308 = vmul.f32 %v3936, %v1262
  %v4309 = vmul.f32 %v3937, %v1259
  %v4310 = vmul.f32 %v3938, %v1253
  %v4311 = vmul.f32 %v3939, %v1260
  %v4312 = vmul.f32 %v3940, %v1261
  %v4313 = vmul.f32 %v3941, %v1262
  %v4314 = vmul.f32 %v3942, %v1259
  %s4315 = scalar_lea.vmem %s7, 112
  %v4316 = vld [vmem:[%s4315] sm:$0xf]
  %v4317 = vld [vmem:[%s4315 + $0x4] sm:$0xf]
  %v4318 = vld [vmem:[%s4315 + $0x8] sm:$0xf]
  %v4319 = vld [vmem:[%s4315 + $0xc] sm:$0xf]
  %v4320 = vpack.c.bf16 %v4310, %v4305
  %v4321 = vpack.c.bf16 %v4311, %v4306
  %v4322 = vpack.c.bf16 %v4312, %v4307
  %v4323 = vpack.c.bf16 %v4313, %v4308
  %v4324 = vpack.c.bf16 %v4314, %v4309
  %v4329 = vunpack.c.l.b16 %v4316
  %v4330 = vunpack.c.l.b16 %v4317
  %v4331 = vunpack.c.l.b16 %v4318
  %v4332 = vunpack.c.l.b16 %v4319
  %v4333 = vpack.c.b16 %v4330, %v4329
  %v4334 = vpack.c.b16 %v4332, %v4331
  %4340 = vrot.lane.b32.xlu0 %v4320, 112
  %v4341 = vpop.permute.xlu0 %4340
  %4342 = vrot.lane.b32.xlu0 %v4321, 112
  %v4343 = vpop.permute.xlu0 %4342
  %4344 = vrot.lane.b32.xlu0 %v4322, 112
  %v4345 = vpop.permute.xlu0 %4344
  %4346 = vrot.lane.b32.xlu0 %v4323, 112
  %v4347 = vpop.permute.xlu0 %4346
  %4348 = vrot.lane.b32.xlu0 %v4324, 112
  %v4349 = vpop.permute.xlu0 %4348
  %v4350 = vsel %vm1306, %v4341, %v4343
  %v4351 = vsel %vm1306, %v4343, %v4345
  %v4352 = vsel %vm1306, %v4345, %v4347
  %v4353 = vsel %vm1306, %v4347, %v4349
  %v4359 = vsel %vm261, %v4333, 0
  %v4362 = vsel %vm261, %v4334, 0
  %4364 = vmatprep.subr.bf16.mxu0 0
  %4365 = vmatpush1.bf16.msra.mxu0 0
  %4366 = vmatprep.subr.bf16.mxu0 0
  %4367 = vmatpush1.bf16.msra.mxu0 0
  %4368 = vmatprep.subr.bf16.mxu0 0
  %4369 = vmatpush1.bf16.msra.mxu0 0
  %4370 = vmatprep.subr.bf16.mxu0 0
  %4371 = vmatpush1.bf16.msra.mxu0 0
  %4372 = vmatprep.subr.bf16.mxu0 0
  %4373 = vmatpush1.bf16.msra.mxu0 0
  %4374 = vmatprep.subr.bf16.mxu0 0
  %4375 = vmatpush1.bf16.msra.mxu0 0
  %4376 = vmatprep.subr.bf16.mxu0 0
  %4377 = vmatpush1.bf16.msra.mxu0 0
  %4378 = vmatprep.subr.bf16.mxu0 %v4351
  %4379 = vmatpush1.bf16.msra.mxu0 %v4350
  %4380 = vmatprep.subr.bf16.mxu0 0
  %4381 = vmatpush2.bf16.msra.mxu0 0
  %4382 = vmatprep.subr.bf16.mxu0 0
  %4383 = vmatpush2.bf16.msra.mxu0 0
  %4384 = vmatprep.subr.bf16.mxu0 0
  %4385 = vmatpush2.bf16.msra.mxu0 0
  %4386 = vmatprep.subr.bf16.mxu0 0
  %4387 = vmatpush2.bf16.msra.mxu0 0
  %4388 = vmatprep.subr.bf16.mxu0 0
  %4389 = vmatpush2.bf16.msra.mxu0 0
  %4390 = vmatprep.subr.bf16.mxu0 0
  %4391 = vmatpush2.bf16.msra.mxu0 0
  %4392 = vmatprep.subr.bf16.mxu0 0
  %4393 = vmatpush2.bf16.msra.mxu0 0
  %4394 = vmatprep.subr.bf16.mxu0 0
  %4395 = vmatpush2.bf16.msra.mxu0 0
  %4396 = vmatprep.mubr.bf16.mxu0 0
  %4397 = vmatmul.mubr.bf16.gmra.mxu0 %v4359
  %v4398 = vpop.f32.mrf.mxu0
  %v4399 = vadd.f32 0.0, %v4398
  %v4400 = vpop.f32.mrf.mxu0
  %v4401 = vadd.f32 0.0, %v4400
  %v4402 = vpop.f32.mrf.mxu0
  %v4403 = vadd.f32 0.0, %v4402
  %v4404 = vpop.f32.mrf.mxu0
  %v4405 = vadd.f32 0.0, %v4404
  %4406 = vmatprep.mubr.bf16.mxu0 0
  %4407 = vmatmul.mubr.bf16.gmra.mxu0 %v4362
  %v4408 = vpop.f32.mrf.mxu0
  %v4409 = vadd.f32 0.0, %v4408
  %v4410 = vpop.f32.mrf.mxu0
  %v4411 = vadd.f32 0.0, %v4410
  %v4412 = vpop.f32.mrf.mxu0
  %v4413 = vadd.f32 0.0, %v4412
  %v4414 = vpop.f32.mrf.mxu0
  %v4415 = vadd.f32 0.0, %v4414
  %4416 = vdwg.mxu0
  %4417 = vmatprep.subr.bf16.mxu0 0
  %4418 = vmatpush1.bf16.msra.mxu0 0
  %4419 = vmatprep.subr.bf16.mxu0 0
  %4420 = vmatpush1.bf16.msra.mxu0 0
  %4421 = vmatprep.subr.bf16.mxu0 0
  %4422 = vmatpush1.bf16.msra.mxu0 0
  %4423 = vmatprep.subr.bf16.mxu0 0
  %4424 = vmatpush1.bf16.msra.mxu0 0
  %4425 = vmatprep.subr.bf16.mxu0 0
  %4426 = vmatpush1.bf16.msra.mxu0 0
  %4427 = vmatprep.subr.bf16.mxu0 0
  %4428 = vmatpush1.bf16.msra.mxu0 0
  %4429 = vmatprep.subr.bf16.mxu0 0
  %4430 = vmatpush1.bf16.msra.mxu0 0
  %4431 = vmatprep.subr.bf16.mxu0 %v4353
  %4432 = vmatpush1.bf16.msra.mxu0 %v4352
  %4433 = vmatprep.subr.bf16.mxu0 0
  %4434 = vmatpush2.bf16.msra.mxu0 0
  %4435 = vmatprep.subr.bf16.mxu0 0
  %4436 = vmatpush2.bf16.msra.mxu0 0
  %4437 = vmatprep.subr.bf16.mxu0 0
  %4438 = vmatpush2.bf16.msra.mxu0 0
  %4439 = vmatprep.subr.bf16.mxu0 0
  %4440 = vmatpush2.bf16.msra.mxu0 0
  %4441 = vmatprep.subr.bf16.mxu0 0
  %4442 = vmatpush2.bf16.msra.mxu0 0
  %4443 = vmatprep.subr.bf16.mxu0 0
  %4444 = vmatpush2.bf16.msra.mxu0 0
  %4445 = vmatprep.subr.bf16.mxu0 0
  %4446 = vmatpush2.bf16.msra.mxu0 0
  %4447 = vmatprep.subr.bf16.mxu0 0
  %4448 = vmatpush2.bf16.msra.mxu0 0
  %4449 = vmatprep.mubr.bf16.mxu0 0
  %4450 = vmatmul.mubr.bf16.gmra.mxu0 %v4359
  %v4451 = vpop.f32.mrf.mxu0
  %v4452 = vadd.f32 0.0, %v4451
  %v4453 = vpop.f32.mrf.mxu0
  %v4454 = vadd.f32 0.0, %v4453
  %v4455 = vpop.f32.mrf.mxu0
  %v4456 = vadd.f32 0.0, %v4455
  %v4457 = vpop.f32.mrf.mxu0
  %v4458 = vadd.f32 0.0, %v4457
  %4459 = vmatprep.mubr.bf16.mxu0 0
  %4460 = vmatmul.mubr.bf16.gmra.mxu0 %v4362
  %v4461 = vpop.f32.mrf.mxu0
  %v4462 = vadd.f32 0.0, %v4461
  %v4463 = vpop.f32.mrf.mxu0
  %v4464 = vadd.f32 0.0, %v4463
  %v4465 = vpop.f32.mrf.mxu0
  %v4466 = vadd.f32 0.0, %v4465
  %v4467 = vpop.f32.mrf.mxu0
  %v4468 = vadd.f32 0.0, %v4467
  %4469 = vdwg.mxu0
  %v4470 = vadd.f32 %v4289, %v4399
  %v4471 = vadd.f32 %v4290, %v4401
  %v4472 = vadd.f32 %v4291, %v4452
  %v4473 = vadd.f32 %v4292, %v4454
  %v4474 = vadd.f32 %v4293, %v4403
  %v4475 = vadd.f32 %v4294, %v4405
  %v4476 = vadd.f32 %v4295, %v4456
  %v4477 = vadd.f32 %v4296, %v4458
  %v4478 = vadd.f32 %v4297, %v4409
  %v4479 = vadd.f32 %v4298, %v4411
  %v4480 = vadd.f32 %v4299, %v4462
  %v4481 = vadd.f32 %v4300, %v4464
  %v4482 = vadd.f32 %v4301, %v4413
  %v4483 = vadd.f32 %v4302, %v4415
  %v4484 = vadd.f32 %v4303, %v4466
  %v4485 = vadd.f32 %v4304, %v4468
  %v4486 = vmul.f32 %v3933, %v1417
  %v4487 = vmul.f32 %v3934, %v1425
  %v4488 = vmul.f32 %v3935, %v1426
  %v4489 = vmul.f32 %v3936, %v1427
  %v4490 = vmul.f32 %v3937, %v1423
  %v4491 = vmul.f32 %v3938, %v1417
  %v4492 = vmul.f32 %v3939, %v1425
  %v4493 = vmul.f32 %v3940, %v1426
  %v4494 = vmul.f32 %v3941, %v1427
  %v4495 = vmul.f32 %v3942, %v1423
  %s4496 = scalar_lea.vmem %s7, 128
  %v4497 = vld [vmem:[%s4496] sm:$0xf]
  %v4498 = vld [vmem:[%s4496 + $0x4] sm:$0xf]
  %v4499 = vld [vmem:[%s4496 + $0x8] sm:$0xf]
  %v4500 = vld [vmem:[%s4496 + $0xc] sm:$0xf]
  %v4501 = vpack.c.bf16 %v4491, %v4486
  %v4502 = vpack.c.bf16 %v4492, %v4487
  %v4503 = vpack.c.bf16 %v4493, %v4488
  %v4504 = vpack.c.bf16 %v4494, %v4489
  %v4505 = vpack.c.bf16 %v4495, %v4490
  %v4510 = vunpack.c.l.b16 %v4497
  %v4511 = vunpack.c.l.b16 %v4498
  %v4512 = vunpack.c.l.b16 %v4499
  %v4513 = vunpack.c.l.b16 %v4500
  %v4514 = vpack.c.b16 %v4511, %v4510
  %v4515 = vpack.c.b16 %v4513, %v4512
  %4521 = vrot.lane.b32.xlu0 %v4501, 111
  %v4522 = vpop.permute.xlu0 %4521
  %4523 = vrot.lane.b32.xlu0 %v4502, 111
  %v4524 = vpop.permute.xlu0 %4523
  %4525 = vrot.lane.b32.xlu0 %v4503, 111
  %v4526 = vpop.permute.xlu0 %4525
  %4527 = vrot.lane.b32.xlu0 %v4504, 111
  %v4528 = vpop.permute.xlu0 %4527
  %4529 = vrot.lane.b32.xlu0 %v4505, 111
  %v4530 = vpop.permute.xlu0 %4529
  %v4531 = vsel %vm1471, %v4522, %v4524
  %v4532 = vsel %vm1471, %v4524, %v4526
  %v4533 = vsel %vm1471, %v4526, %v4528
  %v4534 = vsel %vm1471, %v4528, %v4530
  %v4540 = vsel %vm261, %v4514, 0
  %v4543 = vsel %vm261, %v4515, 0
  %4545 = vmatprep.subr.bf16.mxu0 0
  %4546 = vmatpush1.bf16.msra.mxu0 0
  %4547 = vmatprep.subr.bf16.mxu0 0
  %4548 = vmatpush1.bf16.msra.mxu0 0
  %4549 = vmatprep.subr.bf16.mxu0 0
  %4550 = vmatpush1.bf16.msra.mxu0 0
  %4551 = vmatprep.subr.bf16.mxu0 0
  %4552 = vmatpush1.bf16.msra.mxu0 0
  %4553 = vmatprep.subr.bf16.mxu0 0
  %4554 = vmatpush1.bf16.msra.mxu0 0
  %4555 = vmatprep.subr.bf16.mxu0 0
  %4556 = vmatpush1.bf16.msra.mxu0 0
  %4557 = vmatprep.subr.bf16.mxu0 0
  %4558 = vmatpush1.bf16.msra.mxu0 0
  %4559 = vmatprep.subr.bf16.mxu0 %v4532
  %4560 = vmatpush1.bf16.msra.mxu0 %v4531
  %4561 = vmatprep.subr.bf16.mxu0 0
  %4562 = vmatpush2.bf16.msra.mxu0 0
  %4563 = vmatprep.subr.bf16.mxu0 0
  %4564 = vmatpush2.bf16.msra.mxu0 0
  %4565 = vmatprep.subr.bf16.mxu0 0
  %4566 = vmatpush2.bf16.msra.mxu0 0
  %4567 = vmatprep.subr.bf16.mxu0 0
  %4568 = vmatpush2.bf16.msra.mxu0 0
  %4569 = vmatprep.subr.bf16.mxu0 0
  %4570 = vmatpush2.bf16.msra.mxu0 0
  %4571 = vmatprep.subr.bf16.mxu0 0
  %4572 = vmatpush2.bf16.msra.mxu0 0
  %4573 = vmatprep.subr.bf16.mxu0 0
  %4574 = vmatpush2.bf16.msra.mxu0 0
  %4575 = vmatprep.subr.bf16.mxu0 0
  %4576 = vmatpush2.bf16.msra.mxu0 0
  %4577 = vmatprep.mubr.bf16.mxu0 0
  %4578 = vmatmul.mubr.bf16.gmra.mxu0 %v4540
  %v4579 = vpop.f32.mrf.mxu0
  %v4580 = vadd.f32 0.0, %v4579
  %v4581 = vpop.f32.mrf.mxu0
  %v4582 = vadd.f32 0.0, %v4581
  %v4583 = vpop.f32.mrf.mxu0
  %v4584 = vadd.f32 0.0, %v4583
  %v4585 = vpop.f32.mrf.mxu0
  %v4586 = vadd.f32 0.0, %v4585
  %4587 = vmatprep.mubr.bf16.mxu0 0
  %4588 = vmatmul.mubr.bf16.gmra.mxu0 %v4543
  %v4589 = vpop.f32.mrf.mxu0
  %v4590 = vadd.f32 0.0, %v4589
  %v4591 = vpop.f32.mrf.mxu0
  %v4592 = vadd.f32 0.0, %v4591
  %v4593 = vpop.f32.mrf.mxu0
  %v4594 = vadd.f32 0.0, %v4593
  %v4595 = vpop.f32.mrf.mxu0
  %v4596 = vadd.f32 0.0, %v4595
  %4597 = vdwg.mxu0
  %4598 = vmatprep.subr.bf16.mxu0 0
  %4599 = vmatpush1.bf16.msra.mxu0 0
  %4600 = vmatprep.subr.bf16.mxu0 0
  %4601 = vmatpush1.bf16.msra.mxu0 0
  %4602 = vmatprep.subr.bf16.mxu0 0
  %4603 = vmatpush1.bf16.msra.mxu0 0
  %4604 = vmatprep.subr.bf16.mxu0 0
  %4605 = vmatpush1.bf16.msra.mxu0 0
  %4606 = vmatprep.subr.bf16.mxu0 0
  %4607 = vmatpush1.bf16.msra.mxu0 0
  %4608 = vmatprep.subr.bf16.mxu0 0
  %4609 = vmatpush1.bf16.msra.mxu0 0
  %4610 = vmatprep.subr.bf16.mxu0 0
  %4611 = vmatpush1.bf16.msra.mxu0 0
  %4612 = vmatprep.subr.bf16.mxu0 %v4534
  %4613 = vmatpush1.bf16.msra.mxu0 %v4533
  %4614 = vmatprep.subr.bf16.mxu0 0
  %4615 = vmatpush2.bf16.msra.mxu0 0
  %4616 = vmatprep.subr.bf16.mxu0 0
  %4617 = vmatpush2.bf16.msra.mxu0 0
  %4618 = vmatprep.subr.bf16.mxu0 0
  %4619 = vmatpush2.bf16.msra.mxu0 0
  %4620 = vmatprep.subr.bf16.mxu0 0
  %4621 = vmatpush2.bf16.msra.mxu0 0
  %4622 = vmatprep.subr.bf16.mxu0 0
  %4623 = vmatpush2.bf16.msra.mxu0 0
  %4624 = vmatprep.subr.bf16.mxu0 0
  %4625 = vmatpush2.bf16.msra.mxu0 0
  %4626 = vmatprep.subr.bf16.mxu0 0
  %4627 = vmatpush2.bf16.msra.mxu0 0
  %4628 = vmatprep.subr.bf16.mxu0 0
  %4629 = vmatpush2.bf16.msra.mxu0 0
  %4630 = vmatprep.mubr.bf16.mxu0 0
  %4631 = vmatmul.mubr.bf16.gmra.mxu0 %v4540
  %v4632 = vpop.f32.mrf.mxu0
  %v4633 = vadd.f32 0.0, %v4632
  %v4634 = vpop.f32.mrf.mxu0
  %v4635 = vadd.f32 0.0, %v4634
  %v4636 = vpop.f32.mrf.mxu0
  %v4637 = vadd.f32 0.0, %v4636
  %v4638 = vpop.f32.mrf.mxu0
  %v4639 = vadd.f32 0.0, %v4638
  %4640 = vmatprep.mubr.bf16.mxu0 0
  %4641 = vmatmul.mubr.bf16.gmra.mxu0 %v4543
  %v4642 = vpop.f32.mrf.mxu0
  %v4643 = vadd.f32 0.0, %v4642
  %v4644 = vpop.f32.mrf.mxu0
  %v4645 = vadd.f32 0.0, %v4644
  %v4646 = vpop.f32.mrf.mxu0
  %v4647 = vadd.f32 0.0, %v4646
  %v4648 = vpop.f32.mrf.mxu0
  %v4649 = vadd.f32 0.0, %v4648
  %4650 = vdwg.mxu0
  %v4651 = vadd.f32 %v4470, %v4580
  %v4652 = vadd.f32 %v4471, %v4582
  %v4653 = vadd.f32 %v4472, %v4633
  %v4654 = vadd.f32 %v4473, %v4635
  %v4655 = vadd.f32 %v4474, %v4584
  %v4656 = vadd.f32 %v4475, %v4586
  %v4657 = vadd.f32 %v4476, %v4637
  %v4658 = vadd.f32 %v4477, %v4639
  %v4659 = vadd.f32 %v4478, %v4590
  %v4660 = vadd.f32 %v4479, %v4592
  %v4661 = vadd.f32 %v4480, %v4643
  %v4662 = vadd.f32 %v4481, %v4645
  %v4663 = vadd.f32 %v4482, %v4594
  %v4664 = vadd.f32 %v4483, %v4596
  %v4665 = vadd.f32 %v4484, %v4647
  %v4666 = vadd.f32 %v4485, %v4649
  %v4667 = vadd.f32 %v4651, %v4652
  %v4668 = vadd.f32 %v4667, %v4653
  %v4669 = vadd.f32 %v4668, %v4654
  %4670 = vadd.xlane.f32.xlu0 %v4669
  %v4671 = vpop.xlane.xlu0 %4670
  %v4672 = vadd.f32 %v4655, %v4656
  %v4673 = vadd.f32 %v4672, %v4657
  %v4674 = vadd.f32 %v4673, %v4658
  %4675 = vadd.xlane.f32.xlu0 %v4674
  %v4676 = vpop.xlane.xlu0 %4675
  %v4677 = vadd.f32 %v4659, %v4660
  %v4678 = vadd.f32 %v4677, %v4661
  %v4679 = vadd.f32 %v4678, %v4662
  %4680 = vadd.xlane.f32.xlu0 %v4679
  %v4681 = vpop.xlane.xlu0 %4680
  %v4682 = vadd.f32 %v4663, %v4664
  %v4683 = vadd.f32 %v4682, %v4665
  %v4684 = vadd.f32 %v4683, %v4666
  %4685 = vadd.xlane.f32.xlu0 %v4684
  %v4686 = vpop.xlane.xlu0 %4685
  %v4687 = vmul.f32 %v4671, 0.001953125
  %v4688 = vmul.f32 %v4676, 0.001953125
  %v4689 = vmul.f32 %v4681, 0.001953125
  %v4690 = vmul.f32 %v4686, 0.001953125
  %v4691 = vmul.f32 %v4651, %v4651
  %v4692 = vmul.f32 %v4652, %v4652
  %v4693 = vmul.f32 %v4653, %v4653
  %v4694 = vmul.f32 %v4654, %v4654
  %v4695 = vmul.f32 %v4655, %v4655
  %v4696 = vmul.f32 %v4656, %v4656
  %v4697 = vmul.f32 %v4657, %v4657
  %v4698 = vmul.f32 %v4658, %v4658
  %v4699 = vmul.f32 %v4659, %v4659
  %v4700 = vmul.f32 %v4660, %v4660
  %v4701 = vmul.f32 %v4661, %v4661
  %v4702 = vmul.f32 %v4662, %v4662
  %v4703 = vmul.f32 %v4663, %v4663
  %v4704 = vmul.f32 %v4664, %v4664
  %v4705 = vmul.f32 %v4665, %v4665
  %v4706 = vmul.f32 %v4666, %v4666
  %v4707 = vadd.f32 %v4691, %v4692
  %v4708 = vadd.f32 %v4707, %v4693
  %v4709 = vadd.f32 %v4708, %v4694
  %4710 = vadd.xlane.f32.xlu0 %v4709
  %v4711 = vpop.xlane.xlu0 %4710
  %v4712 = vadd.f32 %v4695, %v4696
  %v4713 = vadd.f32 %v4712, %v4697
  %v4714 = vadd.f32 %v4713, %v4698
  %4715 = vadd.xlane.f32.xlu0 %v4714
  %v4716 = vpop.xlane.xlu0 %4715
  %v4717 = vadd.f32 %v4699, %v4700
  %v4718 = vadd.f32 %v4717, %v4701
  %v4719 = vadd.f32 %v4718, %v4702
  %4720 = vadd.xlane.f32.xlu0 %v4719
  %v4721 = vpop.xlane.xlu0 %4720
  %v4722 = vadd.f32 %v4703, %v4704
  %v4723 = vadd.f32 %v4722, %v4705
  %v4724 = vadd.f32 %v4723, %v4706
  %4725 = vadd.xlane.f32.xlu0 %v4724
  %v4726 = vpop.xlane.xlu0 %4725
  %v4727 = vmul.f32 %v4711, 0.001953125
  %v4728 = vmul.f32 %v4716, 0.001953125
  %v4729 = vmul.f32 %v4721, 0.001953125
  %v4730 = vmul.f32 %v4726, 0.001953125
  %v4731 = vmul.f32 %v4687, %v4687
  %v4732 = vmul.f32 %v4688, %v4688
  %v4733 = vmul.f32 %v4689, %v4689
  %v4734 = vmul.f32 %v4690, %v4690
  %v4735 = vsub.f32 %v4727, %v4731
  %v4736 = vsub.f32 %v4728, %v4732
  %v4737 = vsub.f32 %v4729, %v4733
  %v4738 = vsub.f32 %v4730, %v4734
  %v4739 = vld [vmem:[%s8] sm:$0xff]
  %v4740 = vld [vmem:[%s8 + $0x8] sm:$0xff]
  %v4741 = vld [vmem:[%s8 + $0x10] sm:$0xff]
  %v4742 = vld [vmem:[%s8 + $0x18] sm:$0xff]
  %v4743 = vadd.f32 %v4735, 1e-05
  %v4744 = vadd.f32 %v4736, 1e-05
  %v4745 = vadd.f32 %v4737, 1e-05
  %v4746 = vadd.f32 %v4738, 1e-05
  %v4747 = vrsqrt.pop %v4743
  %v4748 = vrsqrt.pop %v4744
  %v4749 = vrsqrt.pop %v4745
  %v4750 = vrsqrt.pop %v4746
  %v4751 = vmul.f32 %v4739, %v4747
  %v4752 = vmul.f32 %v4740, %v4748
  %v4753 = vmul.f32 %v4741, %v4749
  %v4754 = vmul.f32 %v4742, %v4750
  %v4755 = vld [vmem:[%s9] sm:$0xff]
  %v4756 = vld [vmem:[%s9 + $0x8] sm:$0xff]
  %v4757 = vld [vmem:[%s9 + $0x10] sm:$0xff]
  %v4758 = vld [vmem:[%s9 + $0x18] sm:$0xff]
  %v4759 = vmul.f32 %v4687, %v4751
  %v4760 = vmul.f32 %v4688, %v4752
  %v4761 = vmul.f32 %v4689, %v4753
  %v4762 = vmul.f32 %v4690, %v4754
  %v4763 = vsub.f32 %v4755, %v4759
  %v4764 = vsub.f32 %v4756, %v4760
  %v4765 = vsub.f32 %v4757, %v4761
  %v4766 = vsub.f32 %v4758, %v4762
  %4768 = vset.pattern.permute.xlu0 0
  %4769 = vperm.xlu0 %4768, %v4751
  %v4770 = vpop.permute.xlu0 %4769
  %4773 = vset.pattern.permute.xlu0 0
  %4774 = vperm.xlu0 %4773, %v4752
  %v4775 = vpop.permute.xlu0 %4774
  %4778 = vset.pattern.permute.xlu0 0
  %4779 = vperm.xlu0 %4778, %v4753
  %v4780 = vpop.permute.xlu0 %4779
  %4783 = vset.pattern.permute.xlu0 0
  %4784 = vperm.xlu0 %4783, %v4754
  %v4785 = vpop.permute.xlu0 %4784
  %v4787 = vmul.f32 %v4651, %v4770
  %v4788 = vmul.f32 %v4652, %v4770
  %v4789 = vmul.f32 %v4653, %v4770
  %v4790 = vmul.f32 %v4654, %v4770
  %v4791 = vmul.f32 %v4655, %v4775
  %v4792 = vmul.f32 %v4656, %v4775
  %v4793 = vmul.f32 %v4657, %v4775
  %v4794 = vmul.f32 %v4658, %v4775
  %v4795 = vmul.f32 %v4659, %v4780
  %v4796 = vmul.f32 %v4660, %v4780
  %v4797 = vmul.f32 %v4661, %v4780
  %v4798 = vmul.f32 %v4662, %v4780
  %v4799 = vmul.f32 %v4663, %v4785
  %v4800 = vmul.f32 %v4664, %v4785
  %v4801 = vmul.f32 %v4665, %v4785
  %v4802 = vmul.f32 %v4666, %v4785
  %4804 = vset.pattern.permute.xlu0 0
  %4805 = vperm.xlu0 %4804, %v4763
  %v4806 = vpop.permute.xlu0 %4805
  %4809 = vset.pattern.permute.xlu0 0
  %4810 = vperm.xlu0 %4809, %v4764
  %v4811 = vpop.permute.xlu0 %4810
  %4814 = vset.pattern.permute.xlu0 0
  %4815 = vperm.xlu0 %4814, %v4765
  %v4816 = vpop.permute.xlu0 %4815
  %4819 = vset.pattern.permute.xlu0 0
  %4820 = vperm.xlu0 %4819, %v4766
  %v4821 = vpop.permute.xlu0 %4820
  %v4823 = vadd.f32 %v4787, %v4806
  %v4824 = vadd.f32 %v4788, %v4806
  %v4825 = vadd.f32 %v4789, %v4806
  %v4826 = vadd.f32 %v4790, %v4806
  %v4827 = vadd.f32 %v4791, %v4811
  %v4828 = vadd.f32 %v4792, %v4811
  %v4829 = vadd.f32 %v4793, %v4811
  %v4830 = vadd.f32 %v4794, %v4811
  %v4831 = vadd.f32 %v4795, %v4816
  %v4832 = vadd.f32 %v4796, %v4816
  %v4833 = vadd.f32 %v4797, %v4816
  %v4834 = vadd.f32 %v4798, %v4816
  %v4835 = vadd.f32 %v4799, %v4821
  %v4836 = vadd.f32 %v4800, %v4821
  %v4837 = vadd.f32 %v4801, %v4821
  %v4838 = vadd.f32 %v4802, %v4821
  %v4839 = vtanh.pop %v4823
  %v4840 = vtanh.pop %v4824
  %v4841 = vtanh.pop %v4825
  %v4842 = vtanh.pop %v4826
  %v4843 = vtanh.pop %v4827
  %v4844 = vtanh.pop %v4828
  %v4845 = vtanh.pop %v4829
  %v4846 = vtanh.pop %v4830
  %v4847 = vtanh.pop %v4831
  %v4848 = vtanh.pop %v4832
  %v4849 = vtanh.pop %v4833
  %v4850 = vtanh.pop %v4834
  %v4851 = vtanh.pop %v4835
  %v4852 = vtanh.pop %v4836
  %v4853 = vtanh.pop %v4837
  %v4854 = vtanh.pop %v4838
  %4855 = vst [vmem:[%s12] sm:$0xff] %v4839
  %4856 = vst [vmem:[%s12 + $0x8] sm:$0xff] %v4840
  %4857 = vst [vmem:[%s12 + $0x10] sm:$0xff] %v4841
  %4858 = vst [vmem:[%s12 + $0x18] sm:$0xff] %v4842
  %4859 = vst [vmem:[%s12 + $0x20] sm:$0xff] %v4843
  %4860 = vst [vmem:[%s12 + $0x28] sm:$0xff] %v4844
  %4861 = vst [vmem:[%s12 + $0x30] sm:$0xff] %v4845
  %4862 = vst [vmem:[%s12 + $0x38] sm:$0xff] %v4846
  %4863 = vst [vmem:[%s13] sm:$0xff] %v4847
  %4864 = vst [vmem:[%s13 + $0x8] sm:$0xff] %v4848
  %4865 = vst [vmem:[%s13 + $0x10] sm:$0xff] %v4849
  %4866 = vst [vmem:[%s13 + $0x18] sm:$0xff] %v4850
  %4867 = vst [vmem:[%s13 + $0x20] sm:$0xff] %v4851
  %4868 = vst [vmem:[%s13 + $0x28] sm:$0xff] %v4852
  %4869 = vst [vmem:[%s13 + $0x30] sm:$0xff] %v4853
  %4870 = vst [vmem:[%s13 + $0x38] sm:$0xff] %v4854
  // Predicated region
  $region42: #{encoder_forward.1} parent=0 // pred_check
    _
  $region43: #{encoder_forward.1} parent=0 // pred_check_branch
    %4872 = sbr.rel (0) target = $region45
  $region44: #{encoder_forward.1} parent=0 // pred_region
    _
  $region45: #{encoder_forward.1} parent=0 // pred_fallthru
    _
  // Predicated region
  $region46: #{encoder_forward.1} parent=0 // pred_check
    _
  $region47: #{encoder_forward.1} parent=0 // pred_check_branch
    %4874 = sbr.rel (0) target = $region49
  $region48: #{encoder_forward.1} parent=0 // pred_region
    _
  $region49: #{encoder_forward.1} parent=0 // pred_fallthru
    _
  // Predicated region
  $region50: #{encoder_forward.1} parent=0 // pred_check
    _
  $region51: #{encoder_forward.1} parent=0 // pred_check_branch
    %4876 = sbr.rel (0) target = $region53
  $region52: #{encoder_forward.1} parent=0 // pred_region
    _
  $region53: #{encoder_forward.1} parent=0 // pred_fallthru
    _
  // Predicated region
  $region54: #{encoder_forward.1} parent=0 // pred_check
    _
  $region55: #{encoder_forward.1} parent=0 // pred_check_branch
    %4878 = sbr.rel (0) target = $region57
  $region56: #{encoder_forward.1} parent=0 // pred_region
    _
  $region57: #{encoder_forward.1} parent=0 // pred_fallthru
    _
  // Predicated region
  $region58: #{encoder_forward.1} parent=0 // pred_check
    _
  $region59: #{encoder_forward.1} parent=0 // pred_check_branch
    %4880 = sbr.rel (0) target = $region61
  $region60: #{encoder_forward.1} parent=0 // pred_region
    _
  $region61: #{encoder_forward.1} parent=0 // pred_fallthru
    _
  // Predicated region
  $region62: #{encoder_forward.1} parent=0 // pred_check
    _
  $region63: #{encoder_forward.1} parent=0 // pred_check_branch
    %4882 = sbr.rel (0) target = $region65
  $region64: #{encoder_forward.1} parent=0 // pred_region
    _
  $region65: #{encoder_forward.1} parent=0 // pred_fallthru
    _
  // Predicated region
  $region66: #{encoder_forward.1} parent=0 // pred_check
    _
  $region67: #{encoder_forward.1} parent=0 // pred_check_branch
    %4884 = sbr.rel (0) target = $region69
  $region68: #{encoder_forward.1} parent=0 // pred_region
    _
  $region69: #{encoder_forward.1} parent=0 // pred_fallthru
    _
  // Predicated region
  $region70: #{encoder_forward.1} parent=0 // pred_check
    _
  $region71: #{encoder_forward.1} parent=0 // pred_check_branch
    %4886 = sbr.rel (0) target = $region73
  $region72: #{encoder_forward.1} parent=0 // pred_region
    _
  $region73: #{encoder_forward.1} parent=0 // pred_fallthru
    _

</llo_original>
